<compile_context>
chip_gen: v7x
topology: tpu7x:2x2x1
jax: 0.10.0
libtpu: 0.0.40
codegen_flags: <defaults>
</compile_context>

<pallas_src>
import functools

import jax
import jax.numpy as jnp
from jax.experimental import pallas as pl
from jax.experimental.pallas import tpu as pltpu


# ----------------------------------------------------------------------------- #
# Fused decoder-layer kernel (single invocation, whole batch in VMEM)
# ----------------------------------------------------------------------------- #
def _make_decoder_kernel(*, B, Lq, Lm, D, H, E_sa, E_ca, wcols, vrows):
    f32 = jnp.float32

    def kernel(tgt_ref, qpos_ref, mem_ref, mpos_ref, wd_ref, wff2_ref, vec_ref,
               out_ref):
        mdt = wd_ref.dtype  # matmul operand dtype (weights pre-cast in wrapper)

        def wcol(name):
            o, s = wcols[name]
            return wd_ref[:, o:o + s]            # static lane slice of the slab

        def vrow(name):
            r, s = vrows[name]
            return vec_ref[r:r + 1, :s]          # (1, s) bias / LN vector

        def mm(x, w):
            return jnp.dot(x.astype(mdt), w, preferred_element_type=f32)

        def layer_norm(x, g, b):
            mu = jnp.mean(x, axis=-1, keepdims=True)
            var = jnp.mean((x - mu) ** 2, axis=-1, keepdims=True)
            return (x - mu) * jax.lax.rsqrt(var + 1e-5) * g + b

        def mha(q2, k2, v2, lq, lk, e_dim, w_out_name, b_out_name):
            # 1/sqrt(dh) already folded into the q projection weights/bias.
            dh = e_dim // H
            dv = D // H
            q2 = q2.astype(mdt)
            k2 = k2.astype(mdt)
            v2 = v2.astype(mdt)
            ctx_rows, w_rows = [], []
            # Static unroll over the (small) batch; for large B this would be a
            # "parallel" grid axis instead.
            for b in range(B):
                qb = q2[b * lq:(b + 1) * lq, :]
                kb = k2[b * lk:(b + 1) * lk, :]
                vb = v2[b * lk:(b + 1) * lk, :]
                wsum = jnp.zeros((lq, lk), f32)
                ctx_h = []
                for h in range(H):
                    qh = qb[:, h * dh:(h + 1) * dh]
                    kh = kb[:, h * dh:(h + 1) * dh]
                    vh = vb[:, h * dv:(h + 1) * dv]
                    # scores = q @ k^T (contract last dims; no transpose)
                    s = jax.lax.dot_general(
                        qh, kh, (((1,), (1,)), ((), ())),
                        preferred_element_type=f32)
                    mx = jnp.max(s, axis=-1, keepdims=True)
                    ex = jnp.exp(s - mx)
                    p = ex * pl.reciprocal(
                        jnp.sum(ex, axis=-1, keepdims=True), approx=True)
                    wsum = wsum + p
                    ctx_h.append(jnp.dot(p.astype(mdt), vh,
                                         preferred_element_type=f32))
                ctx_rows.append(jnp.concatenate(ctx_h, axis=-1))   # (lq, D)
                w_rows.append(wsum * (1.0 / H))
            # Contiguous head contexts -> single out-projection matmul.
            ctx_all = jnp.concatenate(ctx_rows, axis=0)            # (B*lq, D)
            attn = mm(ctx_all, wcol(w_out_name)) + vrow(b_out_name)
            return attn, w_rows

        tgt = tgt_ref[...]        # (B*Lq, D) f32
        qpos = qpos_ref[...]      # (B*Lq, D)
        mem = mem_ref[...]        # (B*Lm, D)
        mpos = mpos_ref[...]      # (B*Lm, D)

        # ---- self-attention: folded [q|k|v] projections + MHA + LN1 ----------
        E = E_sa
        tp = mm(tgt, wcol("sa_tgt"))        # (B*Lq, 2E+D)  [q | k | v] from tgt
        pp = mm(qpos, wcol("sa_pos"))       # (B*Lq, 2E)    [q | k]     from qpos
        b_sa = vrow("sa_b")                 # (1, 2E+D) folded biases
        q = tp[:, :E] + pp[:, :E] + b_sa[:, :E]
        k = tp[:, E:2 * E] + pp[:, E:] + b_sa[:, E:2 * E]
        v = tp[:, 2 * E:] + b_sa[:, 2 * E:]
        sa_out, sa_w_rows = mha(q, k, v, Lq, Lq, E, "sa_out", "sa_out_b")
        tgt = layer_norm(tgt + sa_out, vrow("ln1_g"), vrow("ln1_b"))

        # ---- cross-attention: folded projections + MHA + LN2 -----------------
        E = E_ca
        q = mm(tgt, wcol("ca_q_tgt")) + mm(qpos, wcol("ca_q_pos")) + vrow("ca_q_b")
        mkv = mm(mem, wcol("ca_mem"))       # (B*Lm, E+D)  [k | v] from memory
        kp = mm(mpos, wcol("ca_mpos"))      # (B*Lm, E)
        b_kv = vrow("ca_kv_b")              # (1, E+D)
        k = mkv[:, :E] + kp + b_kv[:, :E]
        v = mkv[:, E:] + b_kv[:, E:]
        ca_out, ca_w_rows = mha(q, k, v, Lq, Lm, E, "ca_out", "ca_out_b")
        tgt = layer_norm(tgt + ca_out, vrow("ln2_g"), vrow("ln2_b"))

        # ---- feed-forward + LN3 ----------------------------------------------
        h1 = jnp.maximum(mm(tgt, wcol("ff1")) + vrow("ff1_b"), 0.0)   # relu
        ff = jnp.dot(h1.astype(mdt), wff2_ref[...],
                     preferred_element_type=f32) + vrow("ff2_b")
        tgt = layer_norm(tgt + ff, vrow("ln3_g"), vrow("ln3_b"))

        # ---- single packed lane-dense store: [output | sa_w | ca_w] ----------
        saw = jnp.concatenate(sa_w_rows, axis=0)    # (B*Lq, Lq)
        caw = jnp.concatenate(ca_w_rows, axis=0)    # (B*Lq, Lm)
        out_ref[...] = jnp.concatenate([tgt, saw, caw], axis=-1)

    return kernel


# ----------------------------------------------------------------------------- #
# Parameter init (deterministic, PyTorch nn.Linear-style uniform)
# ----------------------------------------------------------------------------- #
def init_linear_params(key, d_in, d_out):
    k1, k2 = jax.random.split(key)
    bound = 1.0 / (d_in ** 0.5)
    w = jax.random.uniform(k1, (d_in, d_out), jnp.float32, -bound, bound)
    b = jax.random.uniform(k2, (d_out,), jnp.float32, -bound, bound)
    return w, b


def init_params(key, d_model, n_head, d_feedforward, sa_fuse, ca_fuse):
    d_sa = 2 * d_model if sa_fuse == "concat" else d_model
    d_ca = 2 * d_model if ca_fuse == "concat" else d_model
    names_dims = [
        ("sa_q_content_proj", d_model, d_model),
        ("sa_q_pos_proj", d_model, d_model),
        ("sa_k_content_proj", d_model, d_model),
        ("sa_k_pos_proj", d_model, d_model),
        ("sa_v_proj", d_model, d_model),
        # DAB-DETR-style MultiheadAttention(embed_dim=d_sa, vdim=d_model):
        #   q/k in-proj (d_sa->d_sa), v in-proj (d_model->d_model),
        #   out-proj (d_model->d_model).
        ("self_attn_q_in", d_sa, d_sa),
        ("self_attn_k_in", d_sa, d_sa),
        ("self_attn_v_in", d_model, d_model),
        ("self_attn_out", d_model, d_model),
        ("ca_q_content_proj", d_model, d_model),
        ("ca_q_pos_proj", d_model, d_model),
        ("ca_k_content_proj", d_model, d_model),
        ("ca_k_pos_proj", d_model, d_model),
        ("ca_v_proj", d_model, d_model),
        ("cross_attn_q_in", d_ca, d_ca),
        ("cross_attn_k_in", d_ca, d_ca),
        ("cross_attn_v_in", d_model, d_model),
        ("cross_attn_out", d_model, d_model),
        ("linear1", d_model, d_feedforward),
        ("linear2", d_feedforward, d_model),
    ]
    params = {}
    keys = jax.random.split(key, len(names_dims))
    for (name, di, do), k in zip(names_dims, keys):
        params[name] = init_linear_params(k, di, do)
    for name in ("norm1", "norm2", "norm3"):
        params[name] = (jnp.ones((d_model,), jnp.float32),
                        jnp.zeros((d_model,), jnp.float32))
    return params


# ----------------------------------------------------------------------------- #
# Forward pass wrapper (offline weight folding + single fused pallas_call)
# ----------------------------------------------------------------------------- #
@functools.partial(
    jax.jit,
    static_argnames=("d_model", "n_head", "sa_fuse", "ca_fuse", "matmul_dtype"))
def decoder_layer_forward(
    params,
    video_features,                 # (Lm, B, D) - cross-attn memory
    diagram_features,               # (Lq, B, D) - query content ("tgt")
    positional_query,               # (Lq, B, D)
    video_positional_encoding,      # (Lm, B, D)
    *,
    d_model,
    n_head,
    sa_fuse="add",
    ca_fuse="concat",
    matmul_dtype=jnp.bfloat16,      # MXU fast path; f32 accumulation everywhere
):
    Lq, B, D = diagram_features.shape
    Lm = video_features.shape[0]
    d_ff = params["linear1"][0].shape[1]
    E_sa = 2 * d_model if sa_fuse == "concat" else d_model
    E_ca = 2 * d_model if ca_fuse == "concat" else d_model
    H = n_head

    def _w(n):
        return params[n][0]

    def _b(n):
        return params[n][1]

    # --- exact offline folding of (content/pos proj) o (MHA in-proj) ---------
    def fold_qk(wc, bc, wp, bp, w_in, b_in, fuse, scale):
        if fuse == "add":
            wt, wpos = wc @ w_in, wp @ w_in
            bb = (bc + bp) @ w_in + b_in
        else:  # 'concat': [content | pos] along features before the in-proj
            wt, wpos = wc @ w_in[:d_model], wp @ w_in[d_model:]
            bb = bc @ w_in[:d_model] + bp @ w_in[d_model:] + b_in
        return wt * scale, wpos * scale, bb * scale

    def fold_v(wv, bv, w_in, b_in):
        return wv @ w_in, bv @ w_in + b_in

    sc_sa = (E_sa // H) ** -0.5     # softmax scale folded into the q weights
    sc_ca = (E_ca // H) ** -0.5

    sa_qt, sa_qp, sa_qb = fold_qk(
        _w("sa_q_content_proj"), _b("sa_q_content_proj"),
        _w("sa_q_pos_proj"), _b("sa_q_pos_proj"),
        _w("self_attn_q_in"), _b("self_attn_q_in"), sa_fuse, sc_sa)
    sa_kt, sa_kp, sa_kb = fold_qk(
        _w("sa_k_content_proj"), _b("sa_k_content_proj"),
        _w("sa_k_pos_proj"), _b("sa_k_pos_proj"),
        _w("self_attn_k_in"), _b("self_attn_k_in"), sa_fuse, 1.0)
    sa_vt, sa_vb = fold_v(_w("sa_v_proj"), _b("sa_v_proj"),
                          _w("self_attn_v_in"), _b("self_attn_v_in"))

    ca_qt, ca_qp, ca_qb = fold_qk(
        _w("ca_q_content_proj"), _b("ca_q_content_proj"),
        _w("ca_q_pos_proj"), _b("ca_q_pos_proj"),
        _w("cross_attn_q_in"), _b("cross_attn_q_in"), ca_fuse, sc_ca)
    ca_km, ca_kp, ca_kb = fold_qk(
        _w("ca_k_content_proj"), _b("ca_k_content_proj"),
        _w("ca_k_pos_proj"), _b("ca_k_pos_proj"),
        _w("cross_attn_k_in"), _b("cross_attn_k_in"), ca_fuse, 1.0)
    ca_vm, ca_vb = fold_v(_w("ca_v_proj"), _b("ca_v_proj"),
                          _w("cross_attn_v_in"), _b("cross_attn_v_in"))

    # --- one lane-dense weight slab (all D-row matrices) + linear2 -----------
    sections = [
        ("sa_tgt", jnp.concatenate([sa_qt, sa_kt, sa_vt], axis=1)),
        ("sa_pos", jnp.concatenate([sa_qp, sa_kp], axis=1)),
        ("ca_q_tgt", ca_qt),
        ("ca_q_pos", ca_qp),
        ("ca_mem", jnp.concatenate([ca_km, ca_vm], axis=1)),
        ("ca_mpos", ca_kp),
        ("sa_out", _w("self_attn_out")),
        ("ca_out", _w("cross_attn_out")),
        ("ff1", _w("linear1")),
    ]
    wcols, off = {}, 0
    for name, arr in sections:
        wcols[name] = (off, int(arr.shape[1]))
        off += int(arr.shape[1])
    wd = jnp.concatenate([a for _, a in sections], axis=1).astype(matmul_dtype)
    wff2 = _w("linear2").astype(matmul_dtype)

    # --- one bias / LayerNorm vector slab (one zero-padded row per vector) ---
    vec_list = [
        ("sa_b", jnp.concatenate([sa_qb, sa_kb, sa_vb])),
        ("sa_out_b", _b("self_attn_out")),
        ("ln1_g", params["norm1"][0]), ("ln1_b", params["norm1"][1]),
        ("ca_q_b", ca_qb),
        ("ca_kv_b", jnp.concatenate([ca_kb, ca_vb])),
        ("ca_out_b", _b("cross_attn_out")),
        ("ln2_g", params["norm2"][0]), ("ln2_b", params["norm2"][1]),
        ("ff1_b", _b("linear1")),
        ("ff2_b", _b("linear2")),
        ("ln3_g", params["norm3"][0]), ("ln3_b", params["norm3"][1]),
    ]
    wv = max(int(v.shape[0]) for _, v in vec_list)
    vrows = {name: (i, int(v.shape[0])) for i, (name, v) in enumerate(vec_list)}
    vec = jnp.stack([jnp.pad(v, (0, wv - int(v.shape[0])))
                     for _, v in vec_list]).astype(jnp.float32)

    # --- activations: (L, B, D) -> batch-major 2D slabs (B*L, D) -------------
    # TODO(synk): if the external contract becomes batch-major, drop these.
    tgt2 = jnp.transpose(diagram_features, (1, 0, 2)).reshape(B * Lq, D)
    qpos2 = jnp.transpose(positional_query, (1, 0, 2)).reshape(B * Lq, D)
    mem2 = jnp.transpose(video_features, (1, 0, 2)).reshape(B * Lm, D)
    mpos2 = jnp.transpose(video_positional_encoding, (1, 0, 2)).reshape(B * Lm, D)

    kernel = _make_decoder_kernel(
        B=B, Lq=Lq, Lm=Lm, D=D, H=H, E_sa=E_sa, E_ca=E_ca,
        wcols=wcols, vrows=vrows)

    packed = pl.pallas_call(
        kernel,
        out_shape=jax.ShapeDtypeStruct((B * Lq, D + Lq + Lm), jnp.float32),
        compiler_params=pltpu.CompilerParams(
            vmem_limit_bytes=32 * 1024 * 1024),
    )(tgt2, qpos2, mem2, mpos2, wd, wff2, vec)

    packed = packed.reshape(B, Lq, D + Lq + Lm)
    output = jnp.transpose(packed[:, :, :D], (1, 0, 2))      # (Lq, B, D)
    sa_w = packed[:, :, D:D + Lq]                            # (B, Lq, Lq)
    ca_w = packed[:, :, D + Lq:]                             # (B, Lq, Lm)
    return {"output": output, "ca_weight": ca_w, "sa_weight": sa_w}


# ----------------------------------------------------------------------------- #
# Main
# ----------------------------------------------------------------------------- #
if __name__ == "__main__":
    d_model = 32
    n_head = 4
    d_feedforward = 64
    B = 2        # batch
    Lq = 8       # number of (diagram) queries
    Lm = 16      # video memory length
    sa_fuse = "add"
    ca_fuse = "concat"

    key = jax.random.PRNGKey(0)
    kp, k1, k2, k3, k4 = jax.random.split(key, 5)

    params = init_params(kp, d_model, n_head, d_feedforward, sa_fuse, ca_fuse)

    video_features = jax.random.normal(k1, (Lm, B, d_model), jnp.float32)
    diagram_features = jax.random.normal(k2, (Lq, B, d_model), jnp.float32)
    positional_query = jax.random.normal(k3, (Lq, B, d_model), jnp.float32)
    video_pos_enc = jax.random.normal(k4, (Lm, B, d_model), jnp.float32)

    out = decoder_layer_forward(
        params,
        video_features,
        diagram_features,
        positional_query,
        video_pos_enc,
        d_model=d_model,
        n_head=n_head,
        sa_fuse=sa_fuse,
        ca_fuse=ca_fuse,
    )
    jax.block_until_ready(out)

    assert out["output"].shape == (Lq, B, d_model)
    assert out["sa_weight"].shape == (B, Lq, Lq)
    assert out["ca_weight"].shape == (B, Lq, Lm)
    assert all(jnp.isfinite(v).all() for v in out.values())
    print("KERNEL_OK")
</pallas_src>

<mosaic_0001>
module attributes {stable_mosaic.version = 11 : i64} {
  func.func @kernel(%arg0: memref<16x32xf32, #tpu.memory_space<vmem>>, %arg1: memref<16x32xf32, #tpu.memory_space<vmem>>, %arg2: memref<32x32xf32, #tpu.memory_space<vmem>>, %arg3: memref<32x32xf32, #tpu.memory_space<vmem>>, %arg4: memref<32x576xbf16, #tpu.memory_space<vmem>>, %arg5: memref<64x32xbf16, #tpu.memory_space<vmem>>, %arg6: memref<13x96xf32, #tpu.memory_space<vmem>>, %arg7: memref<16x56xf32, #tpu.memory_space<vmem>>) attributes {dimension_semantics = [], scalar_prefetch = 0 : i64, scratch_operands = 0 : i64, tpu.core_type = #tpu.core_type<tc>} {
    %c0 = arith.constant 0 : index
    %c0_0 = arith.constant 0 : index
    %0 = vector.load %arg0[%c0, %c0_0] : memref<16x32xf32, #tpu.memory_space<vmem>>, vector<16x32xf32>
    %c0_1 = arith.constant 0 : index
    %c0_2 = arith.constant 0 : index
    %1 = vector.load %arg1[%c0_1, %c0_2] : memref<16x32xf32, #tpu.memory_space<vmem>>, vector<16x32xf32>
    %c0_3 = arith.constant 0 : index
    %c0_4 = arith.constant 0 : index
    %2 = vector.load %arg2[%c0_3, %c0_4] : memref<32x32xf32, #tpu.memory_space<vmem>>, vector<32x32xf32>
    %c0_5 = arith.constant 0 : index
    %c0_6 = arith.constant 0 : index
    %3 = vector.load %arg3[%c0_5, %c0_6] : memref<32x32xf32, #tpu.memory_space<vmem>>, vector<32x32xf32>
    %c0_7 = arith.constant 0 : index
    %c0_8 = arith.constant 0 : index
    %4 = vector.load %arg4[%c0_7, %c0_8] : memref<32x576xbf16, #tpu.memory_space<vmem>>, vector<32x96xbf16>
    %5 = arith.truncf %0 : vector<16x32xf32> to vector<16x32xbf16>
    %cst = arith.constant dense<0.000000e+00> : vector<16x96xf32>
    %6 = tpu.matmul %5, %4, %cst {dimension_numbers = #tpu.dot_dimension_numbers<[1], [0], [0], [1], [0, 0, 1, 1], [], []>} : vector<16x32xbf16>, vector<32x96xbf16>, vector<16x96xf32> -> vector<16x96xf32>
    %c0_9 = arith.constant 0 : index
    %c96 = arith.constant 96 : index
    %7 = vector.load %arg4[%c0_9, %c96] : memref<32x576xbf16, #tpu.memory_space<vmem>>, vector<32x64xbf16>
    %8 = arith.truncf %1 : vector<16x32xf32> to vector<16x32xbf16>
    %cst_10 = arith.constant dense<0.000000e+00> : vector<16x64xf32>
    %9 = tpu.matmul %8, %7, %cst_10 {dimension_numbers = #tpu.dot_dimension_numbers<[1], [0], [0], [1], [0, 0, 1, 1], [], []>} : vector<16x32xbf16>, vector<32x64xbf16>, vector<16x64xf32> -> vector<16x64xf32>
    %c0_11 = arith.constant 0 : index
    %c0_12 = arith.constant 0 : index
    %10 = vector.load %arg6[%c0_11, %c0_12] : memref<13x96xf32, #tpu.memory_space<vmem>>, vector<1x96xf32>
    %11 = vector.extract_strided_slice %6 {offsets = [0, 0], sizes = [16, 32], strides = [1, 1]} : vector<16x96xf32> to vector<16x32xf32>
    %12 = vector.extract_strided_slice %9 {offsets = [0, 0], sizes = [16, 32], strides = [1, 1]} : vector<16x64xf32> to vector<16x32xf32>
    %13 = arith.addf %11, %12 : vector<16x32xf32>
    %14 = vector.extract_strided_slice %10 {offsets = [0, 0], sizes = [1, 32], strides = [1, 1]} : vector<1x96xf32> to vector<1x32xf32>
    %15 = vector.broadcast %14 : vector<1x32xf32> to vector<16x32xf32>
    %16 = arith.addf %13, %15 : vector<16x32xf32>
    %17 = vector.extract_strided_slice %6 {offsets = [0, 32], sizes = [16, 32], strides = [1, 1]} : vector<16x96xf32> to vector<16x32xf32>
    %18 = vector.extract_strided_slice %9 {offsets = [0, 32], sizes = [16, 32], strides = [1, 1]} : vector<16x64xf32> to vector<16x32xf32>
    %19 = arith.addf %17, %18 : vector<16x32xf32>
    %20 = vector.extract_strided_slice %10 {offsets = [0, 32], sizes = [1, 32], strides = [1, 1]} : vector<1x96xf32> to vector<1x32xf32>
    %21 = vector.broadcast %20 : vector<1x32xf32> to vector<16x32xf32>
    %22 = arith.addf %19, %21 : vector<16x32xf32>
    %23 = vector.extract_strided_slice %6 {offsets = [0, 64], sizes = [16, 32], strides = [1, 1]} : vector<16x96xf32> to vector<16x32xf32>
    %24 = vector.extract_strided_slice %10 {offsets = [0, 64], sizes = [1, 32], strides = [1, 1]} : vector<1x96xf32> to vector<1x32xf32>
    %25 = vector.broadcast %24 : vector<1x32xf32> to vector<16x32xf32>
    %26 = arith.addf %23, %25 : vector<16x32xf32>
    %27 = arith.truncf %16 : vector<16x32xf32> to vector<16x32xbf16>
    %28 = arith.truncf %22 : vector<16x32xf32> to vector<16x32xbf16>
    %29 = arith.truncf %26 : vector<16x32xf32> to vector<16x32xbf16>
    %30 = vector.extract_strided_slice %27 {offsets = [0, 0], sizes = [8, 32], strides = [1, 1]} : vector<16x32xbf16> to vector<8x32xbf16>
    %31 = vector.extract_strided_slice %28 {offsets = [0, 0], sizes = [8, 32], strides = [1, 1]} : vector<16x32xbf16> to vector<8x32xbf16>
    %32 = vector.extract_strided_slice %29 {offsets = [0, 0], sizes = [8, 32], strides = [1, 1]} : vector<16x32xbf16> to vector<8x32xbf16>
    %cst_13 = arith.constant 0.000000e+00 : f32
    %33 = vector.broadcast %cst_13 : f32 to vector<8x8xf32>
    %34 = vector.extract_strided_slice %30 {offsets = [0, 0], sizes = [8, 8], strides = [1, 1]} : vector<8x32xbf16> to vector<8x8xbf16>
    %35 = vector.extract_strided_slice %31 {offsets = [0, 0], sizes = [8, 8], strides = [1, 1]} : vector<8x32xbf16> to vector<8x8xbf16>
    %36 = vector.extract_strided_slice %32 {offsets = [0, 0], sizes = [8, 8], strides = [1, 1]} : vector<8x32xbf16> to vector<8x8xbf16>
    %cst_14 = arith.constant dense<0.000000e+00> : vector<8x8xf32>
    %37 = tpu.matmul %34, %35, %cst_14 {dimension_numbers = #tpu.dot_dimension_numbers<[1], [1], [0], [0], [0, 0, 1, 0], [], []>} : vector<8x8xbf16>, vector<8x8xbf16>, vector<8x8xf32> -> vector<8x8xf32>
    %cst_15 = arith.constant dense<0xFF800000> : vector<8xf32>
    %38 = vector.multi_reduction <maximumf>, %37, %cst_15 [1] : vector<8x8xf32> to vector<8xf32>
    %39 = vector.shape_cast %38 : vector<8xf32> to vector<8x1xf32>
    %40 = vector.broadcast %39 : vector<8x1xf32> to vector<8x8xf32>
    %41 = arith.subf %37, %40 : vector<8x8xf32>
    %42 = math.exp %41 : vector<8x8xf32>
    %cst_16 = arith.constant dense<0.000000e+00> : vector<8xf32>
    %43 = vector.multi_reduction <add>, %42, %cst_16 [1] : vector<8x8xf32> to vector<8xf32>
    %44 = vector.shape_cast %43 : vector<8xf32> to vector<8x1xf32>
    %45 = tpu.reciprocal %44 {approx = true} : vector<8x1xf32> -> vector<8x1xf32>
    %46 = vector.broadcast %45 : vector<8x1xf32> to vector<8x8xf32>
    %47 = arith.mulf %42, %46 : vector<8x8xf32>
    %48 = arith.addf %33, %47 : vector<8x8xf32>
    %49 = arith.truncf %47 : vector<8x8xf32> to vector<8x8xbf16>
    %cst_17 = arith.constant dense<0.000000e+00> : vector<8x8xf32>
    %50 = tpu.matmul %49, %36, %cst_17 {dimension_numbers = #tpu.dot_dimension_numbers<[1], [0], [0], [1], [0, 0, 1, 1], [], []>} : vector<8x8xbf16>, vector<8x8xbf16>, vector<8x8xf32> -> vector<8x8xf32>
    %51 = vector.extract_strided_slice %30 {offsets = [0, 8], sizes = [8, 8], strides = [1, 1]} : vector<8x32xbf16> to vector<8x8xbf16>
    %52 = vector.extract_strided_slice %31 {offsets = [0, 8], sizes = [8, 8], strides = [1, 1]} : vector<8x32xbf16> to vector<8x8xbf16>
    %53 = vector.extract_strided_slice %32 {offsets = [0, 8], sizes = [8, 8], strides = [1, 1]} : vector<8x32xbf16> to vector<8x8xbf16>
    %cst_18 = arith.constant dense<0.000000e+00> : vector<8x8xf32>
    %54 = tpu.matmul %51, %52, %cst_18 {dimension_numbers = #tpu.dot_dimension_numbers<[1], [1], [0], [0], [0, 0, 1, 0], [], []>} : vector<8x8xbf16>, vector<8x8xbf16>, vector<8x8xf32> -> vector<8x8xf32>
    %cst_19 = arith.constant dense<0xFF800000> : vector<8xf32>
    %55 = vector.multi_reduction <maximumf>, %54, %cst_19 [1] : vector<8x8xf32> to vector<8xf32>
    %56 = vector.shape_cast %55 : vector<8xf32> to vector<8x1xf32>
    %57 = vector.broadcast %56 : vector<8x1xf32> to vector<8x8xf32>
    %58 = arith.subf %54, %57 : vector<8x8xf32>
    %59 = math.exp %58 : vector<8x8xf32>
    %cst_20 = arith.constant dense<0.000000e+00> : vector<8xf32>
    %60 = vector.multi_reduction <add>, %59, %cst_20 [1] : vector<8x8xf32> to vector<8xf32>
    %61 = vector.shape_cast %60 : vector<8xf32> to vector<8x1xf32>
    %62 = tpu.reciprocal %61 {approx = true} : vector<8x1xf32> -> vector<8x1xf32>
    %63 = vector.broadcast %62 : vector<8x1xf32> to vector<8x8xf32>
    %64 = arith.mulf %59, %63 : vector<8x8xf32>
    %65 = arith.addf %48, %64 : vector<8x8xf32>
    %66 = arith.truncf %64 : vector<8x8xf32> to vector<8x8xbf16>
    %cst_21 = arith.constant dense<0.000000e+00> : vector<8x8xf32>
    %67 = tpu.matmul %66, %53, %cst_21 {dimension_numbers = #tpu.dot_dimension_numbers<[1], [0], [0], [1], [0, 0, 1, 1], [], []>} : vector<8x8xbf16>, vector<8x8xbf16>, vector<8x8xf32> -> vector<8x8xf32>
    %68 = vector.extract_strided_slice %30 {offsets = [0, 16], sizes = [8, 8], strides = [1, 1]} : vector<8x32xbf16> to vector<8x8xbf16>
    %69 = vector.extract_strided_slice %31 {offsets = [0, 16], sizes = [8, 8], strides = [1, 1]} : vector<8x32xbf16> to vector<8x8xbf16>
    %70 = vector.extract_strided_slice %32 {offsets = [0, 16], sizes = [8, 8], strides = [1, 1]} : vector<8x32xbf16> to vector<8x8xbf16>
    %cst_22 = arith.constant dense<0.000000e+00> : vector<8x8xf32>
    %71 = tpu.matmul %68, %69, %cst_22 {dimension_numbers = #tpu.dot_dimension_numbers<[1], [1], [0], [0], [0, 0, 1, 0], [], []>} : vector<8x8xbf16>, vector<8x8xbf16>, vector<8x8xf32> -> vector<8x8xf32>
    %cst_23 = arith.constant dense<0xFF800000> : vector<8xf32>
    %72 = vector.multi_reduction <maximumf>, %71, %cst_23 [1] : vector<8x8xf32> to vector<8xf32>
    %73 = vector.shape_cast %72 : vector<8xf32> to vector<8x1xf32>
    %74 = vector.broadcast %73 : vector<8x1xf32> to vector<8x8xf32>
    %75 = arith.subf %71, %74 : vector<8x8xf32>
    %76 = math.exp %75 : vector<8x8xf32>
    %cst_24 = arith.constant dense<0.000000e+00> : vector<8xf32>
    %77 = vector.multi_reduction <add>, %76, %cst_24 [1] : vector<8x8xf32> to vector<8xf32>
    %78 = vector.shape_cast %77 : vector<8xf32> to vector<8x1xf32>
    %79 = tpu.reciprocal %78 {approx = true} : vector<8x1xf32> -> vector<8x1xf32>
    %80 = vector.broadcast %79 : vector<8x1xf32> to vector<8x8xf32>
    %81 = arith.mulf %76, %80 : vector<8x8xf32>
    %82 = arith.addf %65, %81 : vector<8x8xf32>
    %83 = arith.truncf %81 : vector<8x8xf32> to vector<8x8xbf16>
    %cst_25 = arith.constant dense<0.000000e+00> : vector<8x8xf32>
    %84 = tpu.matmul %83, %70, %cst_25 {dimension_numbers = #tpu.dot_dimension_numbers<[1], [0], [0], [1], [0, 0, 1, 1], [], []>} : vector<8x8xbf16>, vector<8x8xbf16>, vector<8x8xf32> -> vector<8x8xf32>
    %85 = vector.extract_strided_slice %30 {offsets = [0, 24], sizes = [8, 8], strides = [1, 1]} : vector<8x32xbf16> to vector<8x8xbf16>
    %86 = vector.extract_strided_slice %31 {offsets = [0, 24], sizes = [8, 8], strides = [1, 1]} : vector<8x32xbf16> to vector<8x8xbf16>
    %87 = vector.extract_strided_slice %32 {offsets = [0, 24], sizes = [8, 8], strides = [1, 1]} : vector<8x32xbf16> to vector<8x8xbf16>
    %cst_26 = arith.constant dense<0.000000e+00> : vector<8x8xf32>
    %88 = tpu.matmul %85, %86, %cst_26 {dimension_numbers = #tpu.dot_dimension_numbers<[1], [1], [0], [0], [0, 0, 1, 0], [], []>} : vector<8x8xbf16>, vector<8x8xbf16>, vector<8x8xf32> -> vector<8x8xf32>
    %cst_27 = arith.constant dense<0xFF800000> : vector<8xf32>
    %89 = vector.multi_reduction <maximumf>, %88, %cst_27 [1] : vector<8x8xf32> to vector<8xf32>
    %90 = vector.shape_cast %89 : vector<8xf32> to vector<8x1xf32>
    %91 = vector.broadcast %90 : vector<8x1xf32> to vector<8x8xf32>
    %92 = arith.subf %88, %91 : vector<8x8xf32>
    %93 = math.exp %92 : vector<8x8xf32>
    %cst_28 = arith.constant dense<0.000000e+00> : vector<8xf32>
    %94 = vector.multi_reduction <add>, %93, %cst_28 [1] : vector<8x8xf32> to vector<8xf32>
    %95 = vector.shape_cast %94 : vector<8xf32> to vector<8x1xf32>
    %96 = tpu.reciprocal %95 {approx = true} : vector<8x1xf32> -> vector<8x1xf32>
    %97 = vector.broadcast %96 : vector<8x1xf32> to vector<8x8xf32>
    %98 = arith.mulf %93, %97 : vector<8x8xf32>
    %99 = arith.addf %82, %98 : vector<8x8xf32>
    %100 = arith.truncf %98 : vector<8x8xf32> to vector<8x8xbf16>
    %cst_29 = arith.constant dense<0.000000e+00> : vector<8x8xf32>
    %101 = tpu.matmul %100, %87, %cst_29 {dimension_numbers = #tpu.dot_dimension_numbers<[1], [0], [0], [1], [0, 0, 1, 1], [], []>} : vector<8x8xbf16>, vector<8x8xbf16>, vector<8x8xf32> -> vector<8x8xf32>
    %102 = tpu.concatenate %50, %67, %84, %101 in 1 : vector<8x8xf32>, vector<8x8xf32>, vector<8x8xf32>, vector<8x8xf32> -> vector<8x32xf32>
    %cst_30 = arith.constant 2.500000e-01 : f32
    %103 = vector.broadcast %cst_30 : f32 to vector<8x8xf32>
    %104 = arith.mulf %99, %103 : vector<8x8xf32>
    %105 = vector.extract_strided_slice %27 {offsets = [8, 0], sizes = [8, 32], strides = [1, 1]} : vector<16x32xbf16> to vector<8x32xbf16>
    %106 = vector.extract_strided_slice %28 {offsets = [8, 0], sizes = [8, 32], strides = [1, 1]} : vector<16x32xbf16> to vector<8x32xbf16>
    %107 = vector.extract_strided_slice %29 {offsets = [8, 0], sizes = [8, 32], strides = [1, 1]} : vector<16x32xbf16> to vector<8x32xbf16>
    %cst_31 = arith.constant 0.000000e+00 : f32
    %108 = vector.broadcast %cst_31 : f32 to vector<8x8xf32>
    %109 = vector.extract_strided_slice %105 {offsets = [0, 0], sizes = [8, 8], strides = [1, 1]} : vector<8x32xbf16> to vector<8x8xbf16>
    %110 = vector.extract_strided_slice %106 {offsets = [0, 0], sizes = [8, 8], strides = [1, 1]} : vector<8x32xbf16> to vector<8x8xbf16>
    %111 = vector.extract_strided_slice %107 {offsets = [0, 0], sizes = [8, 8], strides = [1, 1]} : vector<8x32xbf16> to vector<8x8xbf16>
    %cst_32 = arith.constant dense<0.000000e+00> : vector<8x8xf32>
    %112 = tpu.matmul %109, %110, %cst_32 {dimension_numbers = #tpu.dot_dimension_numbers<[1], [1], [0], [0], [0, 0, 1, 0], [], []>} : vector<8x8xbf16>, vector<8x8xbf16>, vector<8x8xf32> -> vector<8x8xf32>
    %cst_33 = arith.constant dense<0xFF800000> : vector<8xf32>
    %113 = vector.multi_reduction <maximumf>, %112, %cst_33 [1] : vector<8x8xf32> to vector<8xf32>
    %114 = vector.shape_cast %113 : vector<8xf32> to vector<8x1xf32>
    %115 = vector.broadcast %114 : vector<8x1xf32> to vector<8x8xf32>
    %116 = arith.subf %112, %115 : vector<8x8xf32>
    %117 = math.exp %116 : vector<8x8xf32>
    %cst_34 = arith.constant dense<0.000000e+00> : vector<8xf32>
    %118 = vector.multi_reduction <add>, %117, %cst_34 [1] : vector<8x8xf32> to vector<8xf32>
    %119 = vector.shape_cast %118 : vector<8xf32> to vector<8x1xf32>
    %120 = tpu.reciprocal %119 {approx = true} : vector<8x1xf32> -> vector<8x1xf32>
    %121 = vector.broadcast %120 : vector<8x1xf32> to vector<8x8xf32>
    %122 = arith.mulf %117, %121 : vector<8x8xf32>
    %123 = arith.addf %108, %122 : vector<8x8xf32>
    %124 = arith.truncf %122 : vector<8x8xf32> to vector<8x8xbf16>
    %cst_35 = arith.constant dense<0.000000e+00> : vector<8x8xf32>
    %125 = tpu.matmul %124, %111, %cst_35 {dimension_numbers = #tpu.dot_dimension_numbers<[1], [0], [0], [1], [0, 0, 1, 1], [], []>} : vector<8x8xbf16>, vector<8x8xbf16>, vector<8x8xf32> -> vector<8x8xf32>
    %126 = vector.extract_strided_slice %105 {offsets = [0, 8], sizes = [8, 8], strides = [1, 1]} : vector<8x32xbf16> to vector<8x8xbf16>
    %127 = vector.extract_strided_slice %106 {offsets = [0, 8], sizes = [8, 8], strides = [1, 1]} : vector<8x32xbf16> to vector<8x8xbf16>
    %128 = vector.extract_strided_slice %107 {offsets = [0, 8], sizes = [8, 8], strides = [1, 1]} : vector<8x32xbf16> to vector<8x8xbf16>
    %cst_36 = arith.constant dense<0.000000e+00> : vector<8x8xf32>
    %129 = tpu.matmul %126, %127, %cst_36 {dimension_numbers = #tpu.dot_dimension_numbers<[1], [1], [0], [0], [0, 0, 1, 0], [], []>} : vector<8x8xbf16>, vector<8x8xbf16>, vector<8x8xf32> -> vector<8x8xf32>
    %cst_37 = arith.constant dense<0xFF800000> : vector<8xf32>
    %130 = vector.multi_reduction <maximumf>, %129, %cst_37 [1] : vector<8x8xf32> to vector<8xf32>
    %131 = vector.shape_cast %130 : vector<8xf32> to vector<8x1xf32>
    %132 = vector.broadcast %131 : vector<8x1xf32> to vector<8x8xf32>
    %133 = arith.subf %129, %132 : vector<8x8xf32>
    %134 = math.exp %133 : vector<8x8xf32>
    %cst_38 = arith.constant dense<0.000000e+00> : vector<8xf32>
    %135 = vector.multi_reduction <add>, %134, %cst_38 [1] : vector<8x8xf32> to vector<8xf32>
    %136 = vector.shape_cast %135 : vector<8xf32> to vector<8x1xf32>
    %137 = tpu.reciprocal %136 {approx = true} : vector<8x1xf32> -> vector<8x1xf32>
    %138 = vector.broadcast %137 : vector<8x1xf32> to vector<8x8xf32>
    %139 = arith.mulf %134, %138 : vector<8x8xf32>
    %140 = arith.addf %123, %139 : vector<8x8xf32>
    %141 = arith.truncf %139 : vector<8x8xf32> to vector<8x8xbf16>
    %cst_39 = arith.constant dense<0.000000e+00> : vector<8x8xf32>
    %142 = tpu.matmul %141, %128, %cst_39 {dimension_numbers = #tpu.dot_dimension_numbers<[1], [0], [0], [1], [0, 0, 1, 1], [], []>} : vector<8x8xbf16>, vector<8x8xbf16>, vector<8x8xf32> -> vector<8x8xf32>
    %143 = vector.extract_strided_slice %105 {offsets = [0, 16], sizes = [8, 8], strides = [1, 1]} : vector<8x32xbf16> to vector<8x8xbf16>
    %144 = vector.extract_strided_slice %106 {offsets = [0, 16], sizes = [8, 8], strides = [1, 1]} : vector<8x32xbf16> to vector<8x8xbf16>
    %145 = vector.extract_strided_slice %107 {offsets = [0, 16], sizes = [8, 8], strides = [1, 1]} : vector<8x32xbf16> to vector<8x8xbf16>
    %cst_40 = arith.constant dense<0.000000e+00> : vector<8x8xf32>
    %146 = tpu.matmul %143, %144, %cst_40 {dimension_numbers = #tpu.dot_dimension_numbers<[1], [1], [0], [0], [0, 0, 1, 0], [], []>} : vector<8x8xbf16>, vector<8x8xbf16>, vector<8x8xf32> -> vector<8x8xf32>
    %cst_41 = arith.constant dense<0xFF800000> : vector<8xf32>
    %147 = vector.multi_reduction <maximumf>, %146, %cst_41 [1] : vector<8x8xf32> to vector<8xf32>
    %148 = vector.shape_cast %147 : vector<8xf32> to vector<8x1xf32>
    %149 = vector.broadcast %148 : vector<8x1xf32> to vector<8x8xf32>
    %150 = arith.subf %146, %149 : vector<8x8xf32>
    %151 = math.exp %150 : vector<8x8xf32>
    %cst_42 = arith.constant dense<0.000000e+00> : vector<8xf32>
    %152 = vector.multi_reduction <add>, %151, %cst_42 [1] : vector<8x8xf32> to vector<8xf32>
    %153 = vector.shape_cast %152 : vector<8xf32> to vector<8x1xf32>
    %154 = tpu.reciprocal %153 {approx = true} : vector<8x1xf32> -> vector<8x1xf32>
    %155 = vector.broadcast %154 : vector<8x1xf32> to vector<8x8xf32>
    %156 = arith.mulf %151, %155 : vector<8x8xf32>
    %157 = arith.addf %140, %156 : vector<8x8xf32>
    %158 = arith.truncf %156 : vector<8x8xf32> to vector<8x8xbf16>
    %cst_43 = arith.constant dense<0.000000e+00> : vector<8x8xf32>
    %159 = tpu.matmul %158, %145, %cst_43 {dimension_numbers = #tpu.dot_dimension_numbers<[1], [0], [0], [1], [0, 0, 1, 1], [], []>} : vector<8x8xbf16>, vector<8x8xbf16>, vector<8x8xf32> -> vector<8x8xf32>
    %160 = vector.extract_strided_slice %105 {offsets = [0, 24], sizes = [8, 8], strides = [1, 1]} : vector<8x32xbf16> to vector<8x8xbf16>
    %161 = vector.extract_strided_slice %106 {offsets = [0, 24], sizes = [8, 8], strides = [1, 1]} : vector<8x32xbf16> to vector<8x8xbf16>
    %162 = vector.extract_strided_slice %107 {offsets = [0, 24], sizes = [8, 8], strides = [1, 1]} : vector<8x32xbf16> to vector<8x8xbf16>
    %cst_44 = arith.constant dense<0.000000e+00> : vector<8x8xf32>
    %163 = tpu.matmul %160, %161, %cst_44 {dimension_numbers = #tpu.dot_dimension_numbers<[1], [1], [0], [0], [0, 0, 1, 0], [], []>} : vector<8x8xbf16>, vector<8x8xbf16>, vector<8x8xf32> -> vector<8x8xf32>
    %cst_45 = arith.constant dense<0xFF800000> : vector<8xf32>
    %164 = vector.multi_reduction <maximumf>, %163, %cst_45 [1] : vector<8x8xf32> to vector<8xf32>
    %165 = vector.shape_cast %164 : vector<8xf32> to vector<8x1xf32>
    %166 = vector.broadcast %165 : vector<8x1xf32> to vector<8x8xf32>
    %167 = arith.subf %163, %166 : vector<8x8xf32>
    %168 = math.exp %167 : vector<8x8xf32>
    %cst_46 = arith.constant dense<0.000000e+00> : vector<8xf32>
    %169 = vector.multi_reduction <add>, %168, %cst_46 [1] : vector<8x8xf32> to vector<8xf32>
    %170 = vector.shape_cast %169 : vector<8xf32> to vector<8x1xf32>
    %171 = tpu.reciprocal %170 {approx = true} : vector<8x1xf32> -> vector<8x1xf32>
    %172 = vector.broadcast %171 : vector<8x1xf32> to vector<8x8xf32>
    %173 = arith.mulf %168, %172 : vector<8x8xf32>
    %174 = arith.addf %157, %173 : vector<8x8xf32>
    %175 = arith.truncf %173 : vector<8x8xf32> to vector<8x8xbf16>
    %cst_47 = arith.constant dense<0.000000e+00> : vector<8x8xf32>
    %176 = tpu.matmul %175, %162, %cst_47 {dimension_numbers = #tpu.dot_dimension_numbers<[1], [0], [0], [1], [0, 0, 1, 1], [], []>} : vector<8x8xbf16>, vector<8x8xbf16>, vector<8x8xf32> -> vector<8x8xf32>
    %177 = tpu.concatenate %125, %142, %159, %176 in 1 : vector<8x8xf32>, vector<8x8xf32>, vector<8x8xf32>, vector<8x8xf32> -> vector<8x32xf32>
    %cst_48 = arith.constant 2.500000e-01 : f32
    %178 = vector.broadcast %cst_48 : f32 to vector<8x8xf32>
    %179 = arith.mulf %174, %178 : vector<8x8xf32>
    %180 = tpu.concatenate %102, %177 in 0 : vector<8x32xf32>, vector<8x32xf32> -> vector<16x32xf32>
    %c0_49 = arith.constant 0 : index
    %c448 = arith.constant 448 : index
    %181 = vector.load %arg4[%c0_49, %c448] : memref<32x576xbf16, #tpu.memory_space<vmem>>, vector<32x32xbf16>
    %182 = arith.truncf %180 : vector<16x32xf32> to vector<16x32xbf16>
    %cst_50 = arith.constant dense<0.000000e+00> : vector<16x32xf32>
    %183 = tpu.matmul %182, %181, %cst_50 {dimension_numbers = #tpu.dot_dimension_numbers<[1], [0], [0], [1], [0, 0, 1, 1], [], []>} : vector<16x32xbf16>, vector<32x32xbf16>, vector<16x32xf32> -> vector<16x32xf32>
    %c1 = arith.constant 1 : index
    %c0_51 = arith.constant 0 : index
    %184 = vector.load %arg6[%c1, %c0_51] : memref<13x96xf32, #tpu.memory_space<vmem>>, vector<1x32xf32>
    %185 = vector.broadcast %184 : vector<1x32xf32> to vector<16x32xf32>
    %186 = arith.addf %183, %185 : vector<16x32xf32>
    %187 = arith.addf %0, %186 : vector<16x32xf32>
    %c2 = arith.constant 2 : index
    %c0_52 = arith.constant 0 : index
    %188 = vector.load %arg6[%c2, %c0_52] : memref<13x96xf32, #tpu.memory_space<vmem>>, vector<1x32xf32>
    %c3 = arith.constant 3 : index
    %c0_53 = arith.constant 0 : index
    %189 = vector.load %arg6[%c3, %c0_53] : memref<13x96xf32, #tpu.memory_space<vmem>>, vector<1x32xf32>
    %cst_54 = arith.constant dense<0.000000e+00> : vector<16xf32>
    %190 = vector.multi_reduction <add>, %187, %cst_54 [1] : vector<16x32xf32> to vector<16xf32>
    %191 = vector.shape_cast %190 : vector<16xf32> to vector<16x1xf32>
    %cst_55 = arith.constant 3.200000e+01 : f32
    %192 = vector.broadcast %cst_55 : f32 to vector<16x1xf32>
    %193 = arith.divf %191, %192 : vector<16x1xf32>
    %194 = vector.broadcast %193 : vector<16x1xf32> to vector<16x32xf32>
    %195 = arith.subf %187, %194 : vector<16x32xf32>
    %196 = arith.mulf %195, %195 : vector<16x32xf32>
    %cst_56 = arith.constant dense<0.000000e+00> : vector<16xf32>
    %197 = vector.multi_reduction <add>, %196, %cst_56 [1] : vector<16x32xf32> to vector<16xf32>
    %198 = vector.shape_cast %197 : vector<16xf32> to vector<16x1xf32>
    %cst_57 = arith.constant 3.200000e+01 : f32
    %199 = vector.broadcast %cst_57 : f32 to vector<16x1xf32>
    %200 = arith.divf %198, %199 : vector<16x1xf32>
    %201 = vector.broadcast %193 : vector<16x1xf32> to vector<16x32xf32>
    %202 = arith.subf %187, %201 : vector<16x32xf32>
    %cst_58 = arith.constant 9.99999974E-6 : f32
    %203 = vector.broadcast %cst_58 : f32 to vector<16x1xf32>
    %204 = arith.addf %200, %203 : vector<16x1xf32>
    %205 = math.rsqrt %204 : vector<16x1xf32>
    %206 = vector.broadcast %205 : vector<16x1xf32> to vector<16x32xf32>
    %207 = arith.mulf %202, %206 : vector<16x32xf32>
    %208 = vector.broadcast %188 : vector<1x32xf32> to vector<16x32xf32>
    %209 = arith.mulf %207, %208 : vector<16x32xf32>
    %210 = vector.broadcast %189 : vector<1x32xf32> to vector<16x32xf32>
    %211 = arith.addf %209, %210 : vector<16x32xf32>
    %c0_59 = arith.constant 0 : index
    %c160 = arith.constant 160 : index
    %212 = vector.load %arg4[%c0_59, %c160] : memref<32x576xbf16, #tpu.memory_space<vmem>>, vector<32x64xbf16>
    %213 = arith.truncf %211 : vector<16x32xf32> to vector<16x32xbf16>
    %cst_60 = arith.constant dense<0.000000e+00> : vector<16x64xf32>
    %214 = tpu.matmul %213, %212, %cst_60 {dimension_numbers = #tpu.dot_dimension_numbers<[1], [0], [0], [1], [0, 0, 1, 1], [], []>} : vector<16x32xbf16>, vector<32x64xbf16>, vector<16x64xf32> -> vector<16x64xf32>
    %c0_61 = arith.constant 0 : index
    %c224 = arith.constant 224 : index
    %215 = vector.load %arg4[%c0_61, %c224] : memref<32x576xbf16, #tpu.memory_space<vmem>>, vector<32x64xbf16>
    %216 = arith.truncf %1 : vector<16x32xf32> to vector<16x32xbf16>
    %cst_62 = arith.constant dense<0.000000e+00> : vector<16x64xf32>
    %217 = tpu.matmul %216, %215, %cst_62 {dimension_numbers = #tpu.dot_dimension_numbers<[1], [0], [0], [1], [0, 0, 1, 1], [], []>} : vector<16x32xbf16>, vector<32x64xbf16>, vector<16x64xf32> -> vector<16x64xf32>
    %218 = arith.addf %214, %217 : vector<16x64xf32>
    %c4 = arith.constant 4 : index
    %c0_63 = arith.constant 0 : index
    %219 = vector.load %arg6[%c4, %c0_63] : memref<13x96xf32, #tpu.memory_space<vmem>>, vector<1x64xf32>
    %220 = vector.broadcast %219 : vector<1x64xf32> to vector<16x64xf32>
    %221 = arith.addf %218, %220 : vector<16x64xf32>
    %c0_64 = arith.constant 0 : index
    %c288 = arith.constant 288 : index
    %222 = vector.load %arg4[%c0_64, %c288] : memref<32x576xbf16, #tpu.memory_space<vmem>>, vector<32x96xbf16>
    %223 = arith.truncf %2 : vector<32x32xf32> to vector<32x32xbf16>
    %cst_65 = arith.constant dense<0.000000e+00> : vector<32x96xf32>
    %224 = tpu.matmul %223, %222, %cst_65 {dimension_numbers = #tpu.dot_dimension_numbers<[1], [0], [0], [1], [0, 0, 1, 1], [], []>} : vector<32x32xbf16>, vector<32x96xbf16>, vector<32x96xf32> -> vector<32x96xf32>
    %c0_66 = arith.constant 0 : index
    %c384 = arith.constant 384 : index
    %225 = vector.load %arg4[%c0_66, %c384] : memref<32x576xbf16, #tpu.memory_space<vmem>>, vector<32x64xbf16>
    %226 = arith.truncf %3 : vector<32x32xf32> to vector<32x32xbf16>
    %cst_67 = arith.constant dense<0.000000e+00> : vector<32x64xf32>
    %227 = tpu.matmul %226, %225, %cst_67 {dimension_numbers = #tpu.dot_dimension_numbers<[1], [0], [0], [1], [0, 0, 1, 1], [], []>} : vector<32x32xbf16>, vector<32x64xbf16>, vector<32x64xf32> -> vector<32x64xf32>
    %c5 = arith.constant 5 : index
    %c0_68 = arith.constant 0 : index
    %228 = vector.load %arg6[%c5, %c0_68] : memref<13x96xf32, #tpu.memory_space<vmem>>, vector<1x96xf32>
    %229 = vector.extract_strided_slice %224 {offsets = [0, 0], sizes = [32, 64], strides = [1, 1]} : vector<32x96xf32> to vector<32x64xf32>
    %230 = arith.addf %229, %227 : vector<32x64xf32>
    %231 = vector.extract_strided_slice %228 {offsets = [0, 0], sizes = [1, 64], strides = [1, 1]} : vector<1x96xf32> to vector<1x64xf32>
    %232 = vector.broadcast %231 : vector<1x64xf32> to vector<32x64xf32>
    %233 = arith.addf %230, %232 : vector<32x64xf32>
    %234 = vector.extract_strided_slice %224 {offsets = [0, 64], sizes = [32, 32], strides = [1, 1]} : vector<32x96xf32> to vector<32x32xf32>
    %235 = vector.extract_strided_slice %228 {offsets = [0, 64], sizes = [1, 32], strides = [1, 1]} : vector<1x96xf32> to vector<1x32xf32>
    %236 = vector.broadcast %235 : vector<1x32xf32> to vector<32x32xf32>
    %237 = arith.addf %234, %236 : vector<32x32xf32>
    %238 = arith.truncf %221 : vector<16x64xf32> to vector<16x64xbf16>
    %239 = arith.truncf %233 : vector<32x64xf32> to vector<32x64xbf16>
    %240 = arith.truncf %237 : vector<32x32xf32> to vector<32x32xbf16>
    %241 = vector.extract_strided_slice %238 {offsets = [0, 0], sizes = [8, 64], strides = [1, 1]} : vector<16x64xbf16> to vector<8x64xbf16>
    %242 = vector.extract_strided_slice %239 {offsets = [0, 0], sizes = [16, 64], strides = [1, 1]} : vector<32x64xbf16> to vector<16x64xbf16>
    %243 = vector.extract_strided_slice %240 {offsets = [0, 0], sizes = [16, 32], strides = [1, 1]} : vector<32x32xbf16> to vector<16x32xbf16>
    %cst_69 = arith.constant 0.000000e+00 : f32
    %244 = vector.broadcast %cst_69 : f32 to vector<8x16xf32>
    %245 = vector.extract_strided_slice %241 {offsets = [0, 0], sizes = [8, 16], strides = [1, 1]} : vector<8x64xbf16> to vector<8x16xbf16>
    %246 = vector.extract_strided_slice %242 {offsets = [0, 0], sizes = [16, 16], strides = [1, 1]} : vector<16x64xbf16> to vector<16x16xbf16>
    %247 = vector.extract_strided_slice %243 {offsets = [0, 0], sizes = [16, 8], strides = [1, 1]} : vector<16x32xbf16> to vector<16x8xbf16>
    %cst_70 = arith.constant dense<0.000000e+00> : vector<8x16xf32>
    %248 = tpu.matmul %245, %246, %cst_70 {dimension_numbers = #tpu.dot_dimension_numbers<[1], [1], [0], [0], [0, 0, 1, 0], [], []>} : vector<8x16xbf16>, vector<16x16xbf16>, vector<8x16xf32> -> vector<8x16xf32>
    %cst_71 = arith.constant dense<0xFF800000> : vector<8xf32>
    %249 = vector.multi_reduction <maximumf>, %248, %cst_71 [1] : vector<8x16xf32> to vector<8xf32>
    %250 = vector.shape_cast %249 : vector<8xf32> to vector<8x1xf32>
    %251 = vector.broadcast %250 : vector<8x1xf32> to vector<8x16xf32>
    %252 = arith.subf %248, %251 : vector<8x16xf32>
    %253 = math.exp %252 : vector<8x16xf32>
    %cst_72 = arith.constant dense<0.000000e+00> : vector<8xf32>
    %254 = vector.multi_reduction <add>, %253, %cst_72 [1] : vector<8x16xf32> to vector<8xf32>
    %255 = vector.shape_cast %254 : vector<8xf32> to vector<8x1xf32>
    %256 = tpu.reciprocal %255 {approx = true} : vector<8x1xf32> -> vector<8x1xf32>
    %257 = vector.broadcast %256 : vector<8x1xf32> to vector<8x16xf32>
    %258 = arith.mulf %253, %257 : vector<8x16xf32>
    %259 = arith.addf %244, %258 : vector<8x16xf32>
    %260 = arith.truncf %258 : vector<8x16xf32> to vector<8x16xbf16>
    %cst_73 = arith.constant dense<0.000000e+00> : vector<8x8xf32>
    %261 = tpu.matmul %260, %247, %cst_73 {dimension_numbers = #tpu.dot_dimension_numbers<[1], [0], [0], [1], [0, 0, 1, 1], [], []>} : vector<8x16xbf16>, vector<16x8xbf16>, vector<8x8xf32> -> vector<8x8xf32>
    %262 = vector.extract_strided_slice %241 {offsets = [0, 16], sizes = [8, 16], strides = [1, 1]} : vector<8x64xbf16> to vector<8x16xbf16>
    %263 = vector.extract_strided_slice %242 {offsets = [0, 16], sizes = [16, 16], strides = [1, 1]} : vector<16x64xbf16> to vector<16x16xbf16>
    %264 = vector.extract_strided_slice %243 {offsets = [0, 8], sizes = [16, 8], strides = [1, 1]} : vector<16x32xbf16> to vector<16x8xbf16>
    %cst_74 = arith.constant dense<0.000000e+00> : vector<8x16xf32>
    %265 = tpu.matmul %262, %263, %cst_74 {dimension_numbers = #tpu.dot_dimension_numbers<[1], [1], [0], [0], [0, 0, 1, 0], [], []>} : vector<8x16xbf16>, vector<16x16xbf16>, vector<8x16xf32> -> vector<8x16xf32>
    %cst_75 = arith.constant dense<0xFF800000> : vector<8xf32>
    %266 = vector.multi_reduction <maximumf>, %265, %cst_75 [1] : vector<8x16xf32> to vector<8xf32>
    %267 = vector.shape_cast %266 : vector<8xf32> to vector<8x1xf32>
    %268 = vector.broadcast %267 : vector<8x1xf32> to vector<8x16xf32>
    %269 = arith.subf %265, %268 : vector<8x16xf32>
    %270 = math.exp %269 : vector<8x16xf32>
    %cst_76 = arith.constant dense<0.000000e+00> : vector<8xf32>
    %271 = vector.multi_reduction <add>, %270, %cst_76 [1] : vector<8x16xf32> to vector<8xf32>
    %272 = vector.shape_cast %271 : vector<8xf32> to vector<8x1xf32>
    %273 = tpu.reciprocal %272 {approx = true} : vector<8x1xf32> -> vector<8x1xf32>
    %274 = vector.broadcast %273 : vector<8x1xf32> to vector<8x16xf32>
    %275 = arith.mulf %270, %274 : vector<8x16xf32>
    %276 = arith.addf %259, %275 : vector<8x16xf32>
    %277 = arith.truncf %275 : vector<8x16xf32> to vector<8x16xbf16>
    %cst_77 = arith.constant dense<0.000000e+00> : vector<8x8xf32>
    %278 = tpu.matmul %277, %264, %cst_77 {dimension_numbers = #tpu.dot_dimension_numbers<[1], [0], [0], [1], [0, 0, 1, 1], [], []>} : vector<8x16xbf16>, vector<16x8xbf16>, vector<8x8xf32> -> vector<8x8xf32>
    %279 = vector.extract_strided_slice %241 {offsets = [0, 32], sizes = [8, 16], strides = [1, 1]} : vector<8x64xbf16> to vector<8x16xbf16>
    %280 = vector.extract_strided_slice %242 {offsets = [0, 32], sizes = [16, 16], strides = [1, 1]} : vector<16x64xbf16> to vector<16x16xbf16>
    %281 = vector.extract_strided_slice %243 {offsets = [0, 16], sizes = [16, 8], strides = [1, 1]} : vector<16x32xbf16> to vector<16x8xbf16>
    %cst_78 = arith.constant dense<0.000000e+00> : vector<8x16xf32>
    %282 = tpu.matmul %279, %280, %cst_78 {dimension_numbers = #tpu.dot_dimension_numbers<[1], [1], [0], [0], [0, 0, 1, 0], [], []>} : vector<8x16xbf16>, vector<16x16xbf16>, vector<8x16xf32> -> vector<8x16xf32>
    %cst_79 = arith.constant dense<0xFF800000> : vector<8xf32>
    %283 = vector.multi_reduction <maximumf>, %282, %cst_79 [1] : vector<8x16xf32> to vector<8xf32>
    %284 = vector.shape_cast %283 : vector<8xf32> to vector<8x1xf32>
    %285 = vector.broadcast %284 : vector<8x1xf32> to vector<8x16xf32>
    %286 = arith.subf %282, %285 : vector<8x16xf32>
    %287 = math.exp %286 : vector<8x16xf32>
    %cst_80 = arith.constant dense<0.000000e+00> : vector<8xf32>
    %288 = vector.multi_reduction <add>, %287, %cst_80 [1] : vector<8x16xf32> to vector<8xf32>
    %289 = vector.shape_cast %288 : vector<8xf32> to vector<8x1xf32>
    %290 = tpu.reciprocal %289 {approx = true} : vector<8x1xf32> -> vector<8x1xf32>
    %291 = vector.broadcast %290 : vector<8x1xf32> to vector<8x16xf32>
    %292 = arith.mulf %287, %291 : vector<8x16xf32>
    %293 = arith.addf %276, %292 : vector<8x16xf32>
    %294 = arith.truncf %292 : vector<8x16xf32> to vector<8x16xbf16>
    %cst_81 = arith.constant dense<0.000000e+00> : vector<8x8xf32>
    %295 = tpu.matmul %294, %281, %cst_81 {dimension_numbers = #tpu.dot_dimension_numbers<[1], [0], [0], [1], [0, 0, 1, 1], [], []>} : vector<8x16xbf16>, vector<16x8xbf16>, vector<8x8xf32> -> vector<8x8xf32>
    %296 = vector.extract_strided_slice %241 {offsets = [0, 48], sizes = [8, 16], strides = [1, 1]} : vector<8x64xbf16> to vector<8x16xbf16>
    %297 = vector.extract_strided_slice %242 {offsets = [0, 48], sizes = [16, 16], strides = [1, 1]} : vector<16x64xbf16> to vector<16x16xbf16>
    %298 = vector.extract_strided_slice %243 {offsets = [0, 24], sizes = [16, 8], strides = [1, 1]} : vector<16x32xbf16> to vector<16x8xbf16>
    %cst_82 = arith.constant dense<0.000000e+00> : vector<8x16xf32>
    %299 = tpu.matmul %296, %297, %cst_82 {dimension_numbers = #tpu.dot_dimension_numbers<[1], [1], [0], [0], [0, 0, 1, 0], [], []>} : vector<8x16xbf16>, vector<16x16xbf16>, vector<8x16xf32> -> vector<8x16xf32>
    %cst_83 = arith.constant dense<0xFF800000> : vector<8xf32>
    %300 = vector.multi_reduction <maximumf>, %299, %cst_83 [1] : vector<8x16xf32> to vector<8xf32>
    %301 = vector.shape_cast %300 : vector<8xf32> to vector<8x1xf32>
    %302 = vector.broadcast %301 : vector<8x1xf32> to vector<8x16xf32>
    %303 = arith.subf %299, %302 : vector<8x16xf32>
    %304 = math.exp %303 : vector<8x16xf32>
    %cst_84 = arith.constant dense<0.000000e+00> : vector<8xf32>
    %305 = vector.multi_reduction <add>, %304, %cst_84 [1] : vector<8x16xf32> to vector<8xf32>
    %306 = vector.shape_cast %305 : vector<8xf32> to vector<8x1xf32>
    %307 = tpu.reciprocal %306 {approx = true} : vector<8x1xf32> -> vector<8x1xf32>
    %308 = vector.broadcast %307 : vector<8x1xf32> to vector<8x16xf32>
    %309 = arith.mulf %304, %308 : vector<8x16xf32>
    %310 = arith.addf %293, %309 : vector<8x16xf32>
    %311 = arith.truncf %309 : vector<8x16xf32> to vector<8x16xbf16>
    %cst_85 = arith.constant dense<0.000000e+00> : vector<8x8xf32>
    %312 = tpu.matmul %311, %298, %cst_85 {dimension_numbers = #tpu.dot_dimension_numbers<[1], [0], [0], [1], [0, 0, 1, 1], [], []>} : vector<8x16xbf16>, vector<16x8xbf16>, vector<8x8xf32> -> vector<8x8xf32>
    %313 = tpu.concatenate %261, %278, %295, %312 in 1 : vector<8x8xf32>, vector<8x8xf32>, vector<8x8xf32>, vector<8x8xf32> -> vector<8x32xf32>
    %cst_86 = arith.constant 2.500000e-01 : f32
    %314 = vector.broadcast %cst_86 : f32 to vector<8x16xf32>
    %315 = arith.mulf %310, %314 : vector<8x16xf32>
    %316 = vector.extract_strided_slice %238 {offsets = [8, 0], sizes = [8, 64], strides = [1, 1]} : vector<16x64xbf16> to vector<8x64xbf16>
    %317 = vector.extract_strided_slice %239 {offsets = [16, 0], sizes = [16, 64], strides = [1, 1]} : vector<32x64xbf16> to vector<16x64xbf16>
    %318 = vector.extract_strided_slice %240 {offsets = [16, 0], sizes = [16, 32], strides = [1, 1]} : vector<32x32xbf16> to vector<16x32xbf16>
    %cst_87 = arith.constant 0.000000e+00 : f32
    %319 = vector.broadcast %cst_87 : f32 to vector<8x16xf32>
    %320 = vector.extract_strided_slice %316 {offsets = [0, 0], sizes = [8, 16], strides = [1, 1]} : vector<8x64xbf16> to vector<8x16xbf16>
    %321 = vector.extract_strided_slice %317 {offsets = [0, 0], sizes = [16, 16], strides = [1, 1]} : vector<16x64xbf16> to vector<16x16xbf16>
    %322 = vector.extract_strided_slice %318 {offsets = [0, 0], sizes = [16, 8], strides = [1, 1]} : vector<16x32xbf16> to vector<16x8xbf16>
    %cst_88 = arith.constant dense<0.000000e+00> : vector<8x16xf32>
    %323 = tpu.matmul %320, %321, %cst_88 {dimension_numbers = #tpu.dot_dimension_numbers<[1], [1], [0], [0], [0, 0, 1, 0], [], []>} : vector<8x16xbf16>, vector<16x16xbf16>, vector<8x16xf32> -> vector<8x16xf32>
    %cst_89 = arith.constant dense<0xFF800000> : vector<8xf32>
    %324 = vector.multi_reduction <maximumf>, %323, %cst_89 [1] : vector<8x16xf32> to vector<8xf32>
    %325 = vector.shape_cast %324 : vector<8xf32> to vector<8x1xf32>
    %326 = vector.broadcast %325 : vector<8x1xf32> to vector<8x16xf32>
    %327 = arith.subf %323, %326 : vector<8x16xf32>
    %328 = math.exp %327 : vector<8x16xf32>
    %cst_90 = arith.constant dense<0.000000e+00> : vector<8xf32>
    %329 = vector.multi_reduction <add>, %328, %cst_90 [1] : vector<8x16xf32> to vector<8xf32>
    %330 = vector.shape_cast %329 : vector<8xf32> to vector<8x1xf32>
    %331 = tpu.reciprocal %330 {approx = true} : vector<8x1xf32> -> vector<8x1xf32>
    %332 = vector.broadcast %331 : vector<8x1xf32> to vector<8x16xf32>
    %333 = arith.mulf %328, %332 : vector<8x16xf32>
    %334 = arith.addf %319, %333 : vector<8x16xf32>
    %335 = arith.truncf %333 : vector<8x16xf32> to vector<8x16xbf16>
    %cst_91 = arith.constant dense<0.000000e+00> : vector<8x8xf32>
    %336 = tpu.matmul %335, %322, %cst_91 {dimension_numbers = #tpu.dot_dimension_numbers<[1], [0], [0], [1], [0, 0, 1, 1], [], []>} : vector<8x16xbf16>, vector<16x8xbf16>, vector<8x8xf32> -> vector<8x8xf32>
    %337 = vector.extract_strided_slice %316 {offsets = [0, 16], sizes = [8, 16], strides = [1, 1]} : vector<8x64xbf16> to vector<8x16xbf16>
    %338 = vector.extract_strided_slice %317 {offsets = [0, 16], sizes = [16, 16], strides = [1, 1]} : vector<16x64xbf16> to vector<16x16xbf16>
    %339 = vector.extract_strided_slice %318 {offsets = [0, 8], sizes = [16, 8], strides = [1, 1]} : vector<16x32xbf16> to vector<16x8xbf16>
    %cst_92 = arith.constant dense<0.000000e+00> : vector<8x16xf32>
    %340 = tpu.matmul %337, %338, %cst_92 {dimension_numbers = #tpu.dot_dimension_numbers<[1], [1], [0], [0], [0, 0, 1, 0], [], []>} : vector<8x16xbf16>, vector<16x16xbf16>, vector<8x16xf32> -> vector<8x16xf32>
    %cst_93 = arith.constant dense<0xFF800000> : vector<8xf32>
    %341 = vector.multi_reduction <maximumf>, %340, %cst_93 [1] : vector<8x16xf32> to vector<8xf32>
    %342 = vector.shape_cast %341 : vector<8xf32> to vector<8x1xf32>
    %343 = vector.broadcast %342 : vector<8x1xf32> to vector<8x16xf32>
    %344 = arith.subf %340, %343 : vector<8x16xf32>
    %345 = math.exp %344 : vector<8x16xf32>
    %cst_94 = arith.constant dense<0.000000e+00> : vector<8xf32>
    %346 = vector.multi_reduction <add>, %345, %cst_94 [1] : vector<8x16xf32> to vector<8xf32>
    %347 = vector.shape_cast %346 : vector<8xf32> to vector<8x1xf32>
    %348 = tpu.reciprocal %347 {approx = true} : vector<8x1xf32> -> vector<8x1xf32>
    %349 = vector.broadcast %348 : vector<8x1xf32> to vector<8x16xf32>
    %350 = arith.mulf %345, %349 : vector<8x16xf32>
    %351 = arith.addf %334, %350 : vector<8x16xf32>
    %352 = arith.truncf %350 : vector<8x16xf32> to vector<8x16xbf16>
    %cst_95 = arith.constant dense<0.000000e+00> : vector<8x8xf32>
    %353 = tpu.matmul %352, %339, %cst_95 {dimension_numbers = #tpu.dot_dimension_numbers<[1], [0], [0], [1], [0, 0, 1, 1], [], []>} : vector<8x16xbf16>, vector<16x8xbf16>, vector<8x8xf32> -> vector<8x8xf32>
    %354 = vector.extract_strided_slice %316 {offsets = [0, 32], sizes = [8, 16], strides = [1, 1]} : vector<8x64xbf16> to vector<8x16xbf16>
    %355 = vector.extract_strided_slice %317 {offsets = [0, 32], sizes = [16, 16], strides = [1, 1]} : vector<16x64xbf16> to vector<16x16xbf16>
    %356 = vector.extract_strided_slice %318 {offsets = [0, 16], sizes = [16, 8], strides = [1, 1]} : vector<16x32xbf16> to vector<16x8xbf16>
    %cst_96 = arith.constant dense<0.000000e+00> : vector<8x16xf32>
    %357 = tpu.matmul %354, %355, %cst_96 {dimension_numbers = #tpu.dot_dimension_numbers<[1], [1], [0], [0], [0, 0, 1, 0], [], []>} : vector<8x16xbf16>, vector<16x16xbf16>, vector<8x16xf32> -> vector<8x16xf32>
    %cst_97 = arith.constant dense<0xFF800000> : vector<8xf32>
    %358 = vector.multi_reduction <maximumf>, %357, %cst_97 [1] : vector<8x16xf32> to vector<8xf32>
    %359 = vector.shape_cast %358 : vector<8xf32> to vector<8x1xf32>
    %360 = vector.broadcast %359 : vector<8x1xf32> to vector<8x16xf32>
    %361 = arith.subf %357, %360 : vector<8x16xf32>
    %362 = math.exp %361 : vector<8x16xf32>
    %cst_98 = arith.constant dense<0.000000e+00> : vector<8xf32>
    %363 = vector.multi_reduction <add>, %362, %cst_98 [1] : vector<8x16xf32> to vector<8xf32>
    %364 = vector.shape_cast %363 : vector<8xf32> to vector<8x1xf32>
    %365 = tpu.reciprocal %364 {approx = true} : vector<8x1xf32> -> vector<8x1xf32>
    %366 = vector.broadcast %365 : vector<8x1xf32> to vector<8x16xf32>
    %367 = arith.mulf %362, %366 : vector<8x16xf32>
    %368 = arith.addf %351, %367 : vector<8x16xf32>
    %369 = arith.truncf %367 : vector<8x16xf32> to vector<8x16xbf16>
    %cst_99 = arith.constant dense<0.000000e+00> : vector<8x8xf32>
    %370 = tpu.matmul %369, %356, %cst_99 {dimension_numbers = #tpu.dot_dimension_numbers<[1], [0], [0], [1], [0, 0, 1, 1], [], []>} : vector<8x16xbf16>, vector<16x8xbf16>, vector<8x8xf32> -> vector<8x8xf32>
    %371 = vector.extract_strided_slice %316 {offsets = [0, 48], sizes = [8, 16], strides = [1, 1]} : vector<8x64xbf16> to vector<8x16xbf16>
    %372 = vector.extract_strided_slice %317 {offsets = [0, 48], sizes = [16, 16], strides = [1, 1]} : vector<16x64xbf16> to vector<16x16xbf16>
    %373 = vector.extract_strided_slice %318 {offsets = [0, 24], sizes = [16, 8], strides = [1, 1]} : vector<16x32xbf16> to vector<16x8xbf16>
    %cst_100 = arith.constant dense<0.000000e+00> : vector<8x16xf32>
    %374 = tpu.matmul %371, %372, %cst_100 {dimension_numbers = #tpu.dot_dimension_numbers<[1], [1], [0], [0], [0, 0, 1, 0], [], []>} : vector<8x16xbf16>, vector<16x16xbf16>, vector<8x16xf32> -> vector<8x16xf32>
    %cst_101 = arith.constant dense<0xFF800000> : vector<8xf32>
    %375 = vector.multi_reduction <maximumf>, %374, %cst_101 [1] : vector<8x16xf32> to vector<8xf32>
    %376 = vector.shape_cast %375 : vector<8xf32> to vector<8x1xf32>
    %377 = vector.broadcast %376 : vector<8x1xf32> to vector<8x16xf32>
    %378 = arith.subf %374, %377 : vector<8x16xf32>
    %379 = math.exp %378 : vector<8x16xf32>
    %cst_102 = arith.constant dense<0.000000e+00> : vector<8xf32>
    %380 = vector.multi_reduction <add>, %379, %cst_102 [1] : vector<8x16xf32> to vector<8xf32>
    %381 = vector.shape_cast %380 : vector<8xf32> to vector<8x1xf32>
    %382 = tpu.reciprocal %381 {approx = true} : vector<8x1xf32> -> vector<8x1xf32>
    %383 = vector.broadcast %382 : vector<8x1xf32> to vector<8x16xf32>
    %384 = arith.mulf %379, %383 : vector<8x16xf32>
    %385 = arith.addf %368, %384 : vector<8x16xf32>
    %386 = arith.truncf %384 : vector<8x16xf32> to vector<8x16xbf16>
    %cst_103 = arith.constant dense<0.000000e+00> : vector<8x8xf32>
    %387 = tpu.matmul %386, %373, %cst_103 {dimension_numbers = #tpu.dot_dimension_numbers<[1], [0], [0], [1], [0, 0, 1, 1], [], []>} : vector<8x16xbf16>, vector<16x8xbf16>, vector<8x8xf32> -> vector<8x8xf32>
    %388 = tpu.concatenate %336, %353, %370, %387 in 1 : vector<8x8xf32>, vector<8x8xf32>, vector<8x8xf32>, vector<8x8xf32> -> vector<8x32xf32>
    %cst_104 = arith.constant 2.500000e-01 : f32
    %389 = vector.broadcast %cst_104 : f32 to vector<8x16xf32>
    %390 = arith.mulf %385, %389 : vector<8x16xf32>
    %391 = tpu.concatenate %313, %388 in 0 : vector<8x32xf32>, vector<8x32xf32> -> vector<16x32xf32>
    %c0_105 = arith.constant 0 : index
    %c480 = arith.constant 480 : index
    %392 = vector.load %arg4[%c0_105, %c480] : memref<32x576xbf16, #tpu.memory_space<vmem>>, vector<32x32xbf16>
    %393 = arith.truncf %391 : vector<16x32xf32> to vector<16x32xbf16>
    %cst_106 = arith.constant dense<0.000000e+00> : vector<16x32xf32>
    %394 = tpu.matmul %393, %392, %cst_106 {dimension_numbers = #tpu.dot_dimension_numbers<[1], [0], [0], [1], [0, 0, 1, 1], [], []>} : vector<16x32xbf16>, vector<32x32xbf16>, vector<16x32xf32> -> vector<16x32xf32>
    %c6 = arith.constant 6 : index
    %c0_107 = arith.constant 0 : index
    %395 = vector.load %arg6[%c6, %c0_107] : memref<13x96xf32, #tpu.memory_space<vmem>>, vector<1x32xf32>
    %396 = vector.broadcast %395 : vector<1x32xf32> to vector<16x32xf32>
    %397 = arith.addf %394, %396 : vector<16x32xf32>
    %398 = arith.addf %211, %397 : vector<16x32xf32>
    %c7 = arith.constant 7 : index
    %c0_108 = arith.constant 0 : index
    %399 = vector.load %arg6[%c7, %c0_108] : memref<13x96xf32, #tpu.memory_space<vmem>>, vector<1x32xf32>
    %c8 = arith.constant 8 : index
    %c0_109 = arith.constant 0 : index
    %400 = vector.load %arg6[%c8, %c0_109] : memref<13x96xf32, #tpu.memory_space<vmem>>, vector<1x32xf32>
    %cst_110 = arith.constant dense<0.000000e+00> : vector<16xf32>
    %401 = vector.multi_reduction <add>, %398, %cst_110 [1] : vector<16x32xf32> to vector<16xf32>
    %402 = vector.shape_cast %401 : vector<16xf32> to vector<16x1xf32>
    %cst_111 = arith.constant 3.200000e+01 : f32
    %403 = vector.broadcast %cst_111 : f32 to vector<16x1xf32>
    %404 = arith.divf %402, %403 : vector<16x1xf32>
    %405 = vector.broadcast %404 : vector<16x1xf32> to vector<16x32xf32>
    %406 = arith.subf %398, %405 : vector<16x32xf32>
    %407 = arith.mulf %406, %406 : vector<16x32xf32>
    %cst_112 = arith.constant dense<0.000000e+00> : vector<16xf32>
    %408 = vector.multi_reduction <add>, %407, %cst_112 [1] : vector<16x32xf32> to vector<16xf32>
    %409 = vector.shape_cast %408 : vector<16xf32> to vector<16x1xf32>
    %cst_113 = arith.constant 3.200000e+01 : f32
    %410 = vector.broadcast %cst_113 : f32 to vector<16x1xf32>
    %411 = arith.divf %409, %410 : vector<16x1xf32>
    %412 = vector.broadcast %404 : vector<16x1xf32> to vector<16x32xf32>
    %413 = arith.subf %398, %412 : vector<16x32xf32>
    %cst_114 = arith.constant 9.99999974E-6 : f32
    %414 = vector.broadcast %cst_114 : f32 to vector<16x1xf32>
    %415 = arith.addf %411, %414 : vector<16x1xf32>
    %416 = math.rsqrt %415 : vector<16x1xf32>
    %417 = vector.broadcast %416 : vector<16x1xf32> to vector<16x32xf32>
    %418 = arith.mulf %413, %417 : vector<16x32xf32>
    %419 = vector.broadcast %399 : vector<1x32xf32> to vector<16x32xf32>
    %420 = arith.mulf %418, %419 : vector<16x32xf32>
    %421 = vector.broadcast %400 : vector<1x32xf32> to vector<16x32xf32>
    %422 = arith.addf %420, %421 : vector<16x32xf32>
    %c0_115 = arith.constant 0 : index
    %c512 = arith.constant 512 : index
    %423 = vector.load %arg4[%c0_115, %c512] : memref<32x576xbf16, #tpu.memory_space<vmem>>, vector<32x64xbf16>
    %424 = arith.truncf %422 : vector<16x32xf32> to vector<16x32xbf16>
    %cst_116 = arith.constant dense<0.000000e+00> : vector<16x64xf32>
    %425 = tpu.matmul %424, %423, %cst_116 {dimension_numbers = #tpu.dot_dimension_numbers<[1], [0], [0], [1], [0, 0, 1, 1], [], []>} : vector<16x32xbf16>, vector<32x64xbf16>, vector<16x64xf32> -> vector<16x64xf32>
    %c9 = arith.constant 9 : index
    %c0_117 = arith.constant 0 : index
    %426 = vector.load %arg6[%c9, %c0_117] : memref<13x96xf32, #tpu.memory_space<vmem>>, vector<1x64xf32>
    %427 = vector.broadcast %426 : vector<1x64xf32> to vector<16x64xf32>
    %428 = arith.addf %425, %427 : vector<16x64xf32>
    %cst_118 = arith.constant 0.000000e+00 : f32
    %429 = vector.broadcast %cst_118 : f32 to vector<16x64xf32>
    %430 = arith.maximumf %428, %429 : vector<16x64xf32>
    %431 = arith.truncf %430 : vector<16x64xf32> to vector<16x64xbf16>
    %c0_119 = arith.constant 0 : index
    %c0_120 = arith.constant 0 : index
    %432 = vector.load %arg5[%c0_119, %c0_120] : memref<64x32xbf16, #tpu.memory_space<vmem>>, vector<64x32xbf16>
    %cst_121 = arith.constant dense<0.000000e+00> : vector<16x32xf32>
    %433 = tpu.matmul %431, %432, %cst_121 {dimension_numbers = #tpu.dot_dimension_numbers<[1], [0], [0], [1], [0, 0, 1, 1], [], []>} : vector<16x64xbf16>, vector<64x32xbf16>, vector<16x32xf32> -> vector<16x32xf32>
    %c10 = arith.constant 10 : index
    %c0_122 = arith.constant 0 : index
    %434 = vector.load %arg6[%c10, %c0_122] : memref<13x96xf32, #tpu.memory_space<vmem>>, vector<1x32xf32>
    %435 = vector.broadcast %434 : vector<1x32xf32> to vector<16x32xf32>
    %436 = arith.addf %433, %435 : vector<16x32xf32>
    %437 = arith.addf %422, %436 : vector<16x32xf32>
    %c11 = arith.constant 11 : index
    %c0_123 = arith.constant 0 : index
    %438 = vector.load %arg6[%c11, %c0_123] : memref<13x96xf32, #tpu.memory_space<vmem>>, vector<1x32xf32>
    %c12 = arith.constant 12 : index
    %c0_124 = arith.constant 0 : index
    %439 = vector.load %arg6[%c12, %c0_124] : memref<13x96xf32, #tpu.memory_space<vmem>>, vector<1x32xf32>
    %cst_125 = arith.constant dense<0.000000e+00> : vector<16xf32>
    %440 = vector.multi_reduction <add>, %437, %cst_125 [1] : vector<16x32xf32> to vector<16xf32>
    %441 = vector.shape_cast %440 : vector<16xf32> to vector<16x1xf32>
    %cst_126 = arith.constant 3.200000e+01 : f32
    %442 = vector.broadcast %cst_126 : f32 to vector<16x1xf32>
    %443 = arith.divf %441, %442 : vector<16x1xf32>
    %444 = vector.broadcast %443 : vector<16x1xf32> to vector<16x32xf32>
    %445 = arith.subf %437, %444 : vector<16x32xf32>
    %446 = arith.mulf %445, %445 : vector<16x32xf32>
    %cst_127 = arith.constant dense<0.000000e+00> : vector<16xf32>
    %447 = vector.multi_reduction <add>, %446, %cst_127 [1] : vector<16x32xf32> to vector<16xf32>
    %448 = vector.shape_cast %447 : vector<16xf32> to vector<16x1xf32>
    %cst_128 = arith.constant 3.200000e+01 : f32
    %449 = vector.broadcast %cst_128 : f32 to vector<16x1xf32>
    %450 = arith.divf %448, %449 : vector<16x1xf32>
    %451 = vector.broadcast %443 : vector<16x1xf32> to vector<16x32xf32>
    %452 = arith.subf %437, %451 : vector<16x32xf32>
    %cst_129 = arith.constant 9.99999974E-6 : f32
    %453 = vector.broadcast %cst_129 : f32 to vector<16x1xf32>
    %454 = arith.addf %450, %453 : vector<16x1xf32>
    %455 = math.rsqrt %454 : vector<16x1xf32>
    %456 = vector.broadcast %455 : vector<16x1xf32> to vector<16x32xf32>
    %457 = arith.mulf %452, %456 : vector<16x32xf32>
    %458 = vector.broadcast %438 : vector<1x32xf32> to vector<16x32xf32>
    %459 = arith.mulf %457, %458 : vector<16x32xf32>
    %460 = vector.broadcast %439 : vector<1x32xf32> to vector<16x32xf32>
    %461 = arith.addf %459, %460 : vector<16x32xf32>
    %462 = tpu.concatenate %104, %179 in 0 : vector<8x8xf32>, vector<8x8xf32> -> vector<16x8xf32>
    %463 = tpu.concatenate %315, %390 in 0 : vector<8x16xf32>, vector<8x16xf32> -> vector<16x16xf32>
    %464 = tpu.concatenate %461, %462, %463 in 1 : vector<16x32xf32>, vector<16x8xf32>, vector<16x16xf32> -> vector<16x56xf32>
    %c0_130 = arith.constant 0 : index
    %c0_131 = arith.constant 0 : index
    %465 = vector.load %arg7[%c0_130, %c0_131] : memref<16x56xf32, #tpu.memory_space<vmem>>, vector<16x56xf32>
    tpu.vector_store %arg7[%c0_130, %c0_131], %464 {strides = array<i32>} : memref<16x56xf32, #tpu.memory_space<vmem>>, vector<16x56xf32>,
    return
  }
}

</mosaic_0001>

<llo_original>
// kernel: decoder_layer_forward.1
$region0: #{decoder_layer_forward.1}
  #allocation0 [shape = 'u32[]', space=smem, size = 0x4, offset = 0x4, fixed_abs, tag = 'smem constant byte address 0x4 - core index']
  #allocation1 [shape = 'u32[144,128]{1,0:T(1,128)}', space=vmem, size = 0x12000, scoped, tag = 'internal scratch']
  %s0 = inlined_call_operand.vmem [shape: f32[16,32], index: 0, kind: input, shape index: {}]
  %s1 = inlined_call_operand.vmem [shape: f32[16,32], index: 1, kind: input, shape index: {}]
  %s2 = inlined_call_operand.vmem [shape: f32[32,32], index: 2, kind: input, shape index: {}]
  %s3 = inlined_call_operand.vmem [shape: f32[32,32], index: 3, kind: input, shape index: {}]
  %s4 = inlined_call_operand.vmem [shape: bf16[32,576], index: 4, kind: input, shape index: {}]
  %s5 = inlined_call_operand.vmem [shape: bf16[64,32], index: 5, kind: input, shape index: {}]
  %s6 = inlined_call_operand.vmem [shape: f32[13,96], index: 6, kind: input, shape index: {}]
  %s7 = inlined_call_operand.vmem [shape: f32[16,56], index: 7, kind: output, shape index: {}]
  %s8 = sld [smem:[#allocation0]]
  $region38: #{decoder_layer_forward.1} parent=0
    _
  %s10 = ssub.s32 1, %s8
  %s11 = scalar_select 0, %s10, %s8
  // Predicated region
  $region2: #{decoder_layer_forward.1} parent=0 // pred_check
    _
  $region3: #{decoder_layer_forward.1} parent=0 // pred_check_branch
    %13 = sbr.rel (0) target = $region5
  $region4: #{decoder_layer_forward.1} parent=0 // pred_region
    _
  $region5: #{decoder_layer_forward.1} parent=0 // pred_fallthru
    _
  // Predicated region
  $region6: #{decoder_layer_forward.1} parent=0 // pred_check
    _
  $region7: #{decoder_layer_forward.1} parent=0 // pred_check_branch
    %15 = sbr.rel (0) target = $region9
  $region8: #{decoder_layer_forward.1} parent=0 // pred_region
    _
  $region9: #{decoder_layer_forward.1} parent=0 // pred_fallthru
    _
  // Predicated region
  $region10: #{decoder_layer_forward.1} parent=0 // pred_check
    _
  $region11: #{decoder_layer_forward.1} parent=0 // pred_check_branch
    %17 = sbr.rel (0) target = $region13
  $region12: #{decoder_layer_forward.1} parent=0 // pred_region
    _
  $region13: #{decoder_layer_forward.1} parent=0 // pred_fallthru
    _
  // Predicated region
  $region14: #{decoder_layer_forward.1} parent=0 // pred_check
    _
  $region15: #{decoder_layer_forward.1} parent=0 // pred_check_branch
    %19 = sbr.rel (0) target = $region17
  $region16: #{decoder_layer_forward.1} parent=0 // pred_region
    _
  $region17: #{decoder_layer_forward.1} parent=0 // pred_fallthru
    _
  // Predicated region
  $region18: #{decoder_layer_forward.1} parent=0 // pred_check
    _
  $region19: #{decoder_layer_forward.1} parent=0 // pred_check_branch
    %21 = sbr.rel (0) target = $region21
  $region20: #{decoder_layer_forward.1} parent=0 // pred_region
    _
  $region21: #{decoder_layer_forward.1} parent=0 // pred_fallthru
    _
  // Predicated region
  $region22: #{decoder_layer_forward.1} parent=0 // pred_check
    _
  $region23: #{decoder_layer_forward.1} parent=0 // pred_check_branch
    %23 = sbr.rel (0) target = $region25
  $region24: #{decoder_layer_forward.1} parent=0 // pred_region
    _
  $region25: #{decoder_layer_forward.1} parent=0 // pred_fallthru
    _
  // Predicated region
  $region26: #{decoder_layer_forward.1} parent=0 // pred_check
    _
  $region27: #{decoder_layer_forward.1} parent=0 // pred_check_branch
    %25 = sbr.rel (0) target = $region29
  $region28: #{decoder_layer_forward.1} parent=0 // pred_region
    _
  $region29: #{decoder_layer_forward.1} parent=0 // pred_fallthru
    _
  %v27 = vld [vmem:[%s0] sm:$0xff]
  %v28 = vld [vmem:[%s0 + $0x8] sm:$0xff]
  %v29 = vld [vmem:[%s1] sm:$0xff]
  %v30 = vld [vmem:[%s1 + $0x8] sm:$0xff]
  %v31 = vld [vmem:[%s2] sm:$0xff]
  %v32 = vld [vmem:[%s2 + $0x8] sm:$0xff]
  %v33 = vld [vmem:[%s2 + $0x10] sm:$0xff]
  %v34 = vld [vmem:[%s2 + $0x18] sm:$0xff]
  %v35 = vld [vmem:[%s3] sm:$0xff]
  %v36 = vld [vmem:[%s3 + $0x8] sm:$0xff]
  %v37 = vld [vmem:[%s3 + $0x10] sm:$0xff]
  %v38 = vld [vmem:[%s3 + $0x18] sm:$0xff]
  %v39 = vld [vmem:[%s4] sm:$0xf]
  %v40 = vld [vmem:[%s4 + $0x14] sm:$0xf]
  %v41 = vld [vmem:[%s4 + $0x28] sm:$0xf]
  %v42 = vld [vmem:[%s4 + $0x3c] sm:$0xf]
  %v43 = vpack.c.bf16 %v28, %v27
  %v48 = vunpack.c.l.b16 %v39
  %v49 = vunpack.c.l.b16 %v40
  %v50 = vunpack.c.l.b16 %v41
  %v51 = vunpack.c.l.b16 %v42
  %v52 = vpack.c.b16 %v49, %v48
  %v53 = vpack.c.b16 %v51, %v50
  %vm56 = vcmask 261120
  %v58 = vsel %vm56, %v43, 0
  %60 = vmatprep.subr.bf16.mxu0 0
  %61 = vmatpush1.bf16.msra.mxu0 %v52
  %62 = vmatprep.subr.bf16.mxu0 0
  %63 = vmatpush1.bf16.msra.mxu0 %v53
  %64 = vmatprep.subr.bf16.mxu0 0
  %65 = vmatpush1.bf16.msra.mxu0 0
  %66 = vmatprep.subr.bf16.mxu0 0
  %67 = vmatpush1.bf16.msra.mxu0 0
  %68 = vmatprep.subr.bf16.mxu0 0
  %69 = vmatpush1.bf16.msra.mxu0 0
  %70 = vmatprep.subr.bf16.mxu0 0
  %71 = vmatpush1.bf16.msra.mxu0 0
  %72 = vmatprep.subr.bf16.mxu0 0
  %73 = vmatpush1.bf16.msra.mxu0 0
  %74 = vmatprep.subr.bf16.mxu0 0
  %75 = vmatpush1.bf16.msra.mxu0 0
  %76 = vmatprep.subr.bf16.mxu0 0
  %77 = vmatpush1.bf16.msra.mxu0 0
  %78 = vmatprep.subr.bf16.mxu0 0
  %79 = vmatpush1.bf16.msra.mxu0 0
  %80 = vmatprep.subr.bf16.mxu0 0
  %81 = vmatpush1.bf16.msra.mxu0 0
  %82 = vmatprep.subr.bf16.mxu0 0
  %83 = vmatpush1.bf16.msra.mxu0 0
  %84 = vmatprep.subr.bf16.mxu0 0
  %85 = vmatpush1.bf16.msra.mxu0 0
  %86 = vmatprep.subr.bf16.mxu0 0
  %87 = vmatpush1.bf16.msra.mxu0 0
  %88 = vmatprep.subr.bf16.mxu0 0
  %89 = vmatpush1.bf16.msra.mxu0 0
  %90 = vmatprep.subr.bf16.mxu0 0
  %91 = vmatpush1.bf16.msra.mxu0 0
  %92 = vmatprep.mubr.bf16.mxu0 0
  %93 = vmatmul.mubr.bf16.gmra.mrb[0].mxu0 %v58
  %v94 = vpop.f32.mrb[0].mxu0
  %v95 = vadd.f32 0.0, %v94
  %v96 = vpop.f32.mrb[0].mxu0
  %v97 = vpop.f32.mrb[0].mxu0
  %v98 = vadd.f32 0.0, %v97
  %v99 = vpop.f32.mrb[0].mxu0
  %100 = vdwg.mxu0
  %v101 = vld [vmem:[%s4] sm:$0xff]
  %v102 = vld [vmem:[%s4 + $0x14] sm:$0xff]
  %v103 = vld [vmem:[%s4 + $0x28] sm:$0xff]
  %v104 = vld [vmem:[%s4 + $0x3c] sm:$0xff]
  %v105 = vpack.c.bf16 %v30, %v29
  %v110 = vunpack.c.l.b16 %v101
  %v111 = vunpack.c.h.b16 %v101
  %v112 = vunpack.c.l.b16 %v102
  %v113 = vunpack.c.h.b16 %v102
  %v114 = vunpack.c.l.b16 %v103
  %v115 = vunpack.c.h.b16 %v103
  %v116 = vunpack.c.l.b16 %v104
  %v117 = vunpack.c.h.b16 %v104
  %v118 = vpack.c.b16 %v112, %v110
  %v119 = vpack.c.b16 %v113, %v111
  %v120 = vpack.c.b16 %v116, %v114
  %v121 = vpack.c.b16 %v117, %v115
  %122 = vrot.lane.b32.xlu0 %v118, 32
  %v123 = vpop.permute.xlu0 %122
  %124 = vrot.lane.b32.xlu0 %v119, 32
  %v125 = vpop.permute.xlu0 %124
  %126 = vrot.lane.b32.xlu0 %v120, 32
  %v127 = vpop.permute.xlu0 %126
  %128 = vrot.lane.b32.xlu0 %v121, 32
  %v129 = vpop.permute.xlu0 %128
  %vm130 = vcmask 261120
  %v131 = vsel %vm130, %v123, %v125
  %v132 = vsel %vm130, %v127, %v129
  %v136 = vsel %vm56, %v105, 0
  %138 = vmatprep.subr.bf16.mxu0 0
  %139 = vmatpush1.bf16.msra.mxu0 %v131
  %140 = vmatprep.subr.bf16.mxu0 0
  %141 = vmatpush1.bf16.msra.mxu0 %v132
  %142 = vmatprep.subr.bf16.mxu0 0
  %143 = vmatpush1.bf16.msra.mxu0 0
  %144 = vmatprep.subr.bf16.mxu0 0
  %145 = vmatpush1.bf16.msra.mxu0 0
  %146 = vmatprep.subr.bf16.mxu0 0
  %147 = vmatpush1.bf16.msra.mxu0 0
  %148 = vmatprep.subr.bf16.mxu0 0
  %149 = vmatpush1.bf16.msra.mxu0 0
  %150 = vmatprep.subr.bf16.mxu0 0
  %151 = vmatpush1.bf16.msra.mxu0 0
  %152 = vmatprep.subr.bf16.mxu0 0
  %153 = vmatpush1.bf16.msra.mxu0 0
  %154 = vmatprep.subr.bf16.mxu0 0
  %155 = vmatpush1.bf16.msra.mxu0 0
  %156 = vmatprep.subr.bf16.mxu0 0
  %157 = vmatpush1.bf16.msra.mxu0 0
  %158 = vmatprep.subr.bf16.mxu0 0
  %159 = vmatpush1.bf16.msra.mxu0 0
  %160 = vmatprep.subr.bf16.mxu0 0
  %161 = vmatpush1.bf16.msra.mxu0 0
  %162 = vmatprep.subr.bf16.mxu0 0
  %163 = vmatpush1.bf16.msra.mxu0 0
  %164 = vmatprep.subr.bf16.mxu0 0
  %165 = vmatpush1.bf16.msra.mxu0 0
  %166 = vmatprep.subr.bf16.mxu0 0
  %167 = vmatpush1.bf16.msra.mxu0 0
  %168 = vmatprep.subr.bf16.mxu0 0
  %169 = vmatpush1.bf16.msra.mxu0 0
  %170 = vmatprep.mubr.bf16.mxu0 0
  %171 = vmatmul.mubr.bf16.gmra.mrb[0].mxu0 %v136
  %v172 = vpop.f32.mrb[0].mxu0
  %v173 = vadd.f32 0.0, %v172
  %v174 = vpop.f32.mrb[0].mxu0
  %v175 = vpop.f32.mrb[0].mxu0
  %v176 = vadd.f32 0.0, %v175
  %v177 = vpop.f32.mrb[0].mxu0
  %178 = vdwg.mxu0
  %v179 = vld [vmem:[%s6] sm:$0x1]
  %v180 = vadd.f32 %v95, %v173
  %v181 = vadd.f32 %v98, %v176
  %v182 = vlaneseq
  %v183 = vshrl.u32 %v182, 7
  %v184 = vsub.s32 0, %v183
  %v185 = vrot.slane %v179, %v184
  %v186 = vadd.f32 %v180, %v185
  %v187 = vadd.f32 %v181, %v185
  %v188 = vadd.f32 %v95, %v185
  %v189 = vadd.f32 %v98, %v185
  %v190 = vpack.c.bf16 %v187, %v186
  %v191 = vpack.c.bf16 %v189, %v188
  %193 = vrot.lane.b32.xlu0 %v190, 96
  %v194 = vpop.permute.xlu0 %193
  %vm195 = vcmask 64512
  %v197 = vsel %vm195, %v190, 0
  %v200 = vsel %vm195, %v194, 0
  %202 = vmatprep.subr.bf16.mxu0 0
  %203 = vmatpush1.bf16.xpose.msra.mxu0 %v200
  %204 = vmatprep.subr.bf16.mxu0 0
  %205 = vmatpush1.bf16.xpose.msra.mxu0 0
  %206 = vmatprep.subr.bf16.mxu0 0
  %207 = vmatpush1.bf16.xpose.msra.mxu0 0
  %208 = vmatprep.subr.bf16.mxu0 0
  %209 = vmatpush1.bf16.xpose.msra.mxu0 0
  %210 = vmatprep.subr.bf16.mxu0 0
  %211 = vmatpush1.bf16.xpose.msra.mxu0 0
  %212 = vmatprep.subr.bf16.mxu0 0
  %213 = vmatpush1.bf16.xpose.msra.mxu0 0
  %214 = vmatprep.subr.bf16.mxu0 0
  %215 = vmatpush1.bf16.xpose.msra.mxu0 0
  %216 = vmatprep.subr.bf16.mxu0 0
  %217 = vmatpush1.bf16.xpose.msra.mxu0 0
  %218 = vmatprep.subr.bf16.mxu0 0
  %219 = vmatpush1.bf16.xpose.msra.mxu0 0
  %220 = vmatprep.subr.bf16.mxu0 0
  %221 = vmatpush1.bf16.xpose.msra.mxu0 0
  %222 = vmatprep.subr.bf16.mxu0 0
  %223 = vmatpush1.bf16.xpose.msra.mxu0 0
  %224 = vmatprep.subr.bf16.mxu0 0
  %225 = vmatpush1.bf16.xpose.msra.mxu0 0
  %226 = vmatprep.subr.bf16.mxu0 0
  %227 = vmatpush1.bf16.xpose.msra.mxu0 0
  %228 = vmatprep.subr.bf16.mxu0 0
  %229 = vmatpush1.bf16.xpose.msra.mxu0 0
  %230 = vmatprep.subr.bf16.mxu0 0
  %231 = vmatpush1.bf16.xpose.msra.mxu0 0
  %232 = vmatprep.subr.bf16.mxu0 0
  %233 = vmatpush1.bf16.xpose.msra.mxu0 0
  %234 = vmatprep.mubr.bf16.mxu0 0
  %235 = vmatmul.mubr.bf16.gmra.mrb[0].mxu0 %v197
  %v236 = vpop.f32.mrb[0].mxu0
  %v237 = vadd.f32 0.0, %v236
  %v238 = vpop.f32.mrb[0].mxu0
  %v239 = vpop.f32.mrb[0].mxu0
  %v240 = vpop.f32.mrb[0].mxu0
  %241 = vdwg.mxu0
  %v242 = vsel %vm195, %v237, -inf
  %243 = vmax.xlane.f32.xlu0 %v242
  %v244 = vpop.xlane.xlu0 %243
  %v245 = vsub.f32 %v237, %v244
  %v246 = vmul.f32 %v245, 1.442695
  %v247 = vpow.pop %v246
  %v248 = vsel %vm195, %v247, 0.0
  %249 = vadd.xlane.f32.xlu0 %v248
  %v250 = vpop.xlane.xlu0 %249
  %v251 = vrcp.pop %v250
  %v252 = vmul.f32 %v247, %v251
  %v253 = vadd.f32 %v252, 0.0
  %v254 = vpack.c.bf16 %v252, %v252
  %256 = vrot.lane.b32.xlu0 %v191, 64
  %v257 = vpop.permute.xlu0 %256
  %v259 = vsel %vm195, %v254, 0
  %vm261 = vcmask 1043456
  %v263 = vsel %vm261, %v257, 0
  %265 = vmatprep.subr.bf16.mxu0 0
  %266 = vmatpush1.bf16.msra.mxu0 %v263
  %267 = vmatprep.subr.bf16.mxu0 0
  %268 = vmatpush1.bf16.msra.mxu0 0
  %269 = vmatprep.subr.bf16.mxu0 0
  %270 = vmatpush1.bf16.msra.mxu0 0
  %271 = vmatprep.subr.bf16.mxu0 0
  %272 = vmatpush1.bf16.msra.mxu0 0
  %273 = vmatprep.subr.bf16.mxu0 0
  %274 = vmatpush1.bf16.msra.mxu0 0
  %275 = vmatprep.subr.bf16.mxu0 0
  %276 = vmatpush1.bf16.msra.mxu0 0
  %277 = vmatprep.subr.bf16.mxu0 0
  %278 = vmatpush1.bf16.msra.mxu0 0
  %279 = vmatprep.subr.bf16.mxu0 0
  %280 = vmatpush1.bf16.msra.mxu0 0
  %281 = vmatprep.subr.bf16.mxu0 0
  %282 = vmatpush1.bf16.msra.mxu0 0
  %283 = vmatprep.subr.bf16.mxu0 0
  %284 = vmatpush1.bf16.msra.mxu0 0
  %285 = vmatprep.subr.bf16.mxu0 0
  %286 = vmatpush1.bf16.msra.mxu0 0
  %287 = vmatprep.subr.bf16.mxu0 0
  %288 = vmatpush1.bf16.msra.mxu0 0
  %289 = vmatprep.subr.bf16.mxu0 0
  %290 = vmatpush1.bf16.msra.mxu0 0
  %291 = vmatprep.subr.bf16.mxu0 0
  %292 = vmatpush1.bf16.msra.mxu0 0
  %293 = vmatprep.subr.bf16.mxu0 0
  %294 = vmatpush1.bf16.msra.mxu0 0
  %295 = vmatprep.subr.bf16.mxu0 0
  %296 = vmatpush1.bf16.msra.mxu0 0
  %297 = vmatprep.mubr.bf16.mxu0 0
  %298 = vmatmul.mubr.bf16.gmra.mrb[0].mxu0 %v259
  %v299 = vpop.f32.mrb[0].mxu0
  %v300 = vadd.f32 0.0, %v299
  %v301 = vpop.f32.mrb[0].mxu0
  %v302 = vpop.f32.mrb[0].mxu0
  %v303 = vpop.f32.mrb[0].mxu0
  %304 = vdwg.mxu0
  %305 = vrot.lane.b32.xlu0 %v190, 120
  %v306 = vpop.permute.xlu0 %305
  %307 = vrot.lane.b32.xlu0 %v190, 88
  %v308 = vpop.permute.xlu0 %307
  %v310 = vsel %vm195, %v306, 0
  %v313 = vsel %vm195, %v308, 0
  %315 = vmatprep.subr.bf16.mxu0 0
  %316 = vmatpush1.bf16.xpose.msra.mxu0 %v313
  %317 = vmatprep.subr.bf16.mxu0 0
  %318 = vmatpush1.bf16.xpose.msra.mxu0 0
  %319 = vmatprep.subr.bf16.mxu0 0
  %320 = vmatpush1.bf16.xpose.msra.mxu0 0
  %321 = vmatprep.subr.bf16.mxu0 0
  %322 = vmatpush1.bf16.xpose.msra.mxu0 0
  %323 = vmatprep.subr.bf16.mxu0 0
  %324 = vmatpush1.bf16.xpose.msra.mxu0 0
  %325 = vmatprep.subr.bf16.mxu0 0
  %326 = vmatpush1.bf16.xpose.msra.mxu0 0
  %327 = vmatprep.subr.bf16.mxu0 0
  %328 = vmatpush1.bf16.xpose.msra.mxu0 0
  %329 = vmatprep.subr.bf16.mxu0 0
  %330 = vmatpush1.bf16.xpose.msra.mxu0 0
  %331 = vmatprep.subr.bf16.mxu0 0
  %332 = vmatpush1.bf16.xpose.msra.mxu0 0
  %333 = vmatprep.subr.bf16.mxu0 0
  %334 = vmatpush1.bf16.xpose.msra.mxu0 0
  %335 = vmatprep.subr.bf16.mxu0 0
  %336 = vmatpush1.bf16.xpose.msra.mxu0 0
  %337 = vmatprep.subr.bf16.mxu0 0
  %338 = vmatpush1.bf16.xpose.msra.mxu0 0
  %339 = vmatprep.subr.bf16.mxu0 0
  %340 = vmatpush1.bf16.xpose.msra.mxu0 0
  %341 = vmatprep.subr.bf16.mxu0 0
  %342 = vmatpush1.bf16.xpose.msra.mxu0 0
  %343 = vmatprep.subr.bf16.mxu0 0
  %344 = vmatpush1.bf16.xpose.msra.mxu0 0
  %345 = vmatprep.subr.bf16.mxu0 0
  %346 = vmatpush1.bf16.xpose.msra.mxu0 0
  %347 = vmatprep.mubr.bf16.mxu0 0
  %348 = vmatmul.mubr.bf16.gmra.mrb[0].mxu0 %v310
  %v349 = vpop.f32.mrb[0].mxu0
  %v350 = vadd.f32 0.0, %v349
  %v351 = vpop.f32.mrb[0].mxu0
  %v352 = vpop.f32.mrb[0].mxu0
  %v353 = vpop.f32.mrb[0].mxu0
  %354 = vdwg.mxu0
  %v355 = vsel %vm195, %v350, -inf
  %356 = vmax.xlane.f32.xlu0 %v355
  %v357 = vpop.xlane.xlu0 %356
  %v358 = vsub.f32 %v350, %v357
  %v359 = vmul.f32 %v358, 1.442695
  %v360 = vpow.pop %v359
  %v361 = vsel %vm195, %v360, 0.0
  %362 = vadd.xlane.f32.xlu0 %v361
  %v363 = vpop.xlane.xlu0 %362
  %v364 = vrcp.pop %v363
  %v365 = vmul.f32 %v360, %v364
  %v366 = vadd.f32 %v253, %v365
  %v367 = vpack.c.bf16 %v365, %v365
  %368 = vrot.lane.b32.xlu0 %v191, 56
  %v369 = vpop.permute.xlu0 %368
  %v371 = vsel %vm195, %v367, 0
  %v374 = vsel %vm261, %v369, 0
  %376 = vmatprep.subr.bf16.mxu0 0
  %377 = vmatpush1.bf16.msra.mxu0 %v374
  %378 = vmatprep.subr.bf16.mxu0 0
  %379 = vmatpush1.bf16.msra.mxu0 0
  %380 = vmatprep.subr.bf16.mxu0 0
  %381 = vmatpush1.bf16.msra.mxu0 0
  %382 = vmatprep.subr.bf16.mxu0 0
  %383 = vmatpush1.bf16.msra.mxu0 0
  %384 = vmatprep.subr.bf16.mxu0 0
  %385 = vmatpush1.bf16.msra.mxu0 0
  %386 = vmatprep.subr.bf16.mxu0 0
  %387 = vmatpush1.bf16.msra.mxu0 0
  %388 = vmatprep.subr.bf16.mxu0 0
  %389 = vmatpush1.bf16.msra.mxu0 0
  %390 = vmatprep.subr.bf16.mxu0 0
  %391 = vmatpush1.bf16.msra.mxu0 0
  %392 = vmatprep.subr.bf16.mxu0 0
  %393 = vmatpush1.bf16.msra.mxu0 0
  %394 = vmatprep.subr.bf16.mxu0 0
  %395 = vmatpush1.bf16.msra.mxu0 0
  %396 = vmatprep.subr.bf16.mxu0 0
  %397 = vmatpush1.bf16.msra.mxu0 0
  %398 = vmatprep.subr.bf16.mxu0 0
  %399 = vmatpush1.bf16.msra.mxu0 0
  %400 = vmatprep.subr.bf16.mxu0 0
  %401 = vmatpush1.bf16.msra.mxu0 0
  %402 = vmatprep.subr.bf16.mxu0 0
  %403 = vmatpush1.bf16.msra.mxu0 0
  %404 = vmatprep.subr.bf16.mxu0 0
  %405 = vmatpush1.bf16.msra.mxu0 0
  %406 = vmatprep.subr.bf16.mxu0 0
  %407 = vmatpush1.bf16.msra.mxu0 0
  %408 = vmatprep.mubr.bf16.mxu0 0
  %409 = vmatmul.mubr.bf16.gmra.mrb[0].mxu0 %v371
  %v410 = vpop.f32.mrb[0].mxu0
  %v411 = vadd.f32 0.0, %v410
  %v412 = vpop.f32.mrb[0].mxu0
  %v413 = vpop.f32.mrb[0].mxu0
  %v414 = vpop.f32.mrb[0].mxu0
  %415 = vdwg.mxu0
  %416 = vrot.lane.b32.xlu0 %v190, 112
  %v417 = vpop.permute.xlu0 %416
  %418 = vrot.lane.b32.xlu0 %v190, 80
  %v419 = vpop.permute.xlu0 %418
  %v421 = vsel %vm195, %v417, 0
  %v424 = vsel %vm195, %v419, 0
  %426 = vmatprep.subr.bf16.mxu0 0
  %427 = vmatpush1.bf16.xpose.msra.mxu0 %v424
  %428 = vmatprep.subr.bf16.mxu0 0
  %429 = vmatpush1.bf16.xpose.msra.mxu0 0
  %430 = vmatprep.subr.bf16.mxu0 0
  %431 = vmatpush1.bf16.xpose.msra.mxu0 0
  %432 = vmatprep.subr.bf16.mxu0 0
  %433 = vmatpush1.bf16.xpose.msra.mxu0 0
  %434 = vmatprep.subr.bf16.mxu0 0
  %435 = vmatpush1.bf16.xpose.msra.mxu0 0
  %436 = vmatprep.subr.bf16.mxu0 0
  %437 = vmatpush1.bf16.xpose.msra.mxu0 0
  %438 = vmatprep.subr.bf16.mxu0 0
  %439 = vmatpush1.bf16.xpose.msra.mxu0 0
  %440 = vmatprep.subr.bf16.mxu0 0
  %441 = vmatpush1.bf16.xpose.msra.mxu0 0
  %442 = vmatprep.subr.bf16.mxu0 0
  %443 = vmatpush1.bf16.xpose.msra.mxu0 0
  %444 = vmatprep.subr.bf16.mxu0 0
  %445 = vmatpush1.bf16.xpose.msra.mxu0 0
  %446 = vmatprep.subr.bf16.mxu0 0
  %447 = vmatpush1.bf16.xpose.msra.mxu0 0
  %448 = vmatprep.subr.bf16.mxu0 0
  %449 = vmatpush1.bf16.xpose.msra.mxu0 0
  %450 = vmatprep.subr.bf16.mxu0 0
  %451 = vmatpush1.bf16.xpose.msra.mxu0 0
  %452 = vmatprep.subr.bf16.mxu0 0
  %453 = vmatpush1.bf16.xpose.msra.mxu0 0
  %454 = vmatprep.subr.bf16.mxu0 0
  %455 = vmatpush1.bf16.xpose.msra.mxu0 0
  %456 = vmatprep.subr.bf16.mxu0 0
  %457 = vmatpush1.bf16.xpose.msra.mxu0 0
  %458 = vmatprep.mubr.bf16.mxu0 0
  %459 = vmatmul.mubr.bf16.gmra.mrb[0].mxu0 %v421
  %v460 = vpop.f32.mrb[0].mxu0
  %v461 = vadd.f32 0.0, %v460
  %v462 = vpop.f32.mrb[0].mxu0
  %v463 = vpop.f32.mrb[0].mxu0
  %v464 = vpop.f32.mrb[0].mxu0
  %465 = vdwg.mxu0
  %v466 = vsel %vm195, %v461, -inf
  %467 = vmax.xlane.f32.xlu0 %v466
  %v468 = vpop.xlane.xlu0 %467
  %v469 = vsub.f32 %v461, %v468
  %v470 = vmul.f32 %v469, 1.442695
  %v471 = vpow.pop %v470
  %v472 = vsel %vm195, %v471, 0.0
  %473 = vadd.xlane.f32.xlu0 %v472
  %v474 = vpop.xlane.xlu0 %473
  %v475 = vrcp.pop %v474
  %v476 = vmul.f32 %v471, %v475
  %v477 = vadd.f32 %v366, %v476
  %v478 = vpack.c.bf16 %v476, %v476
  %479 = vrot.lane.b32.xlu0 %v191, 48
  %v480 = vpop.permute.xlu0 %479
  %v482 = vsel %vm195, %v478, 0
  %v485 = vsel %vm261, %v480, 0
  %487 = vmatprep.subr.bf16.mxu0 0
  %488 = vmatpush1.bf16.msra.mxu0 %v485
  %489 = vmatprep.subr.bf16.mxu0 0
  %490 = vmatpush1.bf16.msra.mxu0 0
  %491 = vmatprep.subr.bf16.mxu0 0
  %492 = vmatpush1.bf16.msra.mxu0 0
  %493 = vmatprep.subr.bf16.mxu0 0
  %494 = vmatpush1.bf16.msra.mxu0 0
  %495 = vmatprep.subr.bf16.mxu0 0
  %496 = vmatpush1.bf16.msra.mxu0 0
  %497 = vmatprep.subr.bf16.mxu0 0
  %498 = vmatpush1.bf16.msra.mxu0 0
  %499 = vmatprep.subr.bf16.mxu0 0
  %500 = vmatpush1.bf16.msra.mxu0 0
  %501 = vmatprep.subr.bf16.mxu0 0
  %502 = vmatpush1.bf16.msra.mxu0 0
  %503 = vmatprep.subr.bf16.mxu0 0
  %504 = vmatpush1.bf16.msra.mxu0 0
  %505 = vmatprep.subr.bf16.mxu0 0
  %506 = vmatpush1.bf16.msra.mxu0 0
  %507 = vmatprep.subr.bf16.mxu0 0
  %508 = vmatpush1.bf16.msra.mxu0 0
  %509 = vmatprep.subr.bf16.mxu0 0
  %510 = vmatpush1.bf16.msra.mxu0 0
  %511 = vmatprep.subr.bf16.mxu0 0
  %512 = vmatpush1.bf16.msra.mxu0 0
  %513 = vmatprep.subr.bf16.mxu0 0
  %514 = vmatpush1.bf16.msra.mxu0 0
  %515 = vmatprep.subr.bf16.mxu0 0
  %516 = vmatpush1.bf16.msra.mxu0 0
  %517 = vmatprep.subr.bf16.mxu0 0
  %518 = vmatpush1.bf16.msra.mxu0 0
  %519 = vmatprep.mubr.bf16.mxu0 0
  %520 = vmatmul.mubr.bf16.gmra.mrb[0].mxu0 %v482
  %v521 = vpop.f32.mrb[0].mxu0
  %v522 = vadd.f32 0.0, %v521
  %v523 = vpop.f32.mrb[0].mxu0
  %v524 = vpop.f32.mrb[0].mxu0
  %v525 = vpop.f32.mrb[0].mxu0
  %526 = vdwg.mxu0
  %527 = vrot.lane.b32.xlu0 %v190, 104
  %v528 = vpop.permute.xlu0 %527
  %529 = vrot.lane.b32.xlu0 %v190, 72
  %v530 = vpop.permute.xlu0 %529
  %v532 = vsel %vm195, %v528, 0
  %v535 = vsel %vm195, %v530, 0
  %537 = vmatprep.subr.bf16.mxu0 0
  %538 = vmatpush1.bf16.xpose.msra.mxu0 %v535
  %539 = vmatprep.subr.bf16.mxu0 0
  %540 = vmatpush1.bf16.xpose.msra.mxu0 0
  %541 = vmatprep.subr.bf16.mxu0 0
  %542 = vmatpush1.bf16.xpose.msra.mxu0 0
  %543 = vmatprep.subr.bf16.mxu0 0
  %544 = vmatpush1.bf16.xpose.msra.mxu0 0
  %545 = vmatprep.subr.bf16.mxu0 0
  %546 = vmatpush1.bf16.xpose.msra.mxu0 0
  %547 = vmatprep.subr.bf16.mxu0 0
  %548 = vmatpush1.bf16.xpose.msra.mxu0 0
  %549 = vmatprep.subr.bf16.mxu0 0
  %550 = vmatpush1.bf16.xpose.msra.mxu0 0
  %551 = vmatprep.subr.bf16.mxu0 0
  %552 = vmatpush1.bf16.xpose.msra.mxu0 0
  %553 = vmatprep.subr.bf16.mxu0 0
  %554 = vmatpush1.bf16.xpose.msra.mxu0 0
  %555 = vmatprep.subr.bf16.mxu0 0
  %556 = vmatpush1.bf16.xpose.msra.mxu0 0
  %557 = vmatprep.subr.bf16.mxu0 0
  %558 = vmatpush1.bf16.xpose.msra.mxu0 0
  %559 = vmatprep.subr.bf16.mxu0 0
  %560 = vmatpush1.bf16.xpose.msra.mxu0 0
  %561 = vmatprep.subr.bf16.mxu0 0
  %562 = vmatpush1.bf16.xpose.msra.mxu0 0
  %563 = vmatprep.subr.bf16.mxu0 0
  %564 = vmatpush1.bf16.xpose.msra.mxu0 0
  %565 = vmatprep.subr.bf16.mxu0 0
  %566 = vmatpush1.bf16.xpose.msra.mxu0 0
  %567 = vmatprep.subr.bf16.mxu0 0
  %568 = vmatpush1.bf16.xpose.msra.mxu0 0
  %569 = vmatprep.mubr.bf16.mxu0 0
  %570 = vmatmul.mubr.bf16.gmra.mrb[0].mxu0 %v532
  %v571 = vpop.f32.mrb[0].mxu0
  %v572 = vadd.f32 0.0, %v571
  %v573 = vpop.f32.mrb[0].mxu0
  %v574 = vpop.f32.mrb[0].mxu0
  %v575 = vpop.f32.mrb[0].mxu0
  %576 = vdwg.mxu0
  %v577 = vsel %vm195, %v572, -inf
  %578 = vmax.xlane.f32.xlu0 %v577
  %v579 = vpop.xlane.xlu0 %578
  %v580 = vsub.f32 %v572, %v579
  %v581 = vmul.f32 %v580, 1.442695
  %v582 = vpow.pop %v581
  %v583 = vsel %vm195, %v582, 0.0
  %584 = vadd.xlane.f32.xlu0 %v583
  %v585 = vpop.xlane.xlu0 %584
  %v586 = vrcp.pop %v585
  %v587 = vmul.f32 %v582, %v586
  %v588 = vadd.f32 %v477, %v587
  %v589 = vpack.c.bf16 %v587, %v587
  %590 = vrot.lane.b32.xlu0 %v191, 40
  %v591 = vpop.permute.xlu0 %590
  %v593 = vsel %vm195, %v589, 0
  %v596 = vsel %vm261, %v591, 0
  %598 = vmatprep.subr.bf16.mxu0 0
  %599 = vmatpush1.bf16.msra.mxu0 %v596
  %600 = vmatprep.subr.bf16.mxu0 0
  %601 = vmatpush1.bf16.msra.mxu0 0
  %602 = vmatprep.subr.bf16.mxu0 0
  %603 = vmatpush1.bf16.msra.mxu0 0
  %604 = vmatprep.subr.bf16.mxu0 0
  %605 = vmatpush1.bf16.msra.mxu0 0
  %606 = vmatprep.subr.bf16.mxu0 0
  %607 = vmatpush1.bf16.msra.mxu0 0
  %608 = vmatprep.subr.bf16.mxu0 0
  %609 = vmatpush1.bf16.msra.mxu0 0
  %610 = vmatprep.subr.bf16.mxu0 0
  %611 = vmatpush1.bf16.msra.mxu0 0
  %612 = vmatprep.subr.bf16.mxu0 0
  %613 = vmatpush1.bf16.msra.mxu0 0
  %614 = vmatprep.subr.bf16.mxu0 0
  %615 = vmatpush1.bf16.msra.mxu0 0
  %616 = vmatprep.subr.bf16.mxu0 0
  %617 = vmatpush1.bf16.msra.mxu0 0
  %618 = vmatprep.subr.bf16.mxu0 0
  %619 = vmatpush1.bf16.msra.mxu0 0
  %620 = vmatprep.subr.bf16.mxu0 0
  %621 = vmatpush1.bf16.msra.mxu0 0
  %622 = vmatprep.subr.bf16.mxu0 0
  %623 = vmatpush1.bf16.msra.mxu0 0
  %624 = vmatprep.subr.bf16.mxu0 0
  %625 = vmatpush1.bf16.msra.mxu0 0
  %626 = vmatprep.subr.bf16.mxu0 0
  %627 = vmatpush1.bf16.msra.mxu0 0
  %628 = vmatprep.subr.bf16.mxu0 0
  %629 = vmatpush1.bf16.msra.mxu0 0
  %630 = vmatprep.mubr.bf16.mxu0 0
  %631 = vmatmul.mubr.bf16.gmra.mrb[0].mxu0 %v593
  %v632 = vpop.f32.mrb[0].mxu0
  %v633 = vadd.f32 0.0, %v632
  %v634 = vpop.f32.mrb[0].mxu0
  %v635 = vpop.f32.mrb[0].mxu0
  %v636 = vpop.f32.mrb[0].mxu0
  %637 = vdwg.mxu0
  %639 = vrot.lane.b32.xlu0 %v411, 8
  %v640 = vpop.permute.xlu0 %639
  %643 = vrot.lane.b32.xlu0 %v522, 16
  %v644 = vpop.permute.xlu0 %643
  %647 = vrot.lane.b32.xlu0 %v633, 24
  %v648 = vpop.permute.xlu0 %647
  %v650 = vsel %vm195, %v300, %v640
  %vm651 = vcmask 130048
  %v652 = vsel %vm651, %v650, %v644
  %vm653 = vcmask 195584
  %v654 = vsel %vm653, %v652, %v648
  %v655 = vmul.f32 %v588, 0.25
  %v656 = vrot.slane %v190, 4
  %657 = vrot.lane.b32.xlu0 %v656, 96
  %v658 = vpop.permute.xlu0 %657
  %v660 = vsel %vm195, %v656, 0
  %v663 = vsel %vm195, %v658, 0
  %665 = vmatprep.subr.bf16.mxu0 0
  %666 = vmatpush1.bf16.xpose.msra.mxu0 %v663
  %667 = vmatprep.subr.bf16.mxu0 0
  %668 = vmatpush1.bf16.xpose.msra.mxu0 0
  %669 = vmatprep.subr.bf16.mxu0 0
  %670 = vmatpush1.bf16.xpose.msra.mxu0 0
  %671 = vmatprep.subr.bf16.mxu0 0
  %672 = vmatpush1.bf16.xpose.msra.mxu0 0
  %673 = vmatprep.subr.bf16.mxu0 0
  %674 = vmatpush1.bf16.xpose.msra.mxu0 0
  %675 = vmatprep.subr.bf16.mxu0 0
  %676 = vmatpush1.bf16.xpose.msra.mxu0 0
  %677 = vmatprep.subr.bf16.mxu0 0
  %678 = vmatpush1.bf16.xpose.msra.mxu0 0
  %679 = vmatprep.subr.bf16.mxu0 0
  %680 = vmatpush1.bf16.xpose.msra.mxu0 0
  %681 = vmatprep.subr.bf16.mxu0 0
  %682 = vmatpush1.bf16.xpose.msra.mxu0 0
  %683 = vmatprep.subr.bf16.mxu0 0
  %684 = vmatpush1.bf16.xpose.msra.mxu0 0
  %685 = vmatprep.subr.bf16.mxu0 0
  %686 = vmatpush1.bf16.xpose.msra.mxu0 0
  %687 = vmatprep.subr.bf16.mxu0 0
  %688 = vmatpush1.bf16.xpose.msra.mxu0 0
  %689 = vmatprep.subr.bf16.mxu0 0
  %690 = vmatpush1.bf16.xpose.msra.mxu0 0
  %691 = vmatprep.subr.bf16.mxu0 0
  %692 = vmatpush1.bf16.xpose.msra.mxu0 0
  %693 = vmatprep.subr.bf16.mxu0 0
  %694 = vmatpush1.bf16.xpose.msra.mxu0 0
  %695 = vmatprep.subr.bf16.mxu0 0
  %696 = vmatpush1.bf16.xpose.msra.mxu0 0
  %697 = vmatprep.mubr.bf16.mxu0 0
  %698 = vmatmul.mubr.bf16.gmra.mrb[0].mxu0 %v660
  %v699 = vpop.f32.mrb[0].mxu0
  %v700 = vadd.f32 0.0, %v699
  %v701 = vpop.f32.mrb[0].mxu0
  %v702 = vpop.f32.mrb[0].mxu0
  %v703 = vpop.f32.mrb[0].mxu0
  %704 = vdwg.mxu0
  %v705 = vsel %vm195, %v700, -inf
  %706 = vmax.xlane.f32.xlu0 %v705
  %v707 = vpop.xlane.xlu0 %706
  %v708 = vsub.f32 %v700, %v707
  %v709 = vmul.f32 %v708, 1.442695
  %v710 = vpow.pop %v709
  %v711 = vsel %vm195, %v710, 0.0
  %712 = vadd.xlane.f32.xlu0 %v711
  %v713 = vpop.xlane.xlu0 %712
  %v714 = vrcp.pop %v713
  %v715 = vmul.f32 %v710, %v714
  %v716 = vadd.f32 %v715, 0.0
  %v717 = vpack.c.bf16 %v715, %v715
  %v718 = vrot.slane %v191, 4
  %719 = vrot.lane.b32.xlu0 %v718, 64
  %v720 = vpop.permute.xlu0 %719
  %v722 = vsel %vm195, %v717, 0
  %v725 = vsel %vm261, %v720, 0
  %727 = vmatprep.subr.bf16.mxu0 0
  %728 = vmatpush1.bf16.msra.mxu0 %v725
  %729 = vmatprep.subr.bf16.mxu0 0
  %730 = vmatpush1.bf16.msra.mxu0 0
  %731 = vmatprep.subr.bf16.mxu0 0
  %732 = vmatpush1.bf16.msra.mxu0 0
  %733 = vmatprep.subr.bf16.mxu0 0
  %734 = vmatpush1.bf16.msra.mxu0 0
  %735 = vmatprep.subr.bf16.mxu0 0
  %736 = vmatpush1.bf16.msra.mxu0 0
  %737 = vmatprep.subr.bf16.mxu0 0
  %738 = vmatpush1.bf16.msra.mxu0 0
  %739 = vmatprep.subr.bf16.mxu0 0
  %740 = vmatpush1.bf16.msra.mxu0 0
  %741 = vmatprep.subr.bf16.mxu0 0
  %742 = vmatpush1.bf16.msra.mxu0 0
  %743 = vmatprep.subr.bf16.mxu0 0
  %744 = vmatpush1.bf16.msra.mxu0 0
  %745 = vmatprep.subr.bf16.mxu0 0
  %746 = vmatpush1.bf16.msra.mxu0 0
  %747 = vmatprep.subr.bf16.mxu0 0
  %748 = vmatpush1.bf16.msra.mxu0 0
  %749 = vmatprep.subr.bf16.mxu0 0
  %750 = vmatpush1.bf16.msra.mxu0 0
  %751 = vmatprep.subr.bf16.mxu0 0
  %752 = vmatpush1.bf16.msra.mxu0 0
  %753 = vmatprep.subr.bf16.mxu0 0
  %754 = vmatpush1.bf16.msra.mxu0 0
  %755 = vmatprep.subr.bf16.mxu0 0
  %756 = vmatpush1.bf16.msra.mxu0 0
  %757 = vmatprep.subr.bf16.mxu0 0
  %758 = vmatpush1.bf16.msra.mxu0 0
  %759 = vmatprep.mubr.bf16.mxu0 0
  %760 = vmatmul.mubr.bf16.gmra.mrb[0].mxu0 %v722
  %v761 = vpop.f32.mrb[0].mxu0
  %v762 = vadd.f32 0.0, %v761
  %v763 = vpop.f32.mrb[0].mxu0
  %v764 = vpop.f32.mrb[0].mxu0
  %v765 = vpop.f32.mrb[0].mxu0
  %766 = vdwg.mxu0
  %767 = vrot.lane.b32.xlu0 %v656, 120
  %v768 = vpop.permute.xlu0 %767
  %769 = vrot.lane.b32.xlu0 %v656, 88
  %v770 = vpop.permute.xlu0 %769
  %v772 = vsel %vm195, %v768, 0
  %v775 = vsel %vm195, %v770, 0
  %777 = vmatprep.subr.bf16.mxu0 0
  %778 = vmatpush1.bf16.xpose.msra.mxu0 %v775
  %779 = vmatprep.subr.bf16.mxu0 0
  %780 = vmatpush1.bf16.xpose.msra.mxu0 0
  %781 = vmatprep.subr.bf16.mxu0 0
  %782 = vmatpush1.bf16.xpose.msra.mxu0 0
  %783 = vmatprep.subr.bf16.mxu0 0
  %784 = vmatpush1.bf16.xpose.msra.mxu0 0
  %785 = vmatprep.subr.bf16.mxu0 0
  %786 = vmatpush1.bf16.xpose.msra.mxu0 0
  %787 = vmatprep.subr.bf16.mxu0 0
  %788 = vmatpush1.bf16.xpose.msra.mxu0 0
  %789 = vmatprep.subr.bf16.mxu0 0
  %790 = vmatpush1.bf16.xpose.msra.mxu0 0
  %791 = vmatprep.subr.bf16.mxu0 0
  %792 = vmatpush1.bf16.xpose.msra.mxu0 0
  %793 = vmatprep.subr.bf16.mxu0 0
  %794 = vmatpush1.bf16.xpose.msra.mxu0 0
  %795 = vmatprep.subr.bf16.mxu0 0
  %796 = vmatpush1.bf16.xpose.msra.mxu0 0
  %797 = vmatprep.subr.bf16.mxu0 0
  %798 = vmatpush1.bf16.xpose.msra.mxu0 0
  %799 = vmatprep.subr.bf16.mxu0 0
  %800 = vmatpush1.bf16.xpose.msra.mxu0 0
  %801 = vmatprep.subr.bf16.mxu0 0
  %802 = vmatpush1.bf16.xpose.msra.mxu0 0
  %803 = vmatprep.subr.bf16.mxu0 0
  %804 = vmatpush1.bf16.xpose.msra.mxu0 0
  %805 = vmatprep.subr.bf16.mxu0 0
  %806 = vmatpush1.bf16.xpose.msra.mxu0 0
  %807 = vmatprep.subr.bf16.mxu0 0
  %808 = vmatpush1.bf16.xpose.msra.mxu0 0
  %809 = vmatprep.mubr.bf16.mxu0 0
  %810 = vmatmul.mubr.bf16.gmra.mrb[0].mxu0 %v772
  %v811 = vpop.f32.mrb[0].mxu0
  %v812 = vadd.f32 0.0, %v811
  %v813 = vpop.f32.mrb[0].mxu0
  %v814 = vpop.f32.mrb[0].mxu0
  %v815 = vpop.f32.mrb[0].mxu0
  %816 = vdwg.mxu0
  %v817 = vsel %vm195, %v812, -inf
  %818 = vmax.xlane.f32.xlu0 %v817
  %v819 = vpop.xlane.xlu0 %818
  %v820 = vsub.f32 %v812, %v819
  %v821 = vmul.f32 %v820, 1.442695
  %v822 = vpow.pop %v821
  %v823 = vsel %vm195, %v822, 0.0
  %824 = vadd.xlane.f32.xlu0 %v823
  %v825 = vpop.xlane.xlu0 %824
  %v826 = vrcp.pop %v825
  %v827 = vmul.f32 %v822, %v826
  %v828 = vadd.f32 %v716, %v827
  %v829 = vpack.c.bf16 %v827, %v827
  %830 = vrot.lane.b32.xlu0 %v718, 56
  %v831 = vpop.permute.xlu0 %830
  %v833 = vsel %vm195, %v829, 0
  %v836 = vsel %vm261, %v831, 0
  %838 = vmatprep.subr.bf16.mxu0 0
  %839 = vmatpush1.bf16.msra.mxu0 %v836
  %840 = vmatprep.subr.bf16.mxu0 0
  %841 = vmatpush1.bf16.msra.mxu0 0
  %842 = vmatprep.subr.bf16.mxu0 0
  %843 = vmatpush1.bf16.msra.mxu0 0
  %844 = vmatprep.subr.bf16.mxu0 0
  %845 = vmatpush1.bf16.msra.mxu0 0
  %846 = vmatprep.subr.bf16.mxu0 0
  %847 = vmatpush1.bf16.msra.mxu0 0
  %848 = vmatprep.subr.bf16.mxu0 0
  %849 = vmatpush1.bf16.msra.mxu0 0
  %850 = vmatprep.subr.bf16.mxu0 0
  %851 = vmatpush1.bf16.msra.mxu0 0
  %852 = vmatprep.subr.bf16.mxu0 0
  %853 = vmatpush1.bf16.msra.mxu0 0
  %854 = vmatprep.subr.bf16.mxu0 0
  %855 = vmatpush1.bf16.msra.mxu0 0
  %856 = vmatprep.subr.bf16.mxu0 0
  %857 = vmatpush1.bf16.msra.mxu0 0
  %858 = vmatprep.subr.bf16.mxu0 0
  %859 = vmatpush1.bf16.msra.mxu0 0
  %860 = vmatprep.subr.bf16.mxu0 0
  %861 = vmatpush1.bf16.msra.mxu0 0
  %862 = vmatprep.subr.bf16.mxu0 0
  %863 = vmatpush1.bf16.msra.mxu0 0
  %864 = vmatprep.subr.bf16.mxu0 0
  %865 = vmatpush1.bf16.msra.mxu0 0
  %866 = vmatprep.subr.bf16.mxu0 0
  %867 = vmatpush1.bf16.msra.mxu0 0
  %868 = vmatprep.subr.bf16.mxu0 0
  %869 = vmatpush1.bf16.msra.mxu0 0
  %870 = vmatprep.mubr.bf16.mxu0 0
  %871 = vmatmul.mubr.bf16.gmra.mrb[0].mxu0 %v833
  %v872 = vpop.f32.mrb[0].mxu0
  %v873 = vadd.f32 0.0, %v872
  %v874 = vpop.f32.mrb[0].mxu0
  %v875 = vpop.f32.mrb[0].mxu0
  %v876 = vpop.f32.mrb[0].mxu0
  %877 = vdwg.mxu0
  %878 = vrot.lane.b32.xlu0 %v656, 112
  %v879 = vpop.permute.xlu0 %878
  %880 = vrot.lane.b32.xlu0 %v656, 80
  %v881 = vpop.permute.xlu0 %880
  %v883 = vsel %vm195, %v879, 0
  %v886 = vsel %vm195, %v881, 0
  %888 = vmatprep.subr.bf16.mxu0 0
  %889 = vmatpush1.bf16.xpose.msra.mxu0 %v886
  %890 = vmatprep.subr.bf16.mxu0 0
  %891 = vmatpush1.bf16.xpose.msra.mxu0 0
  %892 = vmatprep.subr.bf16.mxu0 0
  %893 = vmatpush1.bf16.xpose.msra.mxu0 0
  %894 = vmatprep.subr.bf16.mxu0 0
  %895 = vmatpush1.bf16.xpose.msra.mxu0 0
  %896 = vmatprep.subr.bf16.mxu0 0
  %897 = vmatpush1.bf16.xpose.msra.mxu0 0
  %898 = vmatprep.subr.bf16.mxu0 0
  %899 = vmatpush1.bf16.xpose.msra.mxu0 0
  %900 = vmatprep.subr.bf16.mxu0 0
  %901 = vmatpush1.bf16.xpose.msra.mxu0 0
  %902 = vmatprep.subr.bf16.mxu0 0
  %903 = vmatpush1.bf16.xpose.msra.mxu0 0
  %904 = vmatprep.subr.bf16.mxu0 0
  %905 = vmatpush1.bf16.xpose.msra.mxu0 0
  %906 = vmatprep.subr.bf16.mxu0 0
  %907 = vmatpush1.bf16.xpose.msra.mxu0 0
  %908 = vmatprep.subr.bf16.mxu0 0
  %909 = vmatpush1.bf16.xpose.msra.mxu0 0
  %910 = vmatprep.subr.bf16.mxu0 0
  %911 = vmatpush1.bf16.xpose.msra.mxu0 0
  %912 = vmatprep.subr.bf16.mxu0 0
  %913 = vmatpush1.bf16.xpose.msra.mxu0 0
  %914 = vmatprep.subr.bf16.mxu0 0
  %915 = vmatpush1.bf16.xpose.msra.mxu0 0
  %916 = vmatprep.subr.bf16.mxu0 0
  %917 = vmatpush1.bf16.xpose.msra.mxu0 0
  %918 = vmatprep.subr.bf16.mxu0 0
  %919 = vmatpush1.bf16.xpose.msra.mxu0 0
  %920 = vmatprep.mubr.bf16.mxu0 0
  %921 = vmatmul.mubr.bf16.gmra.mrb[0].mxu0 %v883
  %v922 = vpop.f32.mrb[0].mxu0
  %v923 = vadd.f32 0.0, %v922
  %v924 = vpop.f32.mrb[0].mxu0
  %v925 = vpop.f32.mrb[0].mxu0
  %v926 = vpop.f32.mrb[0].mxu0
  %927 = vdwg.mxu0
  %v928 = vsel %vm195, %v923, -inf
  %929 = vmax.xlane.f32.xlu0 %v928
  %v930 = vpop.xlane.xlu0 %929
  %v931 = vsub.f32 %v923, %v930
  %v932 = vmul.f32 %v931, 1.442695
  %v933 = vpow.pop %v932
  %v934 = vsel %vm195, %v933, 0.0
  %935 = vadd.xlane.f32.xlu0 %v934
  %v936 = vpop.xlane.xlu0 %935
  %v937 = vrcp.pop %v936
  %v938 = vmul.f32 %v933, %v937
  %v939 = vadd.f32 %v828, %v938
  %v940 = vpack.c.bf16 %v938, %v938
  %941 = vrot.lane.b32.xlu0 %v718, 48
  %v942 = vpop.permute.xlu0 %941
  %v944 = vsel %vm195, %v940, 0
  %v947 = vsel %vm261, %v942, 0
  %949 = vmatprep.subr.bf16.mxu0 0
  %950 = vmatpush1.bf16.msra.mxu0 %v947
  %951 = vmatprep.subr.bf16.mxu0 0
  %952 = vmatpush1.bf16.msra.mxu0 0
  %953 = vmatprep.subr.bf16.mxu0 0
  %954 = vmatpush1.bf16.msra.mxu0 0
  %955 = vmatprep.subr.bf16.mxu0 0
  %956 = vmatpush1.bf16.msra.mxu0 0
  %957 = vmatprep.subr.bf16.mxu0 0
  %958 = vmatpush1.bf16.msra.mxu0 0
  %959 = vmatprep.subr.bf16.mxu0 0
  %960 = vmatpush1.bf16.msra.mxu0 0
  %961 = vmatprep.subr.bf16.mxu0 0
  %962 = vmatpush1.bf16.msra.mxu0 0
  %963 = vmatprep.subr.bf16.mxu0 0
  %964 = vmatpush1.bf16.msra.mxu0 0
  %965 = vmatprep.subr.bf16.mxu0 0
  %966 = vmatpush1.bf16.msra.mxu0 0
  %967 = vmatprep.subr.bf16.mxu0 0
  %968 = vmatpush1.bf16.msra.mxu0 0
  %969 = vmatprep.subr.bf16.mxu0 0
  %970 = vmatpush1.bf16.msra.mxu0 0
  %971 = vmatprep.subr.bf16.mxu0 0
  %972 = vmatpush1.bf16.msra.mxu0 0
  %973 = vmatprep.subr.bf16.mxu0 0
  %974 = vmatpush1.bf16.msra.mxu0 0
  %975 = vmatprep.subr.bf16.mxu0 0
  %976 = vmatpush1.bf16.msra.mxu0 0
  %977 = vmatprep.subr.bf16.mxu0 0
  %978 = vmatpush1.bf16.msra.mxu0 0
  %979 = vmatprep.subr.bf16.mxu0 0
  %980 = vmatpush1.bf16.msra.mxu0 0
  %981 = vmatprep.mubr.bf16.mxu0 0
  %982 = vmatmul.mubr.bf16.gmra.mrb[0].mxu0 %v944
  %v983 = vpop.f32.mrb[0].mxu0
  %v984 = vadd.f32 0.0, %v983
  %v985 = vpop.f32.mrb[0].mxu0
  %v986 = vpop.f32.mrb[0].mxu0
  %v987 = vpop.f32.mrb[0].mxu0
  %988 = vdwg.mxu0
  %989 = vrot.lane.b32.xlu0 %v656, 104
  %v990 = vpop.permute.xlu0 %989
  %991 = vrot.lane.b32.xlu0 %v656, 72
  %v992 = vpop.permute.xlu0 %991
  %v994 = vsel %vm195, %v990, 0
  %v997 = vsel %vm195, %v992, 0
  %999 = vmatprep.subr.bf16.mxu0 0
  %1000 = vmatpush1.bf16.xpose.msra.mxu0 %v997
  %1001 = vmatprep.subr.bf16.mxu0 0
  %1002 = vmatpush1.bf16.xpose.msra.mxu0 0
  %1003 = vmatprep.subr.bf16.mxu0 0
  %1004 = vmatpush1.bf16.xpose.msra.mxu0 0
  %1005 = vmatprep.subr.bf16.mxu0 0
  %1006 = vmatpush1.bf16.xpose.msra.mxu0 0
  %1007 = vmatprep.subr.bf16.mxu0 0
  %1008 = vmatpush1.bf16.xpose.msra.mxu0 0
  %1009 = vmatprep.subr.bf16.mxu0 0
  %1010 = vmatpush1.bf16.xpose.msra.mxu0 0
  %1011 = vmatprep.subr.bf16.mxu0 0
  %1012 = vmatpush1.bf16.xpose.msra.mxu0 0
  %1013 = vmatprep.subr.bf16.mxu0 0
  %1014 = vmatpush1.bf16.xpose.msra.mxu0 0
  %1015 = vmatprep.subr.bf16.mxu0 0
  %1016 = vmatpush1.bf16.xpose.msra.mxu0 0
  %1017 = vmatprep.subr.bf16.mxu0 0
  %1018 = vmatpush1.bf16.xpose.msra.mxu0 0
  %1019 = vmatprep.subr.bf16.mxu0 0
  %1020 = vmatpush1.bf16.xpose.msra.mxu0 0
  %1021 = vmatprep.subr.bf16.mxu0 0
  %1022 = vmatpush1.bf16.xpose.msra.mxu0 0
  %1023 = vmatprep.subr.bf16.mxu0 0
  %1024 = vmatpush1.bf16.xpose.msra.mxu0 0
  %1025 = vmatprep.subr.bf16.mxu0 0
  %1026 = vmatpush1.bf16.xpose.msra.mxu0 0
  %1027 = vmatprep.subr.bf16.mxu0 0
  %1028 = vmatpush1.bf16.xpose.msra.mxu0 0
  %1029 = vmatprep.subr.bf16.mxu0 0
  %1030 = vmatpush1.bf16.xpose.msra.mxu0 0
  %1031 = vmatprep.mubr.bf16.mxu0 0
  %1032 = vmatmul.mubr.bf16.gmra.mrb[0].mxu0 %v994
  %v1033 = vpop.f32.mrb[0].mxu0
  %v1034 = vadd.f32 0.0, %v1033
  %v1035 = vpop.f32.mrb[0].mxu0
  %v1036 = vpop.f32.mrb[0].mxu0
  %v1037 = vpop.f32.mrb[0].mxu0
  %1038 = vdwg.mxu0
  %v1039 = vsel %vm195, %v1034, -inf
  %1040 = vmax.xlane.f32.xlu0 %v1039
  %v1041 = vpop.xlane.xlu0 %1040
  %v1042 = vsub.f32 %v1034, %v1041
  %v1043 = vmul.f32 %v1042, 1.442695
  %v1044 = vpow.pop %v1043
  %v1045 = vsel %vm195, %v1044, 0.0
  %1046 = vadd.xlane.f32.xlu0 %v1045
  %v1047 = vpop.xlane.xlu0 %1046
  %v1048 = vrcp.pop %v1047
  %v1049 = vmul.f32 %v1044, %v1048
  %v1050 = vadd.f32 %v939, %v1049
  %v1051 = vpack.c.bf16 %v1049, %v1049
  %1052 = vrot.lane.b32.xlu0 %v718, 40
  %v1053 = vpop.permute.xlu0 %1052
  %v1055 = vsel %vm195, %v1051, 0
  %v1058 = vsel %vm261, %v1053, 0
  %1060 = vmatprep.subr.bf16.mxu0 0
  %1061 = vmatpush1.bf16.msra.mxu0 %v1058
  %1062 = vmatprep.subr.bf16.mxu0 0
  %1063 = vmatpush1.bf16.msra.mxu0 0
  %1064 = vmatprep.subr.bf16.mxu0 0
  %1065 = vmatpush1.bf16.msra.mxu0 0
  %1066 = vmatprep.subr.bf16.mxu0 0
  %1067 = vmatpush1.bf16.msra.mxu0 0
  %1068 = vmatprep.subr.bf16.mxu0 0
  %1069 = vmatpush1.bf16.msra.mxu0 0
  %1070 = vmatprep.subr.bf16.mxu0 0
  %1071 = vmatpush1.bf16.msra.mxu0 0
  %1072 = vmatprep.subr.bf16.mxu0 0
  %1073 = vmatpush1.bf16.msra.mxu0 0
  %1074 = vmatprep.subr.bf16.mxu0 0
  %1075 = vmatpush1.bf16.msra.mxu0 0
  %1076 = vmatprep.subr.bf16.mxu0 0
  %1077 = vmatpush1.bf16.msra.mxu0 0
  %1078 = vmatprep.subr.bf16.mxu0 0
  %1079 = vmatpush1.bf16.msra.mxu0 0
  %1080 = vmatprep.subr.bf16.mxu0 0
  %1081 = vmatpush1.bf16.msra.mxu0 0
  %1082 = vmatprep.subr.bf16.mxu0 0
  %1083 = vmatpush1.bf16.msra.mxu0 0
  %1084 = vmatprep.subr.bf16.mxu0 0
  %1085 = vmatpush1.bf16.msra.mxu0 0
  %1086 = vmatprep.subr.bf16.mxu0 0
  %1087 = vmatpush1.bf16.msra.mxu0 0
  %1088 = vmatprep.subr.bf16.mxu0 0
  %1089 = vmatpush1.bf16.msra.mxu0 0
  %1090 = vmatprep.subr.bf16.mxu0 0
  %1091 = vmatpush1.bf16.msra.mxu0 0
  %1092 = vmatprep.mubr.bf16.mxu0 0
  %1093 = vmatmul.mubr.bf16.gmra.mrb[0].mxu0 %v1055
  %v1094 = vpop.f32.mrb[0].mxu0
  %v1095 = vadd.f32 0.0, %v1094
  %v1096 = vpop.f32.mrb[0].mxu0
  %v1097 = vpop.f32.mrb[0].mxu0
  %v1098 = vpop.f32.mrb[0].mxu0
  %1099 = vdwg.mxu0
  %1101 = vrot.lane.b32.xlu0 %v873, 8
  %v1102 = vpop.permute.xlu0 %1101
  %1105 = vrot.lane.b32.xlu0 %v984, 16
  %v1106 = vpop.permute.xlu0 %1105
  %1109 = vrot.lane.b32.xlu0 %v1095, 24
  %v1110 = vpop.permute.xlu0 %1109
  %v1112 = vsel %vm195, %v762, %v1102
  %v1113 = vsel %vm651, %v1112, %v1106
  %v1114 = vsel %vm653, %v1113, %v1110
  %v1115 = vmul.f32 %v1050, 0.25
  %v1116 = vld [vmem:[%s4 + $0xc] sm:$0xf]
  %v1117 = vld [vmem:[%s4 + $0x20] sm:$0xf]
  %v1118 = vld [vmem:[%s4 + $0x34] sm:$0xf]
  %v1119 = vld [vmem:[%s4 + $0x48] sm:$0xf]
  %v1120 = vpack.c.bf16 %v1114, %v654
  %v1121 = vld [vmem:[%s6 + $0x1] sm:$0x1]
  %v1122 = vlaneseq
  %v1123 = vshrl.u32 %v1122, 7
  %v1124 = vsub.s32 0, %v1123
  %v1125 = vrot.slane %v1121, %v1124
  %v1130 = vunpack.c.l.b16 %v1116
  %v1131 = vunpack.c.l.b16 %v1117
  %v1132 = vunpack.c.l.b16 %v1118
  %v1133 = vunpack.c.l.b16 %v1119
  %v1134 = vpack.c.b16 %v1131, %v1130
  %v1135 = vpack.c.b16 %v1133, %v1132
  %1136 = vrot.lane.b32.xlu0 %v1134, 64
  %v1137 = vpop.permute.xlu0 %1136
  %1138 = vrot.lane.b32.xlu0 %v1135, 64
  %v1139 = vpop.permute.xlu0 %1138
  %v1143 = vsel %vm56, %v1120, 0
  %1145 = vmatprep.subr.bf16.mxu0 0
  %1146 = vmatpush1.bf16.msra.mxu0 %v1137
  %1147 = vmatprep.subr.bf16.mxu0 0
  %1148 = vmatpush1.bf16.msra.mxu0 %v1139
  %1149 = vmatprep.subr.bf16.mxu0 0
  %1150 = vmatpush1.bf16.msra.mxu0 0
  %1151 = vmatprep.subr.bf16.mxu0 0
  %1152 = vmatpush1.bf16.msra.mxu0 0
  %1153 = vmatprep.subr.bf16.mxu0 0
  %1154 = vmatpush1.bf16.msra.mxu0 0
  %1155 = vmatprep.subr.bf16.mxu0 0
  %1156 = vmatpush1.bf16.msra.mxu0 0
  %1157 = vmatprep.subr.bf16.mxu0 0
  %1158 = vmatpush1.bf16.msra.mxu0 0
  %1159 = vmatprep.subr.bf16.mxu0 0
  %1160 = vmatpush1.bf16.msra.mxu0 0
  %1161 = vmatprep.subr.bf16.mxu0 0
  %1162 = vmatpush1.bf16.msra.mxu0 0
  %1163 = vmatprep.subr.bf16.mxu0 0
  %1164 = vmatpush1.bf16.msra.mxu0 0
  %1165 = vmatprep.subr.bf16.mxu0 0
  %1166 = vmatpush1.bf16.msra.mxu0 0
  %1167 = vmatprep.subr.bf16.mxu0 0
  %1168 = vmatpush1.bf16.msra.mxu0 0
  %1169 = vmatprep.subr.bf16.mxu0 0
  %1170 = vmatpush1.bf16.msra.mxu0 0
  %1171 = vmatprep.subr.bf16.mxu0 0
  %1172 = vmatpush1.bf16.msra.mxu0 0
  %1173 = vmatprep.subr.bf16.mxu0 0
  %1174 = vmatpush1.bf16.msra.mxu0 0
  %1175 = vmatprep.subr.bf16.mxu0 0
  %1176 = vmatpush1.bf16.msra.mxu0 0
  %1177 = vmatprep.mubr.bf16.mxu0 0
  %1178 = vmatmul.mubr.bf16.gmra.mrb[0].mxu0 %v1143
  %v1179 = vpop.f32.mrb[0].mxu0
  %v1180 = vadd.f32 %v1125, %v1179
  %v1181 = vpop.f32.mrb[0].mxu0
  %v1182 = vpop.f32.mrb[0].mxu0
  %v1183 = vadd.f32 %v1125, %v1182
  %v1184 = vpop.f32.mrb[0].mxu0
  %1185 = vdwg.mxu0
  %v1186 = vadd.f32 %v27, %v1180
  %v1187 = vadd.f32 %v28, %v1183
  %v1188 = vld [vmem:[%s6 + $0x2] sm:$0x1]
  %v1189 = vld [vmem:[%s6 + $0x3] sm:$0x1]
  %v1190 = vsel %vm56, %v1186, 0.0
  %1191 = vadd.xlane.f32.xlu0 %v1190
  %v1192 = vpop.xlane.xlu0 %1191
  %v1193 = vsel %vm56, %v1187, 0.0
  %1194 = vadd.xlane.f32.xlu0 %v1193
  %v1195 = vpop.xlane.xlu0 %1194
  %v1196 = vrcp.pop 32.0
  %v1197 = vmul.f32 %v1192, %v1196
  %v1198 = vmul.f32 %v1195, %v1196
  %v1199 = vsub.f32 %v1186, %v1197
  %v1200 = vsub.f32 %v1187, %v1198
  %v1201 = vmul.f32 %v1199, %v1199
  %v1202 = vmul.f32 %v1200, %v1200
  %v1203 = vsel %vm56, %v1201, 0.0
  %1204 = vadd.xlane.f32.xlu0 %v1203
  %v1205 = vpop.xlane.xlu0 %1204
  %v1206 = vsel %vm56, %v1202, 0.0
  %1207 = vadd.xlane.f32.xlu0 %v1206
  %v1208 = vpop.xlane.xlu0 %1207
  %v1209 = vmul.f32 %v1205, %v1196
  %v1210 = vmul.f32 %v1208, %v1196
  %v1211 = vadd.f32 %v1209, 1e-05
  %v1212 = vadd.f32 %v1210, 1e-05
  %v1213 = vrsqrt.pop %v1211
  %v1214 = vrsqrt.pop %v1212
  %v1215 = vmul.f32 %v1199, %v1213
  %v1216 = vmul.f32 %v1200, %v1214
  %v1217 = vlaneseq
  %v1218 = vshrl.u32 %v1217, 7
  %v1219 = vsub.s32 0, %v1218
  %v1220 = vrot.slane %v1188, %v1219
  %v1221 = vmul.f32 %v1215, %v1220
  %v1222 = vmul.f32 %v1216, %v1220
  %v1223 = vlaneseq
  %v1224 = vshrl.u32 %v1223, 7
  %v1225 = vsub.s32 0, %v1224
  %v1226 = vrot.slane %v1189, %v1225
  %v1227 = vadd.f32 %v1221, %v1226
  %v1228 = vadd.f32 %v1222, %v1226
  %v1229 = vld [vmem:[%s4 + $0x4] sm:$0xf]
  %v1230 = vld [vmem:[%s4 + $0x18] sm:$0xf]
  %v1231 = vld [vmem:[%s4 + $0x2c] sm:$0xf]
  %v1232 = vld [vmem:[%s4 + $0x40] sm:$0xf]
  %v1233 = vpack.c.bf16 %v1228, %v1227
  %v1234 = vld [vmem:[%s4 + $0x4] sm:$0xff]
  %v1235 = vld [vmem:[%s4 + $0x18] sm:$0xff]
  %v1236 = vld [vmem:[%s4 + $0x2c] sm:$0xff]
  %v1237 = vld [vmem:[%s4 + $0x40] sm:$0xff]
  %v1242 = vunpack.c.l.b16 %v1234
  %v1243 = vunpack.c.h.b16 %v1234
  %v1244 = vunpack.c.l.b16 %v1235
  %v1245 = vunpack.c.h.b16 %v1235
  %v1246 = vunpack.c.l.b16 %v1236
  %v1247 = vunpack.c.h.b16 %v1236
  %v1248 = vunpack.c.l.b16 %v1237
  %v1249 = vunpack.c.h.b16 %v1237
  %v1250 = vpack.c.b16 %v1244, %v1242
  %v1251 = vpack.c.b16 %v1245, %v1243
  %v1252 = vpack.c.b16 %v1248, %v1246
  %v1253 = vpack.c.b16 %v1249, %v1247
  %1254 = vrot.lane.b32.xlu0 %v1250, 32
  %v1255 = vpop.permute.xlu0 %1254
  %1256 = vrot.lane.b32.xlu0 %v1251, 32
  %v1257 = vpop.permute.xlu0 %1256
  %1258 = vrot.lane.b32.xlu0 %v1252, 32
  %v1259 = vpop.permute.xlu0 %1258
  %1260 = vrot.lane.b32.xlu0 %v1253, 32
  %v1261 = vpop.permute.xlu0 %1260
  %v1262 = vsel %vm130, %v1255, %v1257
  %v1263 = vsel %vm130, %v1259, %v1261
  %1266 = vmatprep.subr.bf16.mxu0 0
  %1267 = vmatpush1.bf16.msra.mxu0 %v1262
  %1268 = vmatprep.subr.bf16.mxu0 0
  %1269 = vmatpush1.bf16.msra.mxu0 %v1263
  %1270 = vmatprep.subr.bf16.mxu0 0
  %1271 = vmatpush1.bf16.msra.mxu0 0
  %1272 = vmatprep.subr.bf16.mxu0 0
  %1273 = vmatpush1.bf16.msra.mxu0 0
  %1274 = vmatprep.subr.bf16.mxu0 0
  %1275 = vmatpush1.bf16.msra.mxu0 0
  %1276 = vmatprep.subr.bf16.mxu0 0
  %1277 = vmatpush1.bf16.msra.mxu0 0
  %1278 = vmatprep.subr.bf16.mxu0 0
  %1279 = vmatpush1.bf16.msra.mxu0 0
  %1280 = vmatprep.subr.bf16.mxu0 0
  %1281 = vmatpush1.bf16.msra.mxu0 0
  %1282 = vmatprep.subr.bf16.mxu0 0
  %1283 = vmatpush1.bf16.msra.mxu0 0
  %1284 = vmatprep.subr.bf16.mxu0 0
  %1285 = vmatpush1.bf16.msra.mxu0 0
  %1286 = vmatprep.subr.bf16.mxu0 0
  %1287 = vmatpush1.bf16.msra.mxu0 0
  %1288 = vmatprep.subr.bf16.mxu0 0
  %1289 = vmatpush1.bf16.msra.mxu0 0
  %1290 = vmatprep.subr.bf16.mxu0 0
  %1291 = vmatpush1.bf16.msra.mxu0 0
  %1292 = vmatprep.subr.bf16.mxu0 0
  %1293 = vmatpush1.bf16.msra.mxu0 0
  %1294 = vmatprep.subr.bf16.mxu0 0
  %1295 = vmatpush1.bf16.msra.mxu0 0
  %1296 = vmatprep.subr.bf16.mxu0 0
  %1297 = vmatpush1.bf16.msra.mxu0 0
  %1298 = vmatprep.mubr.bf16.mxu0 0
  %1299 = vmatmul.mubr.bf16.gmra.mrb[0].mxu0 %v136
  %v1300 = vpop.f32.mrb[0].mxu0
  %v1301 = vadd.f32 0.0, %v1300
  %v1302 = vpop.f32.mrb[0].mxu0
  %v1303 = vpop.f32.mrb[0].mxu0
  %v1304 = vadd.f32 0.0, %v1303
  %v1305 = vpop.f32.mrb[0].mxu0
  %1306 = vdwg.mxu0
  %v1311 = vunpack.c.l.b16 %v1229
  %v1312 = vunpack.c.l.b16 %v1230
  %v1313 = vunpack.c.l.b16 %v1231
  %v1314 = vunpack.c.l.b16 %v1232
  %v1315 = vpack.c.b16 %v1312, %v1311
  %v1316 = vpack.c.b16 %v1314, %v1313
  %1317 = vrot.lane.b32.xlu0 %v1315, 96
  %v1318 = vpop.permute.xlu0 %1317
  %1319 = vrot.lane.b32.xlu0 %v1316, 96
  %v1320 = vpop.permute.xlu0 %1319
  %v1324 = vsel %vm56, %v1233, 0
  %1326 = vmatprep.subr.bf16.mxu0 0
  %1327 = vmatpush1.bf16.msra.mxu0 %v1318
  %1328 = vmatprep.subr.bf16.mxu0 0
  %1329 = vmatpush1.bf16.msra.mxu0 %v1320
  %1330 = vmatprep.subr.bf16.mxu0 0
  %1331 = vmatpush1.bf16.msra.mxu0 0
  %1332 = vmatprep.subr.bf16.mxu0 0
  %1333 = vmatpush1.bf16.msra.mxu0 0
  %1334 = vmatprep.subr.bf16.mxu0 0
  %1335 = vmatpush1.bf16.msra.mxu0 0
  %1336 = vmatprep.subr.bf16.mxu0 0
  %1337 = vmatpush1.bf16.msra.mxu0 0
  %1338 = vmatprep.subr.bf16.mxu0 0
  %1339 = vmatpush1.bf16.msra.mxu0 0
  %1340 = vmatprep.subr.bf16.mxu0 0
  %1341 = vmatpush1.bf16.msra.mxu0 0
  %1342 = vmatprep.subr.bf16.mxu0 0
  %1343 = vmatpush1.bf16.msra.mxu0 0
  %1344 = vmatprep.subr.bf16.mxu0 0
  %1345 = vmatpush1.bf16.msra.mxu0 0
  %1346 = vmatprep.subr.bf16.mxu0 0
  %1347 = vmatpush1.bf16.msra.mxu0 0
  %1348 = vmatprep.subr.bf16.mxu0 0
  %1349 = vmatpush1.bf16.msra.mxu0 0
  %1350 = vmatprep.subr.bf16.mxu0 0
  %1351 = vmatpush1.bf16.msra.mxu0 0
  %1352 = vmatprep.subr.bf16.mxu0 0
  %1353 = vmatpush1.bf16.msra.mxu0 0
  %1354 = vmatprep.subr.bf16.mxu0 0
  %1355 = vmatpush1.bf16.msra.mxu0 0
  %1356 = vmatprep.subr.bf16.mxu0 0
  %1357 = vmatpush1.bf16.msra.mxu0 0
  %1358 = vmatprep.mubr.bf16.mxu0 0
  %1359 = vmatmul.mubr.bf16.gmra.mrb[0].mxu0 %v1324
  %v1360 = vpop.f32.mrb[0].mxu0
  %v1361 = vadd.f32 %v1301, %v1360
  %v1362 = vpop.f32.mrb[0].mxu0
  %v1363 = vpop.f32.mrb[0].mxu0
  %v1364 = vadd.f32 %v1304, %v1363
  %v1365 = vpop.f32.mrb[0].mxu0
  %1366 = vdwg.mxu0
  %v1367 = vld [vmem:[%s6 + $0x4] sm:$0x1]
  %v1368 = vlaneseq
  %v1369 = vshrl.u32 %v1368, 7
  %v1370 = vsub.s32 0, %v1369
  %v1371 = vrot.slane %v1367, %v1370
  %v1372 = vadd.f32 %v1361, %v1371
  %v1373 = vadd.f32 %v1364, %v1371
  %v1374 = vld [vmem:[%s4 + $0x8] sm:$0xf]
  %v1375 = vld [vmem:[%s4 + $0x1c] sm:$0xf]
  %v1376 = vld [vmem:[%s4 + $0x30] sm:$0xf]
  %v1377 = vld [vmem:[%s4 + $0x44] sm:$0xf]
  %v1378 = vpack.c.bf16 %v32, %v31
  %v1379 = vpack.c.bf16 %v34, %v33
  %v1384 = vunpack.c.l.b16 %v1374
  %v1385 = vunpack.c.l.b16 %v1375
  %v1386 = vunpack.c.l.b16 %v1376
  %v1387 = vunpack.c.l.b16 %v1377
  %v1388 = vpack.c.b16 %v1385, %v1384
  %v1389 = vpack.c.b16 %v1387, %v1386
  %1390 = vrot.lane.b32.xlu0 %v1388, 96
  %v1391 = vpop.permute.xlu0 %1390
  %1392 = vrot.lane.b32.xlu0 %v1389, 96
  %v1393 = vpop.permute.xlu0 %1392
  %v1397 = vsel %vm56, %v1378, 0
  %v1400 = vsel %vm56, %v1379, 0
  %1402 = vmatprep.subr.bf16.mxu0 0
  %1403 = vmatpush1.bf16.msra.mxu0 %v1391
  %1404 = vmatprep.subr.bf16.mxu0 0
  %1405 = vmatpush1.bf16.msra.mxu0 %v1393
  %1406 = vmatprep.subr.bf16.mxu0 0
  %1407 = vmatpush1.bf16.msra.mxu0 0
  %1408 = vmatprep.subr.bf16.mxu0 0
  %1409 = vmatpush1.bf16.msra.mxu0 0
  %1410 = vmatprep.subr.bf16.mxu0 0
  %1411 = vmatpush1.bf16.msra.mxu0 0
  %1412 = vmatprep.subr.bf16.mxu0 0
  %1413 = vmatpush1.bf16.msra.mxu0 0
  %1414 = vmatprep.subr.bf16.mxu0 0
  %1415 = vmatpush1.bf16.msra.mxu0 0
  %1416 = vmatprep.subr.bf16.mxu0 0
  %1417 = vmatpush1.bf16.msra.mxu0 0
  %1418 = vmatprep.subr.bf16.mxu0 0
  %1419 = vmatpush1.bf16.msra.mxu0 0
  %1420 = vmatprep.subr.bf16.mxu0 0
  %1421 = vmatpush1.bf16.msra.mxu0 0
  %1422 = vmatprep.subr.bf16.mxu0 0
  %1423 = vmatpush1.bf16.msra.mxu0 0
  %1424 = vmatprep.subr.bf16.mxu0 0
  %1425 = vmatpush1.bf16.msra.mxu0 0
  %1426 = vmatprep.subr.bf16.mxu0 0
  %1427 = vmatpush1.bf16.msra.mxu0 0
  %1428 = vmatprep.subr.bf16.mxu0 0
  %1429 = vmatpush1.bf16.msra.mxu0 0
  %1430 = vmatprep.subr.bf16.mxu0 0
  %1431 = vmatpush1.bf16.msra.mxu0 0
  %1432 = vmatprep.subr.bf16.mxu0 0
  %1433 = vmatpush1.bf16.msra.mxu0 0
  %1434 = vmatprep.mubr.bf16.mxu0 0
  %1435 = vmatmul.mubr.bf16.gmra.mrb[0].mxu0 %v1397
  %v1436 = vpop.f32.mrb[0].mxu0
  %v1437 = vadd.f32 0.0, %v1436
  %v1438 = vpop.f32.mrb[0].mxu0
  %v1439 = vpop.f32.mrb[0].mxu0
  %v1440 = vadd.f32 0.0, %v1439
  %v1441 = vpop.f32.mrb[0].mxu0
  %1442 = vmatprep.mubr.bf16.mxu0 0
  %1443 = vmatmul.mubr.bf16.gmra.mrb[0].mxu0 %v1400
  %v1444 = vpop.f32.mrb[0].mxu0
  %v1445 = vadd.f32 0.0, %v1444
  %v1446 = vpop.f32.mrb[0].mxu0
  %v1447 = vpop.f32.mrb[0].mxu0
  %v1448 = vadd.f32 0.0, %v1447
  %v1449 = vpop.f32.mrb[0].mxu0
  %1450 = vdwg.mxu0
  %v1451 = vpack.c.bf16 %v36, %v35
  %v1452 = vpack.c.bf16 %v38, %v37
  %v1456 = vsel %vm56, %v1451, 0
  %v1459 = vsel %vm56, %v1452, 0
  %1461 = vmatprep.subr.bf16.mxu0 0
  %1462 = vmatpush1.bf16.msra.mxu0 %v1134
  %1463 = vmatprep.subr.bf16.mxu0 0
  %1464 = vmatpush1.bf16.msra.mxu0 %v1135
  %1465 = vmatprep.subr.bf16.mxu0 0
  %1466 = vmatpush1.bf16.msra.mxu0 0
  %1467 = vmatprep.subr.bf16.mxu0 0
  %1468 = vmatpush1.bf16.msra.mxu0 0
  %1469 = vmatprep.subr.bf16.mxu0 0
  %1470 = vmatpush1.bf16.msra.mxu0 0
  %1471 = vmatprep.subr.bf16.mxu0 0
  %1472 = vmatpush1.bf16.msra.mxu0 0
  %1473 = vmatprep.subr.bf16.mxu0 0
  %1474 = vmatpush1.bf16.msra.mxu0 0
  %1475 = vmatprep.subr.bf16.mxu0 0
  %1476 = vmatpush1.bf16.msra.mxu0 0
  %1477 = vmatprep.subr.bf16.mxu0 0
  %1478 = vmatpush1.bf16.msra.mxu0 0
  %1479 = vmatprep.subr.bf16.mxu0 0
  %1480 = vmatpush1.bf16.msra.mxu0 0
  %1481 = vmatprep.subr.bf16.mxu0 0
  %1482 = vmatpush1.bf16.msra.mxu0 0
  %1483 = vmatprep.subr.bf16.mxu0 0
  %1484 = vmatpush1.bf16.msra.mxu0 0
  %1485 = vmatprep.subr.bf16.mxu0 0
  %1486 = vmatpush1.bf16.msra.mxu0 0
  %1487 = vmatprep.subr.bf16.mxu0 0
  %1488 = vmatpush1.bf16.msra.mxu0 0
  %1489 = vmatprep.subr.bf16.mxu0 0
  %1490 = vmatpush1.bf16.msra.mxu0 0
  %1491 = vmatprep.subr.bf16.mxu0 0
  %1492 = vmatpush1.bf16.msra.mxu0 0
  %1493 = vmatprep.mubr.bf16.mxu0 0
  %1494 = vmatmul.mubr.bf16.gmra.mrb[0].mxu0 %v1456
  %v1495 = vpop.f32.mrb[0].mxu0
  %v1496 = vadd.f32 0.0, %v1495
  %v1497 = vpop.f32.mrb[0].mxu0
  %v1498 = vpop.f32.mrb[0].mxu0
  %v1499 = vadd.f32 0.0, %v1498
  %v1500 = vpop.f32.mrb[0].mxu0
  %1501 = vmatprep.mubr.bf16.mxu0 0
  %1502 = vmatmul.mubr.bf16.gmra.mrb[0].mxu0 %v1459
  %v1503 = vpop.f32.mrb[0].mxu0
  %v1504 = vadd.f32 0.0, %v1503
  %v1505 = vpop.f32.mrb[0].mxu0
  %v1506 = vpop.f32.mrb[0].mxu0
  %v1507 = vadd.f32 0.0, %v1506
  %v1508 = vpop.f32.mrb[0].mxu0
  %1509 = vdwg.mxu0
  %v1510 = vld [vmem:[%s6 + $0x5] sm:$0x1]
  %v1511 = vadd.f32 %v1437, %v1496
  %v1512 = vadd.f32 %v1440, %v1499
  %v1513 = vadd.f32 %v1445, %v1504
  %v1514 = vadd.f32 %v1448, %v1507
  %v1515 = vlaneseq
  %v1516 = vshrl.u32 %v1515, 7
  %v1517 = vsub.s32 0, %v1516
  %v1518 = vrot.slane %v1510, %v1517
  %v1519 = vadd.f32 %v1511, %v1518
  %v1520 = vadd.f32 %v1512, %v1518
  %v1521 = vadd.f32 %v1513, %v1518
  %v1522 = vadd.f32 %v1514, %v1518
  %v1523 = vadd.f32 %v1437, %v1518
  %v1524 = vadd.f32 %v1440, %v1518
  %v1525 = vadd.f32 %v1445, %v1518
  %v1526 = vadd.f32 %v1448, %v1518
  %v1527 = vpack.c.bf16 %v1373, %v1372
  %v1528 = vpack.c.bf16 %v1520, %v1519
  %v1529 = vpack.c.bf16 %v1522, %v1521
  %v1530 = vpack.c.bf16 %v1524, %v1523
  %v1531 = vpack.c.bf16 %v1526, %v1525
  %v1533 = vsel %vm651, %v1527, 0
  %v1536 = vsel %vm651, %v1528, 0
  %1538 = vmatprep.subr.bf16.mxu0 0
  %1539 = vmatpush1.bf16.xpose.msra.mxu0 %v1536
  %1540 = vmatprep.subr.bf16.mxu0 0
  %1541 = vmatpush1.bf16.xpose.msra.mxu0 0
  %1542 = vmatprep.subr.bf16.mxu0 0
  %1543 = vmatpush1.bf16.xpose.msra.mxu0 0
  %1544 = vmatprep.subr.bf16.mxu0 0
  %1545 = vmatpush1.bf16.xpose.msra.mxu0 0
  %1546 = vmatprep.subr.bf16.mxu0 0
  %1547 = vmatpush1.bf16.xpose.msra.mxu0 0
  %1548 = vmatprep.subr.bf16.mxu0 0
  %1549 = vmatpush1.bf16.xpose.msra.mxu0 0
  %1550 = vmatprep.subr.bf16.mxu0 0
  %1551 = vmatpush1.bf16.xpose.msra.mxu0 0
  %1552 = vmatprep.subr.bf16.mxu0 0
  %1553 = vmatpush1.bf16.xpose.msra.mxu0 0
  %1554 = vmatprep.subr.bf16.mxu0 0
  %1555 = vmatpush1.bf16.xpose.msra.mxu0 0
  %1556 = vmatprep.subr.bf16.mxu0 0
  %1557 = vmatpush1.bf16.xpose.msra.mxu0 0
  %1558 = vmatprep.subr.bf16.mxu0 0
  %1559 = vmatpush1.bf16.xpose.msra.mxu0 0
  %1560 = vmatprep.subr.bf16.mxu0 0
  %1561 = vmatpush1.bf16.xpose.msra.mxu0 0
  %1562 = vmatprep.subr.bf16.mxu0 0
  %1563 = vmatpush1.bf16.xpose.msra.mxu0 0
  %1564 = vmatprep.subr.bf16.mxu0 0
  %1565 = vmatpush1.bf16.xpose.msra.mxu0 0
  %1566 = vmatprep.subr.bf16.mxu0 0
  %1567 = vmatpush1.bf16.xpose.msra.mxu0 0
  %1568 = vmatprep.subr.bf16.mxu0 0
  %1569 = vmatpush1.bf16.xpose.msra.mxu0 0
  %1570 = vmatprep.mubr.bf16.mxu0 0
  %1571 = vmatmul.mubr.bf16.gmra.mrb[0].mxu0 %v1533
  %v1572 = vpop.f32.mrb[0].mxu0
  %v1573 = vadd.f32 0.0, %v1572
  %v1574 = vpop.f32.mrb[0].mxu0
  %v1575 = vpop.f32.mrb[0].mxu0
  %v1576 = vpop.f32.mrb[0].mxu0
  %1577 = vdwg.mxu0
  %v1578 = vsel %vm651, %v1573, -inf
  %1579 = vmax.xlane.f32.xlu0 %v1578
  %v1580 = vpop.xlane.xlu0 %1579
  %v1581 = vsub.f32 %v1573, %v1580
  %v1582 = vmul.f32 %v1581, 1.442695
  %v1583 = vpow.pop %v1582
  %v1584 = vsel %vm651, %v1583, 0.0
  %1585 = vadd.xlane.f32.xlu0 %v1584
  %v1586 = vpop.xlane.xlu0 %1585
  %v1587 = vrcp.pop %v1586
  %v1588 = vmul.f32 %v1583, %v1587
  %v1589 = vadd.f32 %v1588, 0.0
  %v1590 = vpack.c.bf16 %v1588, %v1588
  %1592 = vrot.lane.b32.xlu0 %v1530, 64
  %v1593 = vpop.permute.xlu0 %1592
  %v1596 = vsel %vm651, %v1590, 0
  %1598 = vmatprep.subr.bf16.mxu0 0
  %1599 = vmatpush1.bf16.msra.mxu0 %v1593
  %1600 = vmatprep.subr.bf16.mxu0 0
  %1601 = vmatpush1.bf16.msra.mxu0 0
  %1602 = vmatprep.subr.bf16.mxu0 0
  %1603 = vmatpush1.bf16.msra.mxu0 0
  %1604 = vmatprep.subr.bf16.mxu0 0
  %1605 = vmatpush1.bf16.msra.mxu0 0
  %1606 = vmatprep.subr.bf16.mxu0 0
  %1607 = vmatpush1.bf16.msra.mxu0 0
  %1608 = vmatprep.subr.bf16.mxu0 0
  %1609 = vmatpush1.bf16.msra.mxu0 0
  %1610 = vmatprep.subr.bf16.mxu0 0
  %1611 = vmatpush1.bf16.msra.mxu0 0
  %1612 = vmatprep.subr.bf16.mxu0 0
  %1613 = vmatpush1.bf16.msra.mxu0 0
  %1614 = vmatprep.subr.bf16.mxu0 0
  %1615 = vmatpush1.bf16.msra.mxu0 0
  %1616 = vmatprep.subr.bf16.mxu0 0
  %1617 = vmatpush1.bf16.msra.mxu0 0
  %1618 = vmatprep.subr.bf16.mxu0 0
  %1619 = vmatpush1.bf16.msra.mxu0 0
  %1620 = vmatprep.subr.bf16.mxu0 0
  %1621 = vmatpush1.bf16.msra.mxu0 0
  %1622 = vmatprep.subr.bf16.mxu0 0
  %1623 = vmatpush1.bf16.msra.mxu0 0
  %1624 = vmatprep.subr.bf16.mxu0 0
  %1625 = vmatpush1.bf16.msra.mxu0 0
  %1626 = vmatprep.subr.bf16.mxu0 0
  %1627 = vmatpush1.bf16.msra.mxu0 0
  %1628 = vmatprep.subr.bf16.mxu0 0
  %1629 = vmatpush1.bf16.msra.mxu0 0
  %1630 = vmatprep.mubr.bf16.mxu0 0
  %1631 = vmatmul.mubr.bf16.gmra.mrb[0].mxu0 %v1596
  %v1632 = vpop.f32.mrb[0].mxu0
  %v1633 = vadd.f32 0.0, %v1632
  %v1634 = vpop.f32.mrb[0].mxu0
  %v1635 = vpop.f32.mrb[0].mxu0
  %v1636 = vpop.f32.mrb[0].mxu0
  %1637 = vdwg.mxu0
  %1639 = vrot.lane.b32.xlu0 %v1527, 112
  %v1640 = vpop.permute.xlu0 %1639
  %1642 = vrot.lane.b32.xlu0 %v1528, 112
  %v1643 = vpop.permute.xlu0 %1642
  %v1645 = vsel %vm651, %v1640, 0
  %v1648 = vsel %vm651, %v1643, 0
  %1650 = vmatprep.subr.bf16.mxu0 0
  %1651 = vmatpush1.bf16.xpose.msra.mxu0 %v1648
  %1652 = vmatprep.subr.bf16.mxu0 0
  %1653 = vmatpush1.bf16.xpose.msra.mxu0 0
  %1654 = vmatprep.subr.bf16.mxu0 0
  %1655 = vmatpush1.bf16.xpose.msra.mxu0 0
  %1656 = vmatprep.subr.bf16.mxu0 0
  %1657 = vmatpush1.bf16.xpose.msra.mxu0 0
  %1658 = vmatprep.subr.bf16.mxu0 0
  %1659 = vmatpush1.bf16.xpose.msra.mxu0 0
  %1660 = vmatprep.subr.bf16.mxu0 0
  %1661 = vmatpush1.bf16.xpose.msra.mxu0 0
  %1662 = vmatprep.subr.bf16.mxu0 0
  %1663 = vmatpush1.bf16.xpose.msra.mxu0 0
  %1664 = vmatprep.subr.bf16.mxu0 0
  %1665 = vmatpush1.bf16.xpose.msra.mxu0 0
  %1666 = vmatprep.subr.bf16.mxu0 0
  %1667 = vmatpush1.bf16.xpose.msra.mxu0 0
  %1668 = vmatprep.subr.bf16.mxu0 0
  %1669 = vmatpush1.bf16.xpose.msra.mxu0 0
  %1670 = vmatprep.subr.bf16.mxu0 0
  %1671 = vmatpush1.bf16.xpose.msra.mxu0 0
  %1672 = vmatprep.subr.bf16.mxu0 0
  %1673 = vmatpush1.bf16.xpose.msra.mxu0 0
  %1674 = vmatprep.subr.bf16.mxu0 0
  %1675 = vmatpush1.bf16.xpose.msra.mxu0 0
  %1676 = vmatprep.subr.bf16.mxu0 0
  %1677 = vmatpush1.bf16.xpose.msra.mxu0 0
  %1678 = vmatprep.subr.bf16.mxu0 0
  %1679 = vmatpush1.bf16.xpose.msra.mxu0 0
  %1680 = vmatprep.subr.bf16.mxu0 0
  %1681 = vmatpush1.bf16.xpose.msra.mxu0 0
  %1682 = vmatprep.mubr.bf16.mxu0 0
  %1683 = vmatmul.mubr.bf16.gmra.mrb[0].mxu0 %v1645
  %v1684 = vpop.f32.mrb[0].mxu0
  %v1685 = vadd.f32 0.0, %v1684
  %v1686 = vpop.f32.mrb[0].mxu0
  %v1687 = vpop.f32.mrb[0].mxu0
  %v1688 = vpop.f32.mrb[0].mxu0
  %1689 = vdwg.mxu0
  %v1690 = vsel %vm651, %v1685, -inf
  %1691 = vmax.xlane.f32.xlu0 %v1690
  %v1692 = vpop.xlane.xlu0 %1691
  %v1693 = vsub.f32 %v1685, %v1692
  %v1694 = vmul.f32 %v1693, 1.442695
  %v1695 = vpow.pop %v1694
  %v1696 = vsel %vm651, %v1695, 0.0
  %1697 = vadd.xlane.f32.xlu0 %v1696
  %v1698 = vpop.xlane.xlu0 %1697
  %v1699 = vrcp.pop %v1698
  %v1700 = vmul.f32 %v1695, %v1699
  %v1701 = vadd.f32 %v1589, %v1700
  %v1702 = vpack.c.bf16 %v1700, %v1700
  %1703 = vrot.lane.b32.xlu0 %v1530, 56
  %v1704 = vpop.permute.xlu0 %1703
  %v1707 = vsel %vm651, %v1702, 0
  %1709 = vmatprep.subr.bf16.mxu0 0
  %1710 = vmatpush1.bf16.msra.mxu0 %v1704
  %1711 = vmatprep.subr.bf16.mxu0 0
  %1712 = vmatpush1.bf16.msra.mxu0 0
  %1713 = vmatprep.subr.bf16.mxu0 0
  %1714 = vmatpush1.bf16.msra.mxu0 0
  %1715 = vmatprep.subr.bf16.mxu0 0
  %1716 = vmatpush1.bf16.msra.mxu0 0
  %1717 = vmatprep.subr.bf16.mxu0 0
  %1718 = vmatpush1.bf16.msra.mxu0 0
  %1719 = vmatprep.subr.bf16.mxu0 0
  %1720 = vmatpush1.bf16.msra.mxu0 0
  %1721 = vmatprep.subr.bf16.mxu0 0
  %1722 = vmatpush1.bf16.msra.mxu0 0
  %1723 = vmatprep.subr.bf16.mxu0 0
  %1724 = vmatpush1.bf16.msra.mxu0 0
  %1725 = vmatprep.subr.bf16.mxu0 0
  %1726 = vmatpush1.bf16.msra.mxu0 0
  %1727 = vmatprep.subr.bf16.mxu0 0
  %1728 = vmatpush1.bf16.msra.mxu0 0
  %1729 = vmatprep.subr.bf16.mxu0 0
  %1730 = vmatpush1.bf16.msra.mxu0 0
  %1731 = vmatprep.subr.bf16.mxu0 0
  %1732 = vmatpush1.bf16.msra.mxu0 0
  %1733 = vmatprep.subr.bf16.mxu0 0
  %1734 = vmatpush1.bf16.msra.mxu0 0
  %1735 = vmatprep.subr.bf16.mxu0 0
  %1736 = vmatpush1.bf16.msra.mxu0 0
  %1737 = vmatprep.subr.bf16.mxu0 0
  %1738 = vmatpush1.bf16.msra.mxu0 0
  %1739 = vmatprep.subr.bf16.mxu0 0
  %1740 = vmatpush1.bf16.msra.mxu0 0
  %1741 = vmatprep.mubr.bf16.mxu0 0
  %1742 = vmatmul.mubr.bf16.gmra.mrb[0].mxu0 %v1707
  %v1743 = vpop.f32.mrb[0].mxu0
  %v1744 = vadd.f32 0.0, %v1743
  %v1745 = vpop.f32.mrb[0].mxu0
  %v1746 = vpop.f32.mrb[0].mxu0
  %v1747 = vpop.f32.mrb[0].mxu0
  %1748 = vdwg.mxu0
  %1749 = vrot.lane.b32.xlu0 %v1527, 96
  %v1750 = vpop.permute.xlu0 %1749
  %1751 = vrot.lane.b32.xlu0 %v1528, 96
  %v1752 = vpop.permute.xlu0 %1751
  %v1754 = vsel %vm651, %v1750, 0
  %v1757 = vsel %vm651, %v1752, 0
  %1759 = vmatprep.subr.bf16.mxu0 0
  %1760 = vmatpush1.bf16.xpose.msra.mxu0 %v1757
  %1761 = vmatprep.subr.bf16.mxu0 0
  %1762 = vmatpush1.bf16.xpose.msra.mxu0 0
  %1763 = vmatprep.subr.bf16.mxu0 0
  %1764 = vmatpush1.bf16.xpose.msra.mxu0 0
  %1765 = vmatprep.subr.bf16.mxu0 0
  %1766 = vmatpush1.bf16.xpose.msra.mxu0 0
  %1767 = vmatprep.subr.bf16.mxu0 0
  %1768 = vmatpush1.bf16.xpose.msra.mxu0 0
  %1769 = vmatprep.subr.bf16.mxu0 0
  %1770 = vmatpush1.bf16.xpose.msra.mxu0 0
  %1771 = vmatprep.subr.bf16.mxu0 0
  %1772 = vmatpush1.bf16.xpose.msra.mxu0 0
  %1773 = vmatprep.subr.bf16.mxu0 0
  %1774 = vmatpush1.bf16.xpose.msra.mxu0 0
  %1775 = vmatprep.subr.bf16.mxu0 0
  %1776 = vmatpush1.bf16.xpose.msra.mxu0 0
  %1777 = vmatprep.subr.bf16.mxu0 0
  %1778 = vmatpush1.bf16.xpose.msra.mxu0 0
  %1779 = vmatprep.subr.bf16.mxu0 0
  %1780 = vmatpush1.bf16.xpose.msra.mxu0 0
  %1781 = vmatprep.subr.bf16.mxu0 0
  %1782 = vmatpush1.bf16.xpose.msra.mxu0 0
  %1783 = vmatprep.subr.bf16.mxu0 0
  %1784 = vmatpush1.bf16.xpose.msra.mxu0 0
  %1785 = vmatprep.subr.bf16.mxu0 0
  %1786 = vmatpush1.bf16.xpose.msra.mxu0 0
  %1787 = vmatprep.subr.bf16.mxu0 0
  %1788 = vmatpush1.bf16.xpose.msra.mxu0 0
  %1789 = vmatprep.subr.bf16.mxu0 0
  %1790 = vmatpush1.bf16.xpose.msra.mxu0 0
  %1791 = vmatprep.mubr.bf16.mxu0 0
  %1792 = vmatmul.mubr.bf16.gmra.mrb[0].mxu0 %v1754
  %v1793 = vpop.f32.mrb[0].mxu0
  %v1794 = vadd.f32 0.0, %v1793
  %v1795 = vpop.f32.mrb[0].mxu0
  %v1796 = vpop.f32.mrb[0].mxu0
  %v1797 = vpop.f32.mrb[0].mxu0
  %1798 = vdwg.mxu0
  %v1799 = vsel %vm651, %v1794, -inf
  %1800 = vmax.xlane.f32.xlu0 %v1799
  %v1801 = vpop.xlane.xlu0 %1800
  %v1802 = vsub.f32 %v1794, %v1801
  %v1803 = vmul.f32 %v1802, 1.442695
  %v1804 = vpow.pop %v1803
  %v1805 = vsel %vm651, %v1804, 0.0
  %1806 = vadd.xlane.f32.xlu0 %v1805
  %v1807 = vpop.xlane.xlu0 %1806
  %v1808 = vrcp.pop %v1807
  %v1809 = vmul.f32 %v1804, %v1808
  %v1810 = vadd.f32 %v1701, %v1809
  %v1811 = vpack.c.bf16 %v1809, %v1809
  %1812 = vrot.lane.b32.xlu0 %v1530, 48
  %v1813 = vpop.permute.xlu0 %1812
  %v1816 = vsel %vm651, %v1811, 0
  %1818 = vmatprep.subr.bf16.mxu0 0
  %1819 = vmatpush1.bf16.msra.mxu0 %v1813
  %1820 = vmatprep.subr.bf16.mxu0 0
  %1821 = vmatpush1.bf16.msra.mxu0 0
  %1822 = vmatprep.subr.bf16.mxu0 0
  %1823 = vmatpush1.bf16.msra.mxu0 0
  %1824 = vmatprep.subr.bf16.mxu0 0
  %1825 = vmatpush1.bf16.msra.mxu0 0
  %1826 = vmatprep.subr.bf16.mxu0 0
  %1827 = vmatpush1.bf16.msra.mxu0 0
  %1828 = vmatprep.subr.bf16.mxu0 0
  %1829 = vmatpush1.bf16.msra.mxu0 0
  %1830 = vmatprep.subr.bf16.mxu0 0
  %1831 = vmatpush1.bf16.msra.mxu0 0
  %1832 = vmatprep.subr.bf16.mxu0 0
  %1833 = vmatpush1.bf16.msra.mxu0 0
  %1834 = vmatprep.subr.bf16.mxu0 0
  %1835 = vmatpush1.bf16.msra.mxu0 0
  %1836 = vmatprep.subr.bf16.mxu0 0
  %1837 = vmatpush1.bf16.msra.mxu0 0
  %1838 = vmatprep.subr.bf16.mxu0 0
  %1839 = vmatpush1.bf16.msra.mxu0 0
  %1840 = vmatprep.subr.bf16.mxu0 0
  %1841 = vmatpush1.bf16.msra.mxu0 0
  %1842 = vmatprep.subr.bf16.mxu0 0
  %1843 = vmatpush1.bf16.msra.mxu0 0
  %1844 = vmatprep.subr.bf16.mxu0 0
  %1845 = vmatpush1.bf16.msra.mxu0 0
  %1846 = vmatprep.subr.bf16.mxu0 0
  %1847 = vmatpush1.bf16.msra.mxu0 0
  %1848 = vmatprep.subr.bf16.mxu0 0
  %1849 = vmatpush1.bf16.msra.mxu0 0
  %1850 = vmatprep.mubr.bf16.mxu0 0
  %1851 = vmatmul.mubr.bf16.gmra.mrb[0].mxu0 %v1816
  %v1852 = vpop.f32.mrb[0].mxu0
  %v1853 = vadd.f32 0.0, %v1852
  %v1854 = vpop.f32.mrb[0].mxu0
  %v1855 = vpop.f32.mrb[0].mxu0
  %v1856 = vpop.f32.mrb[0].mxu0
  %1857 = vdwg.mxu0
  %1858 = vrot.lane.b32.xlu0 %v1527, 80
  %v1859 = vpop.permute.xlu0 %1858
  %1860 = vrot.lane.b32.xlu0 %v1528, 80
  %v1861 = vpop.permute.xlu0 %1860
  %v1863 = vsel %vm651, %v1859, 0
  %v1866 = vsel %vm651, %v1861, 0
  %1868 = vmatprep.subr.bf16.mxu0 0
  %1869 = vmatpush1.bf16.xpose.msra.mxu0 %v1866
  %1870 = vmatprep.subr.bf16.mxu0 0
  %1871 = vmatpush1.bf16.xpose.msra.mxu0 0
  %1872 = vmatprep.subr.bf16.mxu0 0
  %1873 = vmatpush1.bf16.xpose.msra.mxu0 0
  %1874 = vmatprep.subr.bf16.mxu0 0
  %1875 = vmatpush1.bf16.xpose.msra.mxu0 0
  %1876 = vmatprep.subr.bf16.mxu0 0
  %1877 = vmatpush1.bf16.xpose.msra.mxu0 0
  %1878 = vmatprep.subr.bf16.mxu0 0
  %1879 = vmatpush1.bf16.xpose.msra.mxu0 0
  %1880 = vmatprep.subr.bf16.mxu0 0
  %1881 = vmatpush1.bf16.xpose.msra.mxu0 0
  %1882 = vmatprep.subr.bf16.mxu0 0
  %1883 = vmatpush1.bf16.xpose.msra.mxu0 0
  %1884 = vmatprep.subr.bf16.mxu0 0
  %1885 = vmatpush1.bf16.xpose.msra.mxu0 0
  %1886 = vmatprep.subr.bf16.mxu0 0
  %1887 = vmatpush1.bf16.xpose.msra.mxu0 0
  %1888 = vmatprep.subr.bf16.mxu0 0
  %1889 = vmatpush1.bf16.xpose.msra.mxu0 0
  %1890 = vmatprep.subr.bf16.mxu0 0
  %1891 = vmatpush1.bf16.xpose.msra.mxu0 0
  %1892 = vmatprep.subr.bf16.mxu0 0
  %1893 = vmatpush1.bf16.xpose.msra.mxu0 0
  %1894 = vmatprep.subr.bf16.mxu0 0
  %1895 = vmatpush1.bf16.xpose.msra.mxu0 0
  %1896 = vmatprep.subr.bf16.mxu0 0
  %1897 = vmatpush1.bf16.xpose.msra.mxu0 0
  %1898 = vmatprep.subr.bf16.mxu0 0
  %1899 = vmatpush1.bf16.xpose.msra.mxu0 0
  %1900 = vmatprep.mubr.bf16.mxu0 0
  %1901 = vmatmul.mubr.bf16.gmra.mrb[0].mxu0 %v1863
  %v1902 = vpop.f32.mrb[0].mxu0
  %v1903 = vadd.f32 0.0, %v1902
  %v1904 = vpop.f32.mrb[0].mxu0
  %v1905 = vpop.f32.mrb[0].mxu0
  %v1906 = vpop.f32.mrb[0].mxu0
  %1907 = vdwg.mxu0
  %v1908 = vsel %vm651, %v1903, -inf
  %1909 = vmax.xlane.f32.xlu0 %v1908
  %v1910 = vpop.xlane.xlu0 %1909
  %v1911 = vsub.f32 %v1903, %v1910
  %v1912 = vmul.f32 %v1911, 1.442695
  %v1913 = vpow.pop %v1912
  %v1914 = vsel %vm651, %v1913, 0.0
  %1915 = vadd.xlane.f32.xlu0 %v1914
  %v1916 = vpop.xlane.xlu0 %1915
  %v1917 = vrcp.pop %v1916
  %v1918 = vmul.f32 %v1913, %v1917
  %v1919 = vadd.f32 %v1810, %v1918
  %v1920 = vpack.c.bf16 %v1918, %v1918
  %1921 = vrot.lane.b32.xlu0 %v1530, 40
  %v1922 = vpop.permute.xlu0 %1921
  %v1925 = vsel %vm651, %v1920, 0
  %1927 = vmatprep.subr.bf16.mxu0 0
  %1928 = vmatpush1.bf16.msra.mxu0 %v1922
  %1929 = vmatprep.subr.bf16.mxu0 0
  %1930 = vmatpush1.bf16.msra.mxu0 0
  %1931 = vmatprep.subr.bf16.mxu0 0
  %1932 = vmatpush1.bf16.msra.mxu0 0
  %1933 = vmatprep.subr.bf16.mxu0 0
  %1934 = vmatpush1.bf16.msra.mxu0 0
  %1935 = vmatprep.subr.bf16.mxu0 0
  %1936 = vmatpush1.bf16.msra.mxu0 0
  %1937 = vmatprep.subr.bf16.mxu0 0
  %1938 = vmatpush1.bf16.msra.mxu0 0
  %1939 = vmatprep.subr.bf16.mxu0 0
  %1940 = vmatpush1.bf16.msra.mxu0 0
  %1941 = vmatprep.subr.bf16.mxu0 0
  %1942 = vmatpush1.bf16.msra.mxu0 0
  %1943 = vmatprep.subr.bf16.mxu0 0
  %1944 = vmatpush1.bf16.msra.mxu0 0
  %1945 = vmatprep.subr.bf16.mxu0 0
  %1946 = vmatpush1.bf16.msra.mxu0 0
  %1947 = vmatprep.subr.bf16.mxu0 0
  %1948 = vmatpush1.bf16.msra.mxu0 0
  %1949 = vmatprep.subr.bf16.mxu0 0
  %1950 = vmatpush1.bf16.msra.mxu0 0
  %1951 = vmatprep.subr.bf16.mxu0 0
  %1952 = vmatpush1.bf16.msra.mxu0 0
  %1953 = vmatprep.subr.bf16.mxu0 0
  %1954 = vmatpush1.bf16.msra.mxu0 0
  %1955 = vmatprep.subr.bf16.mxu0 0
  %1956 = vmatpush1.bf16.msra.mxu0 0
  %1957 = vmatprep.subr.bf16.mxu0 0
  %1958 = vmatpush1.bf16.msra.mxu0 0
  %1959 = vmatprep.mubr.bf16.mxu0 0
  %1960 = vmatmul.mubr.bf16.gmra.mrb[0].mxu0 %v1925
  %v1961 = vpop.f32.mrb[0].mxu0
  %v1962 = vadd.f32 0.0, %v1961
  %v1963 = vpop.f32.mrb[0].mxu0
  %v1964 = vpop.f32.mrb[0].mxu0
  %v1965 = vpop.f32.mrb[0].mxu0
  %1966 = vdwg.mxu0
  %1968 = vrot.lane.b32.xlu0 %v1744, 8
  %v1969 = vpop.permute.xlu0 %1968
  %1972 = vrot.lane.b32.xlu0 %v1853, 16
  %v1973 = vpop.permute.xlu0 %1972
  %1976 = vrot.lane.b32.xlu0 %v1962, 24
  %v1977 = vpop.permute.xlu0 %1976
  %v1979 = vsel %vm195, %v1633, %v1969
  %v1980 = vsel %vm651, %v1979, %v1973
  %v1981 = vsel %vm653, %v1980, %v1977
  %v1982 = vmul.f32 %v1919, 0.25
  %v1983 = vrot.slane %v1527, 4
  %v1985 = vsel %vm651, %v1983, 0
  %v1988 = vsel %vm651, %v1529, 0
  %1990 = vmatprep.subr.bf16.mxu0 0
  %1991 = vmatpush1.bf16.xpose.msra.mxu0 %v1988
  %1992 = vmatprep.subr.bf16.mxu0 0
  %1993 = vmatpush1.bf16.xpose.msra.mxu0 0
  %1994 = vmatprep.subr.bf16.mxu0 0
  %1995 = vmatpush1.bf16.xpose.msra.mxu0 0
  %1996 = vmatprep.subr.bf16.mxu0 0
  %1997 = vmatpush1.bf16.xpose.msra.mxu0 0
  %1998 = vmatprep.subr.bf16.mxu0 0
  %1999 = vmatpush1.bf16.xpose.msra.mxu0 0
  %2000 = vmatprep.subr.bf16.mxu0 0
  %2001 = vmatpush1.bf16.xpose.msra.mxu0 0
  %2002 = vmatprep.subr.bf16.mxu0 0
  %2003 = vmatpush1.bf16.xpose.msra.mxu0 0
  %2004 = vmatprep.subr.bf16.mxu0 0
  %2005 = vmatpush1.bf16.xpose.msra.mxu0 0
  %2006 = vmatprep.subr.bf16.mxu0 0
  %2007 = vmatpush1.bf16.xpose.msra.mxu0 0
  %2008 = vmatprep.subr.bf16.mxu0 0
  %2009 = vmatpush1.bf16.xpose.msra.mxu0 0
  %2010 = vmatprep.subr.bf16.mxu0 0
  %2011 = vmatpush1.bf16.xpose.msra.mxu0 0
  %2012 = vmatprep.subr.bf16.mxu0 0
  %2013 = vmatpush1.bf16.xpose.msra.mxu0 0
  %2014 = vmatprep.subr.bf16.mxu0 0
  %2015 = vmatpush1.bf16.xpose.msra.mxu0 0
  %2016 = vmatprep.subr.bf16.mxu0 0
  %2017 = vmatpush1.bf16.xpose.msra.mxu0 0
  %2018 = vmatprep.subr.bf16.mxu0 0
  %2019 = vmatpush1.bf16.xpose.msra.mxu0 0
  %2020 = vmatprep.subr.bf16.mxu0 0
  %2021 = vmatpush1.bf16.xpose.msra.mxu0 0
  %2022 = vmatprep.mubr.bf16.mxu0 0
  %2023 = vmatmul.mubr.bf16.gmra.mrb[0].mxu0 %v1985
  %v2024 = vpop.f32.mrb[0].mxu0
  %v2025 = vadd.f32 0.0, %v2024
  %v2026 = vpop.f32.mrb[0].mxu0
  %v2027 = vpop.f32.mrb[0].mxu0
  %v2028 = vpop.f32.mrb[0].mxu0
  %2029 = vdwg.mxu0
  %v2030 = vsel %vm651, %v2025, -inf
  %2031 = vmax.xlane.f32.xlu0 %v2030
  %v2032 = vpop.xlane.xlu0 %2031
  %v2033 = vsub.f32 %v2025, %v2032
  %v2034 = vmul.f32 %v2033, 1.442695
  %v2035 = vpow.pop %v2034
  %v2036 = vsel %vm651, %v2035, 0.0
  %2037 = vadd.xlane.f32.xlu0 %v2036
  %v2038 = vpop.xlane.xlu0 %2037
  %v2039 = vrcp.pop %v2038
  %v2040 = vmul.f32 %v2035, %v2039
  %v2041 = vadd.f32 %v2040, 0.0
  %v2042 = vpack.c.bf16 %v2040, %v2040
  %2044 = vrot.lane.b32.xlu0 %v1531, 64
  %v2045 = vpop.permute.xlu0 %2044
  %v2048 = vsel %vm651, %v2042, 0
  %2050 = vmatprep.subr.bf16.mxu0 0
  %2051 = vmatpush1.bf16.msra.mxu0 %v2045
  %2052 = vmatprep.subr.bf16.mxu0 0
  %2053 = vmatpush1.bf16.msra.mxu0 0
  %2054 = vmatprep.subr.bf16.mxu0 0
  %2055 = vmatpush1.bf16.msra.mxu0 0
  %2056 = vmatprep.subr.bf16.mxu0 0
  %2057 = vmatpush1.bf16.msra.mxu0 0
  %2058 = vmatprep.subr.bf16.mxu0 0
  %2059 = vmatpush1.bf16.msra.mxu0 0
  %2060 = vmatprep.subr.bf16.mxu0 0
  %2061 = vmatpush1.bf16.msra.mxu0 0
  %2062 = vmatprep.subr.bf16.mxu0 0
  %2063 = vmatpush1.bf16.msra.mxu0 0
  %2064 = vmatprep.subr.bf16.mxu0 0
  %2065 = vmatpush1.bf16.msra.mxu0 0
  %2066 = vmatprep.subr.bf16.mxu0 0
  %2067 = vmatpush1.bf16.msra.mxu0 0
  %2068 = vmatprep.subr.bf16.mxu0 0
  %2069 = vmatpush1.bf16.msra.mxu0 0
  %2070 = vmatprep.subr.bf16.mxu0 0
  %2071 = vmatpush1.bf16.msra.mxu0 0
  %2072 = vmatprep.subr.bf16.mxu0 0
  %2073 = vmatpush1.bf16.msra.mxu0 0
  %2074 = vmatprep.subr.bf16.mxu0 0
  %2075 = vmatpush1.bf16.msra.mxu0 0
  %2076 = vmatprep.subr.bf16.mxu0 0
  %2077 = vmatpush1.bf16.msra.mxu0 0
  %2078 = vmatprep.subr.bf16.mxu0 0
  %2079 = vmatpush1.bf16.msra.mxu0 0
  %2080 = vmatprep.subr.bf16.mxu0 0
  %2081 = vmatpush1.bf16.msra.mxu0 0
  %2082 = vmatprep.mubr.bf16.mxu0 0
  %2083 = vmatmul.mubr.bf16.gmra.mrb[0].mxu0 %v2048
  %v2084 = vpop.f32.mrb[0].mxu0
  %v2085 = vadd.f32 0.0, %v2084
  %v2086 = vpop.f32.mrb[0].mxu0
  %v2087 = vpop.f32.mrb[0].mxu0
  %v2088 = vpop.f32.mrb[0].mxu0
  %2089 = vdwg.mxu0
  %2090 = vrot.lane.b32.xlu0 %v1983, 112
  %v2091 = vpop.permute.xlu0 %2090
  %2093 = vrot.lane.b32.xlu0 %v1529, 112
  %v2094 = vpop.permute.xlu0 %2093
  %v2096 = vsel %vm651, %v2091, 0
  %v2099 = vsel %vm651, %v2094, 0
  %2101 = vmatprep.subr.bf16.mxu0 0
  %2102 = vmatpush1.bf16.xpose.msra.mxu0 %v2099
  %2103 = vmatprep.subr.bf16.mxu0 0
  %2104 = vmatpush1.bf16.xpose.msra.mxu0 0
  %2105 = vmatprep.subr.bf16.mxu0 0
  %2106 = vmatpush1.bf16.xpose.msra.mxu0 0
  %2107 = vmatprep.subr.bf16.mxu0 0
  %2108 = vmatpush1.bf16.xpose.msra.mxu0 0
  %2109 = vmatprep.subr.bf16.mxu0 0
  %2110 = vmatpush1.bf16.xpose.msra.mxu0 0
  %2111 = vmatprep.subr.bf16.mxu0 0
  %2112 = vmatpush1.bf16.xpose.msra.mxu0 0
  %2113 = vmatprep.subr.bf16.mxu0 0
  %2114 = vmatpush1.bf16.xpose.msra.mxu0 0
  %2115 = vmatprep.subr.bf16.mxu0 0
  %2116 = vmatpush1.bf16.xpose.msra.mxu0 0
  %2117 = vmatprep.subr.bf16.mxu0 0
  %2118 = vmatpush1.bf16.xpose.msra.mxu0 0
  %2119 = vmatprep.subr.bf16.mxu0 0
  %2120 = vmatpush1.bf16.xpose.msra.mxu0 0
  %2121 = vmatprep.subr.bf16.mxu0 0
  %2122 = vmatpush1.bf16.xpose.msra.mxu0 0
  %2123 = vmatprep.subr.bf16.mxu0 0
  %2124 = vmatpush1.bf16.xpose.msra.mxu0 0
  %2125 = vmatprep.subr.bf16.mxu0 0
  %2126 = vmatpush1.bf16.xpose.msra.mxu0 0
  %2127 = vmatprep.subr.bf16.mxu0 0
  %2128 = vmatpush1.bf16.xpose.msra.mxu0 0
  %2129 = vmatprep.subr.bf16.mxu0 0
  %2130 = vmatpush1.bf16.xpose.msra.mxu0 0
  %2131 = vmatprep.subr.bf16.mxu0 0
  %2132 = vmatpush1.bf16.xpose.msra.mxu0 0
  %2133 = vmatprep.mubr.bf16.mxu0 0
  %2134 = vmatmul.mubr.bf16.gmra.mrb[0].mxu0 %v2096
  %v2135 = vpop.f32.mrb[0].mxu0
  %v2136 = vadd.f32 0.0, %v2135
  %v2137 = vpop.f32.mrb[0].mxu0
  %v2138 = vpop.f32.mrb[0].mxu0
  %v2139 = vpop.f32.mrb[0].mxu0
  %2140 = vdwg.mxu0
  %v2141 = vsel %vm651, %v2136, -inf
  %2142 = vmax.xlane.f32.xlu0 %v2141
  %v2143 = vpop.xlane.xlu0 %2142
  %v2144 = vsub.f32 %v2136, %v2143
  %v2145 = vmul.f32 %v2144, 1.442695
  %v2146 = vpow.pop %v2145
  %v2147 = vsel %vm651, %v2146, 0.0
  %2148 = vadd.xlane.f32.xlu0 %v2147
  %v2149 = vpop.xlane.xlu0 %2148
  %v2150 = vrcp.pop %v2149
  %v2151 = vmul.f32 %v2146, %v2150
  %v2152 = vadd.f32 %v2041, %v2151
  %v2153 = vpack.c.bf16 %v2151, %v2151
  %2154 = vrot.lane.b32.xlu0 %v1531, 56
  %v2155 = vpop.permute.xlu0 %2154
  %v2158 = vsel %vm651, %v2153, 0
  %2160 = vmatprep.subr.bf16.mxu0 0
  %2161 = vmatpush1.bf16.msra.mxu0 %v2155
  %2162 = vmatprep.subr.bf16.mxu0 0
  %2163 = vmatpush1.bf16.msra.mxu0 0
  %2164 = vmatprep.subr.bf16.mxu0 0
  %2165 = vmatpush1.bf16.msra.mxu0 0
  %2166 = vmatprep.subr.bf16.mxu0 0
  %2167 = vmatpush1.bf16.msra.mxu0 0
  %2168 = vmatprep.subr.bf16.mxu0 0
  %2169 = vmatpush1.bf16.msra.mxu0 0
  %2170 = vmatprep.subr.bf16.mxu0 0
  %2171 = vmatpush1.bf16.msra.mxu0 0
  %2172 = vmatprep.subr.bf16.mxu0 0
  %2173 = vmatpush1.bf16.msra.mxu0 0
  %2174 = vmatprep.subr.bf16.mxu0 0
  %2175 = vmatpush1.bf16.msra.mxu0 0
  %2176 = vmatprep.subr.bf16.mxu0 0
  %2177 = vmatpush1.bf16.msra.mxu0 0
  %2178 = vmatprep.subr.bf16.mxu0 0
  %2179 = vmatpush1.bf16.msra.mxu0 0
  %2180 = vmatprep.subr.bf16.mxu0 0
  %2181 = vmatpush1.bf16.msra.mxu0 0
  %2182 = vmatprep.subr.bf16.mxu0 0
  %2183 = vmatpush1.bf16.msra.mxu0 0
  %2184 = vmatprep.subr.bf16.mxu0 0
  %2185 = vmatpush1.bf16.msra.mxu0 0
  %2186 = vmatprep.subr.bf16.mxu0 0
  %2187 = vmatpush1.bf16.msra.mxu0 0
  %2188 = vmatprep.subr.bf16.mxu0 0
  %2189 = vmatpush1.bf16.msra.mxu0 0
  %2190 = vmatprep.subr.bf16.mxu0 0
  %2191 = vmatpush1.bf16.msra.mxu0 0
  %2192 = vmatprep.mubr.bf16.mxu0 0
  %2193 = vmatmul.mubr.bf16.gmra.mrb[0].mxu0 %v2158
  %v2194 = vpop.f32.mrb[0].mxu0
  %v2195 = vadd.f32 0.0, %v2194
  %v2196 = vpop.f32.mrb[0].mxu0
  %v2197 = vpop.f32.mrb[0].mxu0
  %v2198 = vpop.f32.mrb[0].mxu0
  %2199 = vdwg.mxu0
  %2200 = vrot.lane.b32.xlu0 %v1983, 96
  %v2201 = vpop.permute.xlu0 %2200
  %2202 = vrot.lane.b32.xlu0 %v1529, 96
  %v2203 = vpop.permute.xlu0 %2202
  %v2205 = vsel %vm651, %v2201, 0
  %v2208 = vsel %vm651, %v2203, 0
  %2210 = vmatprep.subr.bf16.mxu0 0
  %2211 = vmatpush1.bf16.xpose.msra.mxu0 %v2208
  %2212 = vmatprep.subr.bf16.mxu0 0
  %2213 = vmatpush1.bf16.xpose.msra.mxu0 0
  %2214 = vmatprep.subr.bf16.mxu0 0
  %2215 = vmatpush1.bf16.xpose.msra.mxu0 0
  %2216 = vmatprep.subr.bf16.mxu0 0
  %2217 = vmatpush1.bf16.xpose.msra.mxu0 0
  %2218 = vmatprep.subr.bf16.mxu0 0
  %2219 = vmatpush1.bf16.xpose.msra.mxu0 0
  %2220 = vmatprep.subr.bf16.mxu0 0
  %2221 = vmatpush1.bf16.xpose.msra.mxu0 0
  %2222 = vmatprep.subr.bf16.mxu0 0
  %2223 = vmatpush1.bf16.xpose.msra.mxu0 0
  %2224 = vmatprep.subr.bf16.mxu0 0
  %2225 = vmatpush1.bf16.xpose.msra.mxu0 0
  %2226 = vmatprep.subr.bf16.mxu0 0
  %2227 = vmatpush1.bf16.xpose.msra.mxu0 0
  %2228 = vmatprep.subr.bf16.mxu0 0
  %2229 = vmatpush1.bf16.xpose.msra.mxu0 0
  %2230 = vmatprep.subr.bf16.mxu0 0
  %2231 = vmatpush1.bf16.xpose.msra.mxu0 0
  %2232 = vmatprep.subr.bf16.mxu0 0
  %2233 = vmatpush1.bf16.xpose.msra.mxu0 0
  %2234 = vmatprep.subr.bf16.mxu0 0
  %2235 = vmatpush1.bf16.xpose.msra.mxu0 0
  %2236 = vmatprep.subr.bf16.mxu0 0
  %2237 = vmatpush1.bf16.xpose.msra.mxu0 0
  %2238 = vmatprep.subr.bf16.mxu0 0
  %2239 = vmatpush1.bf16.xpose.msra.mxu0 0
  %2240 = vmatprep.subr.bf16.mxu0 0
  %2241 = vmatpush1.bf16.xpose.msra.mxu0 0
  %2242 = vmatprep.mubr.bf16.mxu0 0
  %2243 = vmatmul.mubr.bf16.gmra.mrb[0].mxu0 %v2205
  %v2244 = vpop.f32.mrb[0].mxu0
  %v2245 = vadd.f32 0.0, %v2244
  %v2246 = vpop.f32.mrb[0].mxu0
  %v2247 = vpop.f32.mrb[0].mxu0
  %v2248 = vpop.f32.mrb[0].mxu0
  %2249 = vdwg.mxu0
  %v2250 = vsel %vm651, %v2245, -inf
  %2251 = vmax.xlane.f32.xlu0 %v2250
  %v2252 = vpop.xlane.xlu0 %2251
  %v2253 = vsub.f32 %v2245, %v2252
  %v2254 = vmul.f32 %v2253, 1.442695
  %v2255 = vpow.pop %v2254
  %v2256 = vsel %vm651, %v2255, 0.0
  %2257 = vadd.xlane.f32.xlu0 %v2256
  %v2258 = vpop.xlane.xlu0 %2257
  %v2259 = vrcp.pop %v2258
  %v2260 = vmul.f32 %v2255, %v2259
  %v2261 = vadd.f32 %v2152, %v2260
  %v2262 = vpack.c.bf16 %v2260, %v2260
  %2263 = vrot.lane.b32.xlu0 %v1531, 48
  %v2264 = vpop.permute.xlu0 %2263
  %v2267 = vsel %vm651, %v2262, 0
  %2269 = vmatprep.subr.bf16.mxu0 0
  %2270 = vmatpush1.bf16.msra.mxu0 %v2264
  %2271 = vmatprep.subr.bf16.mxu0 0
  %2272 = vmatpush1.bf16.msra.mxu0 0
  %2273 = vmatprep.subr.bf16.mxu0 0
  %2274 = vmatpush1.bf16.msra.mxu0 0
  %2275 = vmatprep.subr.bf16.mxu0 0
  %2276 = vmatpush1.bf16.msra.mxu0 0
  %2277 = vmatprep.subr.bf16.mxu0 0
  %2278 = vmatpush1.bf16.msra.mxu0 0
  %2279 = vmatprep.subr.bf16.mxu0 0
  %2280 = vmatpush1.bf16.msra.mxu0 0
  %2281 = vmatprep.subr.bf16.mxu0 0
  %2282 = vmatpush1.bf16.msra.mxu0 0
  %2283 = vmatprep.subr.bf16.mxu0 0
  %2284 = vmatpush1.bf16.msra.mxu0 0
  %2285 = vmatprep.subr.bf16.mxu0 0
  %2286 = vmatpush1.bf16.msra.mxu0 0
  %2287 = vmatprep.subr.bf16.mxu0 0
  %2288 = vmatpush1.bf16.msra.mxu0 0
  %2289 = vmatprep.subr.bf16.mxu0 0
  %2290 = vmatpush1.bf16.msra.mxu0 0
  %2291 = vmatprep.subr.bf16.mxu0 0
  %2292 = vmatpush1.bf16.msra.mxu0 0
  %2293 = vmatprep.subr.bf16.mxu0 0
  %2294 = vmatpush1.bf16.msra.mxu0 0
  %2295 = vmatprep.subr.bf16.mxu0 0
  %2296 = vmatpush1.bf16.msra.mxu0 0
  %2297 = vmatprep.subr.bf16.mxu0 0
  %2298 = vmatpush1.bf16.msra.mxu0 0
  %2299 = vmatprep.subr.bf16.mxu0 0
  %2300 = vmatpush1.bf16.msra.mxu0 0
  %2301 = vmatprep.mubr.bf16.mxu0 0
  %2302 = vmatmul.mubr.bf16.gmra.mrb[0].mxu0 %v2267
  %v2303 = vpop.f32.mrb[0].mxu0
  %v2304 = vadd.f32 0.0, %v2303
  %v2305 = vpop.f32.mrb[0].mxu0
  %v2306 = vpop.f32.mrb[0].mxu0
  %v2307 = vpop.f32.mrb[0].mxu0
  %2308 = vdwg.mxu0
  %2309 = vrot.lane.b32.xlu0 %v1983, 80
  %v2310 = vpop.permute.xlu0 %2309
  %2311 = vrot.lane.b32.xlu0 %v1529, 80
  %v2312 = vpop.permute.xlu0 %2311
  %v2314 = vsel %vm651, %v2310, 0
  %v2317 = vsel %vm651, %v2312, 0
  %2319 = vmatprep.subr.bf16.mxu0 0
  %2320 = vmatpush1.bf16.xpose.msra.mxu0 %v2317
  %2321 = vmatprep.subr.bf16.mxu0 0
  %2322 = vmatpush1.bf16.xpose.msra.mxu0 0
  %2323 = vmatprep.subr.bf16.mxu0 0
  %2324 = vmatpush1.bf16.xpose.msra.mxu0 0
  %2325 = vmatprep.subr.bf16.mxu0 0
  %2326 = vmatpush1.bf16.xpose.msra.mxu0 0
  %2327 = vmatprep.subr.bf16.mxu0 0
  %2328 = vmatpush1.bf16.xpose.msra.mxu0 0
  %2329 = vmatprep.subr.bf16.mxu0 0
  %2330 = vmatpush1.bf16.xpose.msra.mxu0 0
  %2331 = vmatprep.subr.bf16.mxu0 0
  %2332 = vmatpush1.bf16.xpose.msra.mxu0 0
  %2333 = vmatprep.subr.bf16.mxu0 0
  %2334 = vmatpush1.bf16.xpose.msra.mxu0 0
  %2335 = vmatprep.subr.bf16.mxu0 0
  %2336 = vmatpush1.bf16.xpose.msra.mxu0 0
  %2337 = vmatprep.subr.bf16.mxu0 0
  %2338 = vmatpush1.bf16.xpose.msra.mxu0 0
  %2339 = vmatprep.subr.bf16.mxu0 0
  %2340 = vmatpush1.bf16.xpose.msra.mxu0 0
  %2341 = vmatprep.subr.bf16.mxu0 0
  %2342 = vmatpush1.bf16.xpose.msra.mxu0 0
  %2343 = vmatprep.subr.bf16.mxu0 0
  %2344 = vmatpush1.bf16.xpose.msra.mxu0 0
  %2345 = vmatprep.subr.bf16.mxu0 0
  %2346 = vmatpush1.bf16.xpose.msra.mxu0 0
  %2347 = vmatprep.subr.bf16.mxu0 0
  %2348 = vmatpush1.bf16.xpose.msra.mxu0 0
  %2349 = vmatprep.subr.bf16.mxu0 0
  %2350 = vmatpush1.bf16.xpose.msra.mxu0 0
  %2351 = vmatprep.mubr.bf16.mxu0 0
  %2352 = vmatmul.mubr.bf16.gmra.mrb[0].mxu0 %v2314
  %v2353 = vpop.f32.mrb[0].mxu0
  %v2354 = vadd.f32 0.0, %v2353
  %v2355 = vpop.f32.mrb[0].mxu0
  %v2356 = vpop.f32.mrb[0].mxu0
  %v2357 = vpop.f32.mrb[0].mxu0
  %2358 = vdwg.mxu0
  %v2359 = vsel %vm651, %v2354, -inf
  %2360 = vmax.xlane.f32.xlu0 %v2359
  %v2361 = vpop.xlane.xlu0 %2360
  %v2362 = vsub.f32 %v2354, %v2361
  %v2363 = vmul.f32 %v2362, 1.442695
  %v2364 = vpow.pop %v2363
  %v2365 = vsel %vm651, %v2364, 0.0
  %2366 = vadd.xlane.f32.xlu0 %v2365
  %v2367 = vpop.xlane.xlu0 %2366
  %v2368 = vrcp.pop %v2367
  %v2369 = vmul.f32 %v2364, %v2368
  %v2370 = vadd.f32 %v2261, %v2369
  %v2371 = vpack.c.bf16 %v2369, %v2369
  %2372 = vrot.lane.b32.xlu0 %v1531, 40
  %v2373 = vpop.permute.xlu0 %2372
  %v2376 = vsel %vm651, %v2371, 0
  %2378 = vmatprep.subr.bf16.mxu0 0
  %2379 = vmatpush1.bf16.msra.mxu0 %v2373
  %2380 = vmatprep.subr.bf16.mxu0 0
  %2381 = vmatpush1.bf16.msra.mxu0 0
  %2382 = vmatprep.subr.bf16.mxu0 0
  %2383 = vmatpush1.bf16.msra.mxu0 0
  %2384 = vmatprep.subr.bf16.mxu0 0
  %2385 = vmatpush1.bf16.msra.mxu0 0
  %2386 = vmatprep.subr.bf16.mxu0 0
  %2387 = vmatpush1.bf16.msra.mxu0 0
  %2388 = vmatprep.subr.bf16.mxu0 0
  %2389 = vmatpush1.bf16.msra.mxu0 0
  %2390 = vmatprep.subr.bf16.mxu0 0
  %2391 = vmatpush1.bf16.msra.mxu0 0
  %2392 = vmatprep.subr.bf16.mxu0 0
  %2393 = vmatpush1.bf16.msra.mxu0 0
  %2394 = vmatprep.subr.bf16.mxu0 0
  %2395 = vmatpush1.bf16.msra.mxu0 0
  %2396 = vmatprep.subr.bf16.mxu0 0
  %2397 = vmatpush1.bf16.msra.mxu0 0
  %2398 = vmatprep.subr.bf16.mxu0 0
  %2399 = vmatpush1.bf16.msra.mxu0 0
  %2400 = vmatprep.subr.bf16.mxu0 0
  %2401 = vmatpush1.bf16.msra.mxu0 0
  %2402 = vmatprep.subr.bf16.mxu0 0
  %2403 = vmatpush1.bf16.msra.mxu0 0
  %2404 = vmatprep.subr.bf16.mxu0 0
  %2405 = vmatpush1.bf16.msra.mxu0 0
  %2406 = vmatprep.subr.bf16.mxu0 0
  %2407 = vmatpush1.bf16.msra.mxu0 0
  %2408 = vmatprep.subr.bf16.mxu0 0
  %2409 = vmatpush1.bf16.msra.mxu0 0
  %2410 = vmatprep.mubr.bf16.mxu0 0
  %2411 = vmatmul.mubr.bf16.gmra.mrb[0].mxu0 %v2376
  %v2412 = vpop.f32.mrb[0].mxu0
  %v2413 = vadd.f32 0.0, %v2412
  %v2414 = vpop.f32.mrb[0].mxu0
  %v2415 = vpop.f32.mrb[0].mxu0
  %v2416 = vpop.f32.mrb[0].mxu0
  %2417 = vdwg.mxu0
  %2419 = vrot.lane.b32.xlu0 %v2195, 8
  %v2420 = vpop.permute.xlu0 %2419
  %2423 = vrot.lane.b32.xlu0 %v2304, 16
  %v2424 = vpop.permute.xlu0 %2423
  %2427 = vrot.lane.b32.xlu0 %v2413, 24
  %v2428 = vpop.permute.xlu0 %2427
  %v2430 = vsel %vm195, %v2085, %v2420
  %v2431 = vsel %vm651, %v2430, %v2424
  %v2432 = vsel %vm653, %v2431, %v2428
  %v2433 = vmul.f32 %v2370, 0.25
  %v2434 = vpack.c.bf16 %v2432, %v1981
  %v2435 = vld [vmem:[%s6 + $0x6] sm:$0x1]
  %v2436 = vlaneseq
  %v2437 = vshrl.u32 %v2436, 7
  %v2438 = vsub.s32 0, %v2437
  %v2439 = vrot.slane %v2435, %v2438
  %2440 = vrot.lane.b32.xlu0 %v1134, 32
  %v2441 = vpop.permute.xlu0 %2440
  %2442 = vrot.lane.b32.xlu0 %v1135, 32
  %v2443 = vpop.permute.xlu0 %2442
  %v2447 = vsel %vm56, %v2434, 0
  %2449 = vmatprep.subr.bf16.mxu0 0
  %2450 = vmatpush1.bf16.msra.mxu0 %v2441
  %2451 = vmatprep.subr.bf16.mxu0 0
  %2452 = vmatpush1.bf16.msra.mxu0 %v2443
  %2453 = vmatprep.subr.bf16.mxu0 0
  %2454 = vmatpush1.bf16.msra.mxu0 0
  %2455 = vmatprep.subr.bf16.mxu0 0
  %2456 = vmatpush1.bf16.msra.mxu0 0
  %2457 = vmatprep.subr.bf16.mxu0 0
  %2458 = vmatpush1.bf16.msra.mxu0 0
  %2459 = vmatprep.subr.bf16.mxu0 0
  %2460 = vmatpush1.bf16.msra.mxu0 0
  %2461 = vmatprep.subr.bf16.mxu0 0
  %2462 = vmatpush1.bf16.msra.mxu0 0
  %2463 = vmatprep.subr.bf16.mxu0 0
  %2464 = vmatpush1.bf16.msra.mxu0 0
  %2465 = vmatprep.subr.bf16.mxu0 0
  %2466 = vmatpush1.bf16.msra.mxu0 0
  %2467 = vmatprep.subr.bf16.mxu0 0
  %2468 = vmatpush1.bf16.msra.mxu0 0
  %2469 = vmatprep.subr.bf16.mxu0 0
  %2470 = vmatpush1.bf16.msra.mxu0 0
  %2471 = vmatprep.subr.bf16.mxu0 0
  %2472 = vmatpush1.bf16.msra.mxu0 0
  %2473 = vmatprep.subr.bf16.mxu0 0
  %2474 = vmatpush1.bf16.msra.mxu0 0
  %2475 = vmatprep.subr.bf16.mxu0 0
  %2476 = vmatpush1.bf16.msra.mxu0 0
  %2477 = vmatprep.subr.bf16.mxu0 0
  %2478 = vmatpush1.bf16.msra.mxu0 0
  %2479 = vmatprep.subr.bf16.mxu0 0
  %2480 = vmatpush1.bf16.msra.mxu0 0
  %2481 = vmatprep.mubr.bf16.mxu0 0
  %2482 = vmatmul.mubr.bf16.gmra.mrb[0].mxu0 %v2447
  %v2483 = vpop.f32.mrb[0].mxu0
  %v2484 = vadd.f32 %v2439, %v2483
  %v2485 = vpop.f32.mrb[0].mxu0
  %v2486 = vpop.f32.mrb[0].mxu0
  %v2487 = vadd.f32 %v2439, %v2486
  %v2488 = vpop.f32.mrb[0].mxu0
  %2489 = vdwg.mxu0
  %v2490 = vadd.f32 %v1227, %v2484
  %v2491 = vadd.f32 %v1228, %v2487
  %v2492 = vld [vmem:[%s6 + $0x7] sm:$0x1]
  %v2493 = vld [vmem:[%s6 + $0x8] sm:$0x1]
  %v2494 = vsel %vm56, %v2490, 0.0
  %2495 = vadd.xlane.f32.xlu0 %v2494
  %v2496 = vpop.xlane.xlu0 %2495
  %v2497 = vsel %vm56, %v2491, 0.0
  %2498 = vadd.xlane.f32.xlu0 %v2497
  %v2499 = vpop.xlane.xlu0 %2498
  %v2500 = vmul.f32 %v2496, %v1196
  %v2501 = vmul.f32 %v2499, %v1196
  %v2502 = vsub.f32 %v2490, %v2500
  %v2503 = vsub.f32 %v2491, %v2501
  %v2504 = vmul.f32 %v2502, %v2502
  %v2505 = vmul.f32 %v2503, %v2503
  %v2506 = vsel %vm56, %v2504, 0.0
  %2507 = vadd.xlane.f32.xlu0 %v2506
  %v2508 = vpop.xlane.xlu0 %2507
  %v2509 = vsel %vm56, %v2505, 0.0
  %2510 = vadd.xlane.f32.xlu0 %v2509
  %v2511 = vpop.xlane.xlu0 %2510
  %v2512 = vmul.f32 %v2508, %v1196
  %v2513 = vmul.f32 %v2511, %v1196
  %v2514 = vadd.f32 %v2512, 1e-05
  %v2515 = vadd.f32 %v2513, 1e-05
  %v2516 = vrsqrt.pop %v2514
  %v2517 = vrsqrt.pop %v2515
  %v2518 = vmul.f32 %v2502, %v2516
  %v2519 = vmul.f32 %v2503, %v2517
  %v2520 = vlaneseq
  %v2521 = vshrl.u32 %v2520, 7
  %v2522 = vsub.s32 0, %v2521
  %v2523 = vrot.slane %v2492, %v2522
  %v2524 = vmul.f32 %v2518, %v2523
  %v2525 = vmul.f32 %v2519, %v2523
  %v2526 = vlaneseq
  %v2527 = vshrl.u32 %v2526, 7
  %v2528 = vsub.s32 0, %v2527
  %v2529 = vrot.slane %v2493, %v2528
  %v2530 = vadd.f32 %v2524, %v2529
  %v2531 = vadd.f32 %v2525, %v2529
  %v2532 = vld [vmem:[%s4 + $0x10] sm:$0xf]
  %v2533 = vld [vmem:[%s4 + $0x24] sm:$0xf]
  %v2534 = vld [vmem:[%s4 + $0x38] sm:$0xf]
  %v2535 = vld [vmem:[%s4 + $0x4c] sm:$0xf]
  %v2536 = vpack.c.bf16 %v2531, %v2530
  %v2537 = vld [vmem:[%s6 + $0x9] sm:$0x1]
  %v2538 = vlaneseq
  %v2539 = vshrl.u32 %v2538, 7
  %v2540 = vsub.s32 0, %v2539
  %v2541 = vrot.slane %v2537, %v2540
  %v2546 = vunpack.c.l.b16 %v2532
  %v2547 = vunpack.c.l.b16 %v2533
  %v2548 = vunpack.c.l.b16 %v2534
  %v2549 = vunpack.c.l.b16 %v2535
  %v2550 = vpack.c.b16 %v2547, %v2546
  %v2551 = vpack.c.b16 %v2549, %v2548
  %v2555 = vsel %vm56, %v2536, 0
  %2557 = vmatprep.subr.bf16.mxu0 0
  %2558 = vmatpush1.bf16.msra.mxu0 %v2550
  %2559 = vmatprep.subr.bf16.mxu0 0
  %2560 = vmatpush1.bf16.msra.mxu0 %v2551
  %2561 = vmatprep.subr.bf16.mxu0 0
  %2562 = vmatpush1.bf16.msra.mxu0 0
  %2563 = vmatprep.subr.bf16.mxu0 0
  %2564 = vmatpush1.bf16.msra.mxu0 0
  %2565 = vmatprep.subr.bf16.mxu0 0
  %2566 = vmatpush1.bf16.msra.mxu0 0
  %2567 = vmatprep.subr.bf16.mxu0 0
  %2568 = vmatpush1.bf16.msra.mxu0 0
  %2569 = vmatprep.subr.bf16.mxu0 0
  %2570 = vmatpush1.bf16.msra.mxu0 0
  %2571 = vmatprep.subr.bf16.mxu0 0
  %2572 = vmatpush1.bf16.msra.mxu0 0
  %2573 = vmatprep.subr.bf16.mxu0 0
  %2574 = vmatpush1.bf16.msra.mxu0 0
  %2575 = vmatprep.subr.bf16.mxu0 0
  %2576 = vmatpush1.bf16.msra.mxu0 0
  %2577 = vmatprep.subr.bf16.mxu0 0
  %2578 = vmatpush1.bf16.msra.mxu0 0
  %2579 = vmatprep.subr.bf16.mxu0 0
  %2580 = vmatpush1.bf16.msra.mxu0 0
  %2581 = vmatprep.subr.bf16.mxu0 0
  %2582 = vmatpush1.bf16.msra.mxu0 0
  %2583 = vmatprep.subr.bf16.mxu0 0
  %2584 = vmatpush1.bf16.msra.mxu0 0
  %2585 = vmatprep.subr.bf16.mxu0 0
  %2586 = vmatpush1.bf16.msra.mxu0 0
  %2587 = vmatprep.subr.bf16.mxu0 0
  %2588 = vmatpush1.bf16.msra.mxu0 0
  %2589 = vmatprep.mubr.bf16.mxu0 0
  %2590 = vmatmul.mubr.bf16.gmra.mrb[0].mxu0 %v2555
  %v2591 = vpop.f32.mrb[0].mxu0
  %v2592 = vadd.f32 %v2541, %v2591
  %v2593 = vpop.f32.mrb[0].mxu0
  %v2594 = vpop.f32.mrb[0].mxu0
  %v2595 = vadd.f32 %v2541, %v2594
  %v2596 = vpop.f32.mrb[0].mxu0
  %2597 = vdwg.mxu0
  %v2598 = vmax.f32 %v2592, 0.0
  %v2599 = vmax.f32 %v2595, 0.0
  %v2600 = vpack.c.bf16 %v2599, %v2598
  %v2601 = vld [vmem:[%s5] sm:$0xf]
  %v2602 = vld [vmem:[%s5 + $0x4] sm:$0xf]
  %v2603 = vld [vmem:[%s5 + $0x8] sm:$0xf]
  %v2604 = vld [vmem:[%s5 + $0xc] sm:$0xf]
  %v2605 = vld [vmem:[%s5 + $0x10] sm:$0xf]
  %v2606 = vld [vmem:[%s5 + $0x14] sm:$0xf]
  %v2607 = vld [vmem:[%s5 + $0x18] sm:$0xf]
  %v2608 = vld [vmem:[%s5 + $0x1c] sm:$0xf]
  %v2609 = vld [vmem:[%s6 + $0xa] sm:$0x1]
  %v2610 = vlaneseq
  %v2611 = vshrl.u32 %v2610, 7
  %v2612 = vsub.s32 0, %v2611
  %v2613 = vrot.slane %v2609, %v2612
  %v2622 = vunpack.c.l.b16 %v2601
  %v2623 = vunpack.c.l.b16 %v2602
  %v2624 = vunpack.c.l.b16 %v2603
  %v2625 = vunpack.c.l.b16 %v2604
  %v2626 = vunpack.c.l.b16 %v2605
  %v2627 = vunpack.c.l.b16 %v2606
  %v2628 = vunpack.c.l.b16 %v2607
  %v2629 = vunpack.c.l.b16 %v2608
  %v2630 = vpack.c.b16 %v2623, %v2622
  %v2631 = vpack.c.b16 %v2625, %v2624
  %v2632 = vpack.c.b16 %v2627, %v2626
  %v2633 = vpack.c.b16 %v2629, %v2628
  %vm2638 = vcmask 523264
  %v2640 = vsel %vm2638, %v2600, 0
  %2642 = vmatprep.subr.bf16.mxu0 0
  %2643 = vmatpush1.bf16.msra.mxu0 %v2630
  %2644 = vmatprep.subr.bf16.mxu0 0
  %2645 = vmatpush1.bf16.msra.mxu0 %v2631
  %2646 = vmatprep.subr.bf16.mxu0 0
  %2647 = vmatpush1.bf16.msra.mxu0 %v2632
  %2648 = vmatprep.subr.bf16.mxu0 0
  %2649 = vmatpush1.bf16.msra.mxu0 %v2633
  %2650 = vmatprep.subr.bf16.mxu0 0
  %2651 = vmatpush1.bf16.msra.mxu0 0
  %2652 = vmatprep.subr.bf16.mxu0 0
  %2653 = vmatpush1.bf16.msra.mxu0 0
  %2654 = vmatprep.subr.bf16.mxu0 0
  %2655 = vmatpush1.bf16.msra.mxu0 0
  %2656 = vmatprep.subr.bf16.mxu0 0
  %2657 = vmatpush1.bf16.msra.mxu0 0
  %2658 = vmatprep.subr.bf16.mxu0 0
  %2659 = vmatpush1.bf16.msra.mxu0 0
  %2660 = vmatprep.subr.bf16.mxu0 0
  %2661 = vmatpush1.bf16.msra.mxu0 0
  %2662 = vmatprep.subr.bf16.mxu0 0
  %2663 = vmatpush1.bf16.msra.mxu0 0
  %2664 = vmatprep.subr.bf16.mxu0 0
  %2665 = vmatpush1.bf16.msra.mxu0 0
  %2666 = vmatprep.subr.bf16.mxu0 0
  %2667 = vmatpush1.bf16.msra.mxu0 0
  %2668 = vmatprep.subr.bf16.mxu0 0
  %2669 = vmatpush1.bf16.msra.mxu0 0
  %2670 = vmatprep.subr.bf16.mxu0 0
  %2671 = vmatpush1.bf16.msra.mxu0 0
  %2672 = vmatprep.subr.bf16.mxu0 0
  %2673 = vmatpush1.bf16.msra.mxu0 0
  %2674 = vmatprep.mubr.bf16.mxu0 0
  %2675 = vmatmul.mubr.bf16.gmra.mrb[0].mxu0 %v2640
  %v2676 = vpop.f32.mrb[0].mxu0
  %v2677 = vadd.f32 %v2613, %v2676
  %v2678 = vpop.f32.mrb[0].mxu0
  %v2679 = vpop.f32.mrb[0].mxu0
  %v2680 = vadd.f32 %v2613, %v2679
  %v2681 = vpop.f32.mrb[0].mxu0
  %2682 = vdwg.mxu0
  %v2683 = vadd.f32 %v2530, %v2677
  %v2684 = vadd.f32 %v2531, %v2680
  %v2685 = vld [vmem:[%s6 + $0xb] sm:$0x1]
  %v2686 = vld [vmem:[%s6 + $0xc] sm:$0x1]
  %v2687 = vsel %vm56, %v2683, 0.0
  %2688 = vadd.xlane.f32.xlu0 %v2687
  %v2689 = vpop.xlane.xlu0 %2688
  %v2690 = vsel %vm56, %v2684, 0.0
  %2691 = vadd.xlane.f32.xlu0 %v2690
  %v2692 = vpop.xlane.xlu0 %2691
  %v2693 = vmul.f32 %v2689, %v1196
  %v2694 = vmul.f32 %v2692, %v1196
  %v2695 = vsub.f32 %v2683, %v2693
  %v2696 = vsub.f32 %v2684, %v2694
  %v2697 = vmul.f32 %v2695, %v2695
  %v2698 = vmul.f32 %v2696, %v2696
  %v2699 = vsel %vm56, %v2697, 0.0
  %2700 = vadd.xlane.f32.xlu0 %v2699
  %v2701 = vpop.xlane.xlu0 %2700
  %v2702 = vsel %vm56, %v2698, 0.0
  %2703 = vadd.xlane.f32.xlu0 %v2702
  %v2704 = vpop.xlane.xlu0 %2703
  %v2705 = vmul.f32 %v2701, %v1196
  %v2706 = vmul.f32 %v2704, %v1196
  %v2707 = vadd.f32 %v2705, 1e-05
  %v2708 = vadd.f32 %v2706, 1e-05
  %v2709 = vrsqrt.pop %v2707
  %v2710 = vrsqrt.pop %v2708
  %v2711 = vmul.f32 %v2695, %v2709
  %v2712 = vmul.f32 %v2696, %v2710
  %v2713 = vlaneseq
  %v2714 = vshrl.u32 %v2713, 7
  %v2715 = vsub.s32 0, %v2714
  %v2716 = vrot.slane %v2685, %v2715
  %v2717 = vmul.f32 %v2711, %v2716
  %v2718 = vmul.f32 %v2712, %v2716
  %v2719 = vlaneseq
  %v2720 = vshrl.u32 %v2719, 7
  %v2721 = vsub.s32 0, %v2720
  %v2722 = vrot.slane %v2686, %v2721
  %v2723 = vadd.f32 %v2717, %v2722
  %v2724 = vadd.f32 %v2718, %v2722
  %2727 = vrot.lane.b32.xlu0 %v655, 32
  %v2728 = vpop.permute.xlu0 %2727
  %2729 = vrot.lane.b32.xlu0 %v1115, 32
  %v2730 = vpop.permute.xlu0 %2729
  %2735 = vrot.lane.b32.xlu0 %v1982, 40
  %v2736 = vpop.permute.xlu0 %2735
  %2737 = vrot.lane.b32.xlu0 %v2433, 40
  %v2738 = vpop.permute.xlu0 %2737
  %v2741 = vsel %vm56, %v2723, %v2728
  %v2742 = vsel %vm56, %v2724, %v2730
  %vm2743 = vcmask 326656
  %v2744 = vsel %vm2743, %v2741, %v2736
  %v2745 = vsel %vm2743, %v2742, %v2738
  %vm2746 = vcmask 457728
  %2747 = vst.msk [vmem:[%s7] sm:$0xff] %vm2746, %v2744
  %2748 = vst.msk [vmem:[%s7 + $0x8] sm:$0xff] %vm2746, %v2745
  // Predicated region
  $region30: #{decoder_layer_forward.1} parent=0 // pred_check
    _
  $region31: #{decoder_layer_forward.1} parent=0 // pred_check_branch
    %2750 = sbr.rel (0) target = $region33
  $region32: #{decoder_layer_forward.1} parent=0 // pred_region
    _
  $region33: #{decoder_layer_forward.1} parent=0 // pred_fallthru
    _
  // Predicated region
  $region34: #{decoder_layer_forward.1} parent=0 // pred_check
    _
  $region35: #{decoder_layer_forward.1} parent=0 // pred_check_branch
    %2752 = sbr.rel (0) target = $region37
  $region36: #{decoder_layer_forward.1} parent=0 // pred_region
    _
  $region37: #{decoder_layer_forward.1} parent=0 // pred_fallthru
    _

</llo_original>
